<compile_context>
chip_gen: v7x
topology: tpu7x:2x2x1
jax: 0.10.0
libtpu: 0.0.40
codegen_flags: <defaults>
</compile_context>

<pallas_src>
import math
import functools

import jax
import jax.numpy as jnp
from jax.experimental import pallas as pl
from jax.experimental.pallas import tpu as pltpu

_NUM_CONVS = 10          # 5 DoubleConv blocks x 2 convs each
_LANE = 128
# bf16 MXU operands per perf review; set to jnp.float32 to recover <1e-3
# agreement with the pure-f32 reference (tolerance is adjusted accordingly).
_CONV_DTYPE = jnp.bfloat16


# ----------------------------------------------------------------------------
# Pallas kernel: whole forward pass in VMEM (shapes are tiny), single grid pt.
# ----------------------------------------------------------------------------
def _unet_kernel(seq_len, kpad, conv_dtype, x_ref, w_ref, gb_ref, o_ref):
    n, cpad = x_ref.shape          # n = B*L, cpad = channels padded to 128
    inv_n = 1.0 / n

    row = jax.lax.broadcasted_iota(jnp.int32, (n, 1), 0)
    pos = row % seq_len
    not_first = (pos != 0).astype(jnp.float32)             # (n, 1)
    not_last = (pos != seq_len - 1).astype(jnp.float32)    # (n, 1)

    def conv3(h, i):
        # Conv1d(k=3, pad=1, stride=1, bias=False) on flattened (B*L, C) rows:
        # sublane roll (XLU) + per-sequence edge masks build the +/-1 taps.
        # Activation lanes >= real Cin are structurally zero, so we contract
        # only the first kpad lanes against (kpad, cpad) weight slabs:
        # three accumulated MXU dots, no taps buffer, 4x smaller weight DMA.
        h_prev = (pltpu.roll(h, 1, axis=0) * not_first)[:, :kpad]      # h[l-1]
        h_mid = h[:, :kpad]
        h_next = (pltpu.roll(h, n - 1, axis=0) * not_last)[:, :kpad]   # h[l+1]
        y = jnp.dot(h_prev.astype(conv_dtype), w_ref[i, 0],
                    preferred_element_type=jnp.float32)
        y = y + jnp.dot(h_mid.astype(conv_dtype), w_ref[i, 1],
                        preferred_element_type=jnp.float32)
        y = y + jnp.dot(h_next.astype(conv_dtype), w_ref[i, 2],
                        preferred_element_type=jnp.float32)
        return y

    def bn_relu(y, i):
        # BatchNorm1d, training-mode batch stats (biased var), eps=1e-5, + ReLU.
        # Affine folded into per-channel scale/shift (computed on (1, Cpad)):
        # only 2 full-width VPU passes (fma) + the ReLU max.
        gb = gb_ref[i]                                      # (2, Cpad): gamma, beta
        mean = jnp.sum(y, axis=0, keepdims=True) * inv_n
        ex2 = jnp.sum(y * y, axis=0, keepdims=True) * inv_n
        scale = gb[0:1, :] * jax.lax.rsqrt(ex2 - mean * mean + 1e-5)
        shift = gb[1:2, :] - mean * scale
        return jnp.maximum(y * scale + shift, 0.0)

    def double_conv(h, blk):
        h = bn_relu(conv3(h, 2 * blk), 2 * blk)
        return bn_relu(conv3(h, 2 * blk + 1), 2 * blk + 1)

    x = x_ref[...]                  # time embedding already added in the wrapper
    x1 = double_conv(x, 0)          # down1
    x2 = double_conv(x1, 1)         # down2
    x3 = double_conv(x2, 2)         # bottom
    x4 = double_conv(x3 + x2, 3)    # up1 (skip add)
    x5 = double_conv(x4 + x1, 4)    # up2 (skip add)
    o_ref[...] = x5                 # lane-dense (N, 128) store


# ----------------------------------------------------------------------------
# Glue: embedding, parameter init, wrapper, pure-JAX reference.
# ----------------------------------------------------------------------------
def sinusoidal_embedding(t, dim):
    half = dim // 2
    scale = math.log(10000.0) / (half - 1)
    freqs = jnp.exp(jnp.arange(half, dtype=jnp.float32) * -scale)
    args = t.astype(jnp.float32)[:, None] * freqs[None, :]
    return jnp.concatenate([jnp.sin(args), jnp.cos(args)], axis=-1)


def init_params(key, embedding_dim, hidden_dim):
    e, h, hh = embedding_dim, hidden_dim, hidden_dim // 2
    shapes = [(h, e), (h, h),      # down1
              (hh, h), (hh, hh),   # down2
              (hh, hh), (hh, hh),  # bottom
              (h, hh), (h, h),     # up1
              (e, h), (e, e)]      # up2
    ws, gs, bs = [], [], []
    for cout, cin in shapes:
        key, sub = jax.random.split(key)
        bound = 1.0 / math.sqrt(cin * 3)  # PyTorch kaiming-uniform bound (k=3)
        ws.append(jax.random.uniform(sub, (cout, cin, 3), jnp.float32, -bound, bound))
        gs.append(jnp.ones((cout,), jnp.float32))   # BN weight default
        bs.append(jnp.zeros((cout,), jnp.float32))  # BN bias default
    return ws, gs, bs


def _round_up(v, m):
    return ((v + m - 1) // m) * m


def unet_pallas(x_ncl, t, ws, gs, bs):
    b, c, l = x_ncl.shape
    n = b * l
    max_ch = max(max(w.shape[0], w.shape[1]) for w in ws)
    max_cin = max(max(w.shape[1] for w in ws), c)
    cpad = _round_up(max(max_ch, c), _LANE)    # lane-dense channel padding
    kpad = min(_round_up(max_cin, 16), cpad)   # contraction-dim padding (sublane)

    # TODO(synk): source does `x + t_embed` with x:(B,C,L) and t_embed:(B,C),
    # which does not broadcast in PyTorch; we implement the intended
    # per-channel add (t_embed broadcast over L), pre-added here in the wrapper.
    temb = sinusoidal_embedding(t, c)                                 # (B, C)
    x_nlc = jnp.transpose(x_ncl, (0, 2, 1)) + temb[:, None, :]        # (B, L, C)
    x2d = jnp.pad(x_nlc.reshape(n, c), ((0, 0), (0, cpad - c)))       # (N, Cpad)

    def pack_w(w):  # (Cout, Cin, 3) -> (3, Kpad, Cpad)
        cout, cin, _ = w.shape
        wt = jnp.transpose(w, (2, 1, 0))                              # (3, Cin, Cout)
        return jnp.pad(wt, ((0, 0), (0, kpad - cin), (0, cpad - cout)))

    w_packed = jnp.stack([pack_w(w) for w in ws]).astype(_CONV_DTYPE)  # (10,3,Kpad,Cpad)
    gb_packed = jnp.stack([
        jnp.stack([jnp.pad(g, (0, cpad - g.shape[0])),
                   jnp.pad(bb, (0, cpad - bb.shape[0]))])
        for g, bb in zip(gs, bs)]).astype(jnp.float32)                 # (10, 2, Cpad)

    out2d = pl.pallas_call(
        functools.partial(_unet_kernel, l, kpad, _CONV_DTYPE),
        out_shape=jax.ShapeDtypeStruct((n, cpad), jnp.float32),
        in_specs=[pl.BlockSpec(memory_space=pltpu.MemorySpace.VMEM)] * 3,
        out_specs=pl.BlockSpec(memory_space=pltpu.MemorySpace.VMEM),
    )(x2d, w_packed, gb_packed)
    return jnp.transpose(out2d[:, :c].reshape(b, l, c), (0, 2, 1))     # back to NCL


# ---------------------------- pure-JAX reference -----------------------------
def _ref_conv3(x_ncl, w):
    xp = jnp.pad(x_ncl, ((0, 0), (0, 0), (1, 1)))
    l = x_ncl.shape[-1]
    y = 0.0
    for k in range(3):
        y = y + jnp.einsum('bcl,oc->bol', xp[:, :, k:k + l], w[:, :, k])
    return y


def _ref_bn_relu(y, g, bb):
    mean = jnp.mean(y, axis=(0, 2), keepdims=True)
    var = jnp.mean(jnp.square(y - mean), axis=(0, 2), keepdims=True)
    yn = (y - mean) * jax.lax.rsqrt(var + 1e-5)
    return jnp.maximum(yn * g[None, :, None] + bb[None, :, None], 0.0)


def unet_reference(x_ncl, t, ws, gs, bs):
    temb = sinusoidal_embedding(t, x_ncl.shape[1])
    x = x_ncl + temb[:, :, None]

    def dc(x, i):
        h = _ref_bn_relu(_ref_conv3(x, ws[2 * i]), gs[2 * i], bs[2 * i])
        return _ref_bn_relu(_ref_conv3(h, ws[2 * i + 1]), gs[2 * i + 1], bs[2 * i + 1])

    x1 = dc(x, 0)
    x2 = dc(x1, 1)
    x3 = dc(x2, 2)
    x4 = dc(x3 + x2, 3)
    x5 = dc(x4 + x1, 4)
    return x5


if __name__ == "__main__":
    embedding_dim, hidden_dim = 8, 32
    batch, length = 2, 16

    key = jax.random.PRNGKey(0)
    kx, kt, kp = jax.random.split(key, 3)
    x = jax.random.normal(kx, (batch, embedding_dim, length), jnp.float32)  # NCL
    t = jax.random.randint(kt, (batch,), 0, 1000).astype(jnp.float32)
    ws, gs, bs = init_params(kp, embedding_dim, hidden_dim)

    out = jax.block_until_ready(jax.jit(unet_pallas)(x, t, ws, gs, bs))
    ref = jax.block_until_ready(unet_reference(x, t, ws, gs, bs))

    assert out.shape == (batch, embedding_dim, length)
    # bf16 MXU operands (per perf review) across 10 stacked convs loosen the
    # achievable agreement vs. the pure-f32 reference; with _CONV_DTYPE=float32
    # the kernel matches to <1e-3.
    tol = 1e-3 if _CONV_DTYPE is jnp.float32 else 5e-2
    err = float(jnp.max(jnp.abs(out - ref)))
    assert err < tol, f"mismatch vs pure-JAX reference: {err}"
    print("KERNEL_OK")
</pallas_src>

<mosaic_0001>
module attributes {stable_mosaic.version = 11 : i64} {
  func.func @_unet_kernel(%arg0: memref<32x128xf32, #tpu.memory_space<vmem>>, %arg1: memref<10x3x32x128xbf16, #tpu.memory_space<vmem>>, %arg2: memref<10x2x128xf32, #tpu.memory_space<vmem>>, %arg3: memref<32x128xf32, #tpu.memory_space<vmem>>) attributes {dimension_semantics = [], scalar_prefetch = 0 : i64, scratch_operands = 0 : i64, tpu.core_type = #tpu.core_type<tc>} {
    %0 = tpu.iota {dimensions = array<i32: 0>} : vector<32x1xi32>
    %c16_i32 = arith.constant 16 : i32
    %c0_i32 = arith.constant 0 : i32
    %1 = arith.cmpi eq, %c16_i32, %c0_i32 : i32
    %c1_i32 = arith.constant 1 : i32
    %2 = arith.select %1, %c1_i32, %c16_i32 : i32
    %3 = vector.broadcast %2 : i32 to vector<32x1xi32>
    %4 = arith.remsi %0, %3 : vector<32x1xi32>
    %c0_i32_0 = arith.constant 0 : i32
    %5 = vector.broadcast %c0_i32_0 : i32 to vector<32x1xi32>
    %6 = arith.cmpi ne, %4, %5 : vector<32x1xi32>
    %c0_i32_1 = arith.constant 0 : i32
    %7 = vector.broadcast %c0_i32_1 : i32 to vector<32x1xi32>
    %8 = arith.cmpi slt, %4, %7 : vector<32x1xi32>
    %c0_i32_2 = arith.constant 0 : i32
    %9 = arith.cmpi slt, %2, %c0_i32_2 : i32
    %10 = vector.broadcast %9 : i1 to vector<32x1xi1>
    %11 = vector.broadcast %10 : vector<32x1xi1> to vector<32x1xi1>
    %12 = arith.xori %8, %11 : vector<32x1xi1>
    %13 = arith.andi %12, %6 : vector<32x1xi1>
    %14 = vector.broadcast %2 : i32 to vector<32x1xi32>
    %15 = arith.addi %4, %14 : vector<32x1xi32>
    %16 = arith.select %13, %15, %4 : vector<32x1xi1>, vector<32x1xi32>
    %c0_i32_3 = arith.constant 0 : i32
    %17 = vector.broadcast %c0_i32_3 : i32 to vector<32x1xi32>
    %18 = arith.cmpi ne, %16, %17 : vector<32x1xi32>
    %19 = arith.extui %18 : vector<32x1xi1> to vector<32x1xi32>
    %20 = arith.sitofp %19 : vector<32x1xi32> to vector<32x1xf32>
    %c15_i32 = arith.constant 15 : i32
    %21 = vector.broadcast %c15_i32 : i32 to vector<32x1xi32>
    %22 = arith.cmpi ne, %16, %21 : vector<32x1xi32>
    %23 = arith.extui %22 : vector<32x1xi1> to vector<32x1xi32>
    %24 = arith.sitofp %23 : vector<32x1xi32> to vector<32x1xf32>
    %c0 = arith.constant 0 : index
    %c0_4 = arith.constant 0 : index
    %25 = vector.load %arg0[%c0, %c0_4] : memref<32x128xf32, #tpu.memory_space<vmem>>, vector<32x128xf32>
    %c1_i32_5 = arith.constant 1 : i32
    %26 = tpu.dynamic_rotate %25 by %c1_i32_5 dim 0 : vector<32x128xf32>, i32 -> vector<32x128xf32>
    %27 = vector.broadcast %20 : vector<32x1xf32> to vector<32x128xf32>
    %28 = arith.mulf %26, %27 : vector<32x128xf32>
    %29 = vector.extract_strided_slice %28 {offsets = [0, 0], sizes = [32, 32], strides = [1, 1]} : vector<32x128xf32> to vector<32x32xf32>
    %30 = vector.extract_strided_slice %25 {offsets = [0, 0], sizes = [32, 32], strides = [1, 1]} : vector<32x128xf32> to vector<32x32xf32>
    %c31_i32 = arith.constant 31 : i32
    %31 = tpu.dynamic_rotate %25 by %c31_i32 dim 0 : vector<32x128xf32>, i32 -> vector<32x128xf32>
    %32 = vector.broadcast %24 : vector<32x1xf32> to vector<32x128xf32>
    %33 = arith.mulf %31, %32 : vector<32x128xf32>
    %34 = vector.extract_strided_slice %33 {offsets = [0, 0], sizes = [32, 32], strides = [1, 1]} : vector<32x128xf32> to vector<32x32xf32>
    %35 = arith.truncf %29 : vector<32x32xf32> to vector<32x32xbf16>
    %c0_6 = arith.constant 0 : index
    %c0_7 = arith.constant 0 : index
    %c0_8 = arith.constant 0 : index
    %c0_9 = arith.constant 0 : index
    %36 = vector.load %arg1[%c0_6, %c0_7, %c0_8, %c0_9] : memref<10x3x32x128xbf16, #tpu.memory_space<vmem>>, vector<1x1x32x128xbf16>
    %37 = vector.shape_cast %36 : vector<1x1x32x128xbf16> to vector<32x128xbf16>
    %cst = arith.constant dense<0.000000e+00> : vector<32x128xf32>
    %38 = tpu.matmul %35, %37, %cst {dimension_numbers = #tpu.dot_dimension_numbers<[1], [0], [0], [1], [0, 0, 1, 1], [], []>} : vector<32x32xbf16>, vector<32x128xbf16>, vector<32x128xf32> -> vector<32x128xf32>
    %39 = arith.truncf %30 : vector<32x32xf32> to vector<32x32xbf16>
    %c0_10 = arith.constant 0 : index
    %c1 = arith.constant 1 : index
    %c0_11 = arith.constant 0 : index
    %c0_12 = arith.constant 0 : index
    %40 = vector.load %arg1[%c0_10, %c1, %c0_11, %c0_12] : memref<10x3x32x128xbf16, #tpu.memory_space<vmem>>, vector<1x1x32x128xbf16>
    %41 = vector.shape_cast %40 : vector<1x1x32x128xbf16> to vector<32x128xbf16>
    %cst_13 = arith.constant dense<0.000000e+00> : vector<32x128xf32>
    %42 = tpu.matmul %39, %41, %cst_13 {dimension_numbers = #tpu.dot_dimension_numbers<[1], [0], [0], [1], [0, 0, 1, 1], [], []>} : vector<32x32xbf16>, vector<32x128xbf16>, vector<32x128xf32> -> vector<32x128xf32>
    %43 = arith.addf %38, %42 : vector<32x128xf32>
    %44 = arith.truncf %34 : vector<32x32xf32> to vector<32x32xbf16>
    %c0_14 = arith.constant 0 : index
    %c2 = arith.constant 2 : index
    %c0_15 = arith.constant 0 : index
    %c0_16 = arith.constant 0 : index
    %45 = vector.load %arg1[%c0_14, %c2, %c0_15, %c0_16] : memref<10x3x32x128xbf16, #tpu.memory_space<vmem>>, vector<1x1x32x128xbf16>
    %46 = vector.shape_cast %45 : vector<1x1x32x128xbf16> to vector<32x128xbf16>
    %cst_17 = arith.constant dense<0.000000e+00> : vector<32x128xf32>
    %47 = tpu.matmul %44, %46, %cst_17 {dimension_numbers = #tpu.dot_dimension_numbers<[1], [0], [0], [1], [0, 0, 1, 1], [], []>} : vector<32x32xbf16>, vector<32x128xbf16>, vector<32x128xf32> -> vector<32x128xf32>
    %48 = arith.addf %43, %47 : vector<32x128xf32>
    %c0_18 = arith.constant 0 : index
    %c0_19 = arith.constant 0 : index
    %c0_20 = arith.constant 0 : index
    %49 = vector.load %arg2[%c0_18, %c0_19, %c0_20] : memref<10x2x128xf32, #tpu.memory_space<vmem>>, vector<1x2x128xf32>
    %50 = vector.shape_cast %49 : vector<1x2x128xf32> to vector<2x128xf32>
    %cst_21 = arith.constant dense<0.000000e+00> : vector<128xf32>
    %51 = vector.multi_reduction <add>, %48, %cst_21 [0] : vector<32x128xf32> to vector<128xf32>
    %52 = vector.shape_cast %51 : vector<128xf32> to vector<1x128xf32>
    %cst_22 = arith.constant 3.125000e-02 : f32
    %53 = vector.broadcast %cst_22 : f32 to vector<1x128xf32>
    %54 = arith.mulf %52, %53 : vector<1x128xf32>
    %55 = arith.mulf %48, %48 : vector<32x128xf32>
    %cst_23 = arith.constant dense<0.000000e+00> : vector<128xf32>
    %56 = vector.multi_reduction <add>, %55, %cst_23 [0] : vector<32x128xf32> to vector<128xf32>
    %57 = vector.shape_cast %56 : vector<128xf32> to vector<1x128xf32>
    %cst_24 = arith.constant 3.125000e-02 : f32
    %58 = vector.broadcast %cst_24 : f32 to vector<1x128xf32>
    %59 = arith.mulf %57, %58 : vector<1x128xf32>
    %60 = vector.extract_strided_slice %50 {offsets = [0, 0], sizes = [1, 128], strides = [1, 1]} : vector<2x128xf32> to vector<1x128xf32>
    %61 = arith.mulf %54, %54 : vector<1x128xf32>
    %62 = arith.subf %59, %61 : vector<1x128xf32>
    %cst_25 = arith.constant 9.99999974E-6 : f32
    %63 = vector.broadcast %cst_25 : f32 to vector<1x128xf32>
    %64 = arith.addf %62, %63 : vector<1x128xf32>
    %65 = math.rsqrt %64 : vector<1x128xf32>
    %66 = arith.mulf %60, %65 : vector<1x128xf32>
    %67 = vector.extract_strided_slice %50 {offsets = [1, 0], sizes = [1, 128], strides = [1, 1]} : vector<2x128xf32> to vector<1x128xf32>
    %68 = arith.mulf %54, %66 : vector<1x128xf32>
    %69 = arith.subf %67, %68 : vector<1x128xf32>
    %70 = vector.broadcast %66 : vector<1x128xf32> to vector<32x128xf32>
    %71 = arith.mulf %48, %70 : vector<32x128xf32>
    %72 = vector.broadcast %69 : vector<1x128xf32> to vector<32x128xf32>
    %73 = arith.addf %71, %72 : vector<32x128xf32>
    %cst_26 = arith.constant 0.000000e+00 : f32
    %74 = vector.broadcast %cst_26 : f32 to vector<32x128xf32>
    %75 = arith.maximumf %73, %74 : vector<32x128xf32>
    %c1_i32_27 = arith.constant 1 : i32
    %76 = tpu.dynamic_rotate %75 by %c1_i32_27 dim 0 : vector<32x128xf32>, i32 -> vector<32x128xf32>
    %77 = vector.broadcast %20 : vector<32x1xf32> to vector<32x128xf32>
    %78 = arith.mulf %76, %77 : vector<32x128xf32>
    %79 = vector.extract_strided_slice %78 {offsets = [0, 0], sizes = [32, 32], strides = [1, 1]} : vector<32x128xf32> to vector<32x32xf32>
    %80 = vector.extract_strided_slice %75 {offsets = [0, 0], sizes = [32, 32], strides = [1, 1]} : vector<32x128xf32> to vector<32x32xf32>
    %c31_i32_28 = arith.constant 31 : i32
    %81 = tpu.dynamic_rotate %75 by %c31_i32_28 dim 0 : vector<32x128xf32>, i32 -> vector<32x128xf32>
    %82 = vector.broadcast %24 : vector<32x1xf32> to vector<32x128xf32>
    %83 = arith.mulf %81, %82 : vector<32x128xf32>
    %84 = vector.extract_strided_slice %83 {offsets = [0, 0], sizes = [32, 32], strides = [1, 1]} : vector<32x128xf32> to vector<32x32xf32>
    %85 = arith.truncf %79 : vector<32x32xf32> to vector<32x32xbf16>
    %c1_29 = arith.constant 1 : index
    %c0_30 = arith.constant 0 : index
    %c0_31 = arith.constant 0 : index
    %c0_32 = arith.constant 0 : index
    %86 = vector.load %arg1[%c1_29, %c0_30, %c0_31, %c0_32] : memref<10x3x32x128xbf16, #tpu.memory_space<vmem>>, vector<1x1x32x128xbf16>
    %87 = vector.shape_cast %86 : vector<1x1x32x128xbf16> to vector<32x128xbf16>
    %cst_33 = arith.constant dense<0.000000e+00> : vector<32x128xf32>
    %88 = tpu.matmul %85, %87, %cst_33 {dimension_numbers = #tpu.dot_dimension_numbers<[1], [0], [0], [1], [0, 0, 1, 1], [], []>} : vector<32x32xbf16>, vector<32x128xbf16>, vector<32x128xf32> -> vector<32x128xf32>
    %89 = arith.truncf %80 : vector<32x32xf32> to vector<32x32xbf16>
    %c1_34 = arith.constant 1 : index
    %c1_35 = arith.constant 1 : index
    %c0_36 = arith.constant 0 : index
    %c0_37 = arith.constant 0 : index
    %90 = vector.load %arg1[%c1_34, %c1_35, %c0_36, %c0_37] : memref<10x3x32x128xbf16, #tpu.memory_space<vmem>>, vector<1x1x32x128xbf16>
    %91 = vector.shape_cast %90 : vector<1x1x32x128xbf16> to vector<32x128xbf16>
    %cst_38 = arith.constant dense<0.000000e+00> : vector<32x128xf32>
    %92 = tpu.matmul %89, %91, %cst_38 {dimension_numbers = #tpu.dot_dimension_numbers<[1], [0], [0], [1], [0, 0, 1, 1], [], []>} : vector<32x32xbf16>, vector<32x128xbf16>, vector<32x128xf32> -> vector<32x128xf32>
    %93 = arith.addf %88, %92 : vector<32x128xf32>
    %94 = arith.truncf %84 : vector<32x32xf32> to vector<32x32xbf16>
    %c1_39 = arith.constant 1 : index
    %c2_40 = arith.constant 2 : index
    %c0_41 = arith.constant 0 : index
    %c0_42 = arith.constant 0 : index
    %95 = vector.load %arg1[%c1_39, %c2_40, %c0_41, %c0_42] : memref<10x3x32x128xbf16, #tpu.memory_space<vmem>>, vector<1x1x32x128xbf16>
    %96 = vector.shape_cast %95 : vector<1x1x32x128xbf16> to vector<32x128xbf16>
    %cst_43 = arith.constant dense<0.000000e+00> : vector<32x128xf32>
    %97 = tpu.matmul %94, %96, %cst_43 {dimension_numbers = #tpu.dot_dimension_numbers<[1], [0], [0], [1], [0, 0, 1, 1], [], []>} : vector<32x32xbf16>, vector<32x128xbf16>, vector<32x128xf32> -> vector<32x128xf32>
    %98 = arith.addf %93, %97 : vector<32x128xf32>
    %c1_44 = arith.constant 1 : index
    %c0_45 = arith.constant 0 : index
    %c0_46 = arith.constant 0 : index
    %99 = vector.load %arg2[%c1_44, %c0_45, %c0_46] : memref<10x2x128xf32, #tpu.memory_space<vmem>>, vector<1x2x128xf32>
    %100 = vector.shape_cast %99 : vector<1x2x128xf32> to vector<2x128xf32>
    %cst_47 = arith.constant dense<0.000000e+00> : vector<128xf32>
    %101 = vector.multi_reduction <add>, %98, %cst_47 [0] : vector<32x128xf32> to vector<128xf32>
    %102 = vector.shape_cast %101 : vector<128xf32> to vector<1x128xf32>
    %cst_48 = arith.constant 3.125000e-02 : f32
    %103 = vector.broadcast %cst_48 : f32 to vector<1x128xf32>
    %104 = arith.mulf %102, %103 : vector<1x128xf32>
    %105 = arith.mulf %98, %98 : vector<32x128xf32>
    %cst_49 = arith.constant dense<0.000000e+00> : vector<128xf32>
    %106 = vector.multi_reduction <add>, %105, %cst_49 [0] : vector<32x128xf32> to vector<128xf32>
    %107 = vector.shape_cast %106 : vector<128xf32> to vector<1x128xf32>
    %cst_50 = arith.constant 3.125000e-02 : f32
    %108 = vector.broadcast %cst_50 : f32 to vector<1x128xf32>
    %109 = arith.mulf %107, %108 : vector<1x128xf32>
    %110 = vector.extract_strided_slice %100 {offsets = [0, 0], sizes = [1, 128], strides = [1, 1]} : vector<2x128xf32> to vector<1x128xf32>
    %111 = arith.mulf %104, %104 : vector<1x128xf32>
    %112 = arith.subf %109, %111 : vector<1x128xf32>
    %cst_51 = arith.constant 9.99999974E-6 : f32
    %113 = vector.broadcast %cst_51 : f32 to vector<1x128xf32>
    %114 = arith.addf %112, %113 : vector<1x128xf32>
    %115 = math.rsqrt %114 : vector<1x128xf32>
    %116 = arith.mulf %110, %115 : vector<1x128xf32>
    %117 = vector.extract_strided_slice %100 {offsets = [1, 0], sizes = [1, 128], strides = [1, 1]} : vector<2x128xf32> to vector<1x128xf32>
    %118 = arith.mulf %104, %116 : vector<1x128xf32>
    %119 = arith.subf %117, %118 : vector<1x128xf32>
    %120 = vector.broadcast %116 : vector<1x128xf32> to vector<32x128xf32>
    %121 = arith.mulf %98, %120 : vector<32x128xf32>
    %122 = vector.broadcast %119 : vector<1x128xf32> to vector<32x128xf32>
    %123 = arith.addf %121, %122 : vector<32x128xf32>
    %cst_52 = arith.constant 0.000000e+00 : f32
    %124 = vector.broadcast %cst_52 : f32 to vector<32x128xf32>
    %125 = arith.maximumf %123, %124 : vector<32x128xf32>
    %c1_i32_53 = arith.constant 1 : i32
    %126 = tpu.dynamic_rotate %125 by %c1_i32_53 dim 0 : vector<32x128xf32>, i32 -> vector<32x128xf32>
    %127 = vector.broadcast %20 : vector<32x1xf32> to vector<32x128xf32>
    %128 = arith.mulf %126, %127 : vector<32x128xf32>
    %129 = vector.extract_strided_slice %128 {offsets = [0, 0], sizes = [32, 32], strides = [1, 1]} : vector<32x128xf32> to vector<32x32xf32>
    %130 = vector.extract_strided_slice %125 {offsets = [0, 0], sizes = [32, 32], strides = [1, 1]} : vector<32x128xf32> to vector<32x32xf32>
    %c31_i32_54 = arith.constant 31 : i32
    %131 = tpu.dynamic_rotate %125 by %c31_i32_54 dim 0 : vector<32x128xf32>, i32 -> vector<32x128xf32>
    %132 = vector.broadcast %24 : vector<32x1xf32> to vector<32x128xf32>
    %133 = arith.mulf %131, %132 : vector<32x128xf32>
    %134 = vector.extract_strided_slice %133 {offsets = [0, 0], sizes = [32, 32], strides = [1, 1]} : vector<32x128xf32> to vector<32x32xf32>
    %135 = arith.truncf %129 : vector<32x32xf32> to vector<32x32xbf16>
    %c2_55 = arith.constant 2 : index
    %c0_56 = arith.constant 0 : index
    %c0_57 = arith.constant 0 : index
    %c0_58 = arith.constant 0 : index
    %136 = vector.load %arg1[%c2_55, %c0_56, %c0_57, %c0_58] : memref<10x3x32x128xbf16, #tpu.memory_space<vmem>>, vector<1x1x32x128xbf16>
    %137 = vector.shape_cast %136 : vector<1x1x32x128xbf16> to vector<32x128xbf16>
    %cst_59 = arith.constant dense<0.000000e+00> : vector<32x128xf32>
    %138 = tpu.matmul %135, %137, %cst_59 {dimension_numbers = #tpu.dot_dimension_numbers<[1], [0], [0], [1], [0, 0, 1, 1], [], []>} : vector<32x32xbf16>, vector<32x128xbf16>, vector<32x128xf32> -> vector<32x128xf32>
    %139 = arith.truncf %130 : vector<32x32xf32> to vector<32x32xbf16>
    %c2_60 = arith.constant 2 : index
    %c1_61 = arith.constant 1 : index
    %c0_62 = arith.constant 0 : index
    %c0_63 = arith.constant 0 : index
    %140 = vector.load %arg1[%c2_60, %c1_61, %c0_62, %c0_63] : memref<10x3x32x128xbf16, #tpu.memory_space<vmem>>, vector<1x1x32x128xbf16>
    %141 = vector.shape_cast %140 : vector<1x1x32x128xbf16> to vector<32x128xbf16>
    %cst_64 = arith.constant dense<0.000000e+00> : vector<32x128xf32>
    %142 = tpu.matmul %139, %141, %cst_64 {dimension_numbers = #tpu.dot_dimension_numbers<[1], [0], [0], [1], [0, 0, 1, 1], [], []>} : vector<32x32xbf16>, vector<32x128xbf16>, vector<32x128xf32> -> vector<32x128xf32>
    %143 = arith.addf %138, %142 : vector<32x128xf32>
    %144 = arith.truncf %134 : vector<32x32xf32> to vector<32x32xbf16>
    %c2_65 = arith.constant 2 : index
    %c2_66 = arith.constant 2 : index
    %c0_67 = arith.constant 0 : index
    %c0_68 = arith.constant 0 : index
    %145 = vector.load %arg1[%c2_65, %c2_66, %c0_67, %c0_68] : memref<10x3x32x128xbf16, #tpu.memory_space<vmem>>, vector<1x1x32x128xbf16>
    %146 = vector.shape_cast %145 : vector<1x1x32x128xbf16> to vector<32x128xbf16>
    %cst_69 = arith.constant dense<0.000000e+00> : vector<32x128xf32>
    %147 = tpu.matmul %144, %146, %cst_69 {dimension_numbers = #tpu.dot_dimension_numbers<[1], [0], [0], [1], [0, 0, 1, 1], [], []>} : vector<32x32xbf16>, vector<32x128xbf16>, vector<32x128xf32> -> vector<32x128xf32>
    %148 = arith.addf %143, %147 : vector<32x128xf32>
    %c2_70 = arith.constant 2 : index
    %c0_71 = arith.constant 0 : index
    %c0_72 = arith.constant 0 : index
    %149 = vector.load %arg2[%c2_70, %c0_71, %c0_72] : memref<10x2x128xf32, #tpu.memory_space<vmem>>, vector<1x2x128xf32>
    %150 = vector.shape_cast %149 : vector<1x2x128xf32> to vector<2x128xf32>
    %cst_73 = arith.constant dense<0.000000e+00> : vector<128xf32>
    %151 = vector.multi_reduction <add>, %148, %cst_73 [0] : vector<32x128xf32> to vector<128xf32>
    %152 = vector.shape_cast %151 : vector<128xf32> to vector<1x128xf32>
    %cst_74 = arith.constant 3.125000e-02 : f32
    %153 = vector.broadcast %cst_74 : f32 to vector<1x128xf32>
    %154 = arith.mulf %152, %153 : vector<1x128xf32>
    %155 = arith.mulf %148, %148 : vector<32x128xf32>
    %cst_75 = arith.constant dense<0.000000e+00> : vector<128xf32>
    %156 = vector.multi_reduction <add>, %155, %cst_75 [0] : vector<32x128xf32> to vector<128xf32>
    %157 = vector.shape_cast %156 : vector<128xf32> to vector<1x128xf32>
    %cst_76 = arith.constant 3.125000e-02 : f32
    %158 = vector.broadcast %cst_76 : f32 to vector<1x128xf32>
    %159 = arith.mulf %157, %158 : vector<1x128xf32>
    %160 = vector.extract_strided_slice %150 {offsets = [0, 0], sizes = [1, 128], strides = [1, 1]} : vector<2x128xf32> to vector<1x128xf32>
    %161 = arith.mulf %154, %154 : vector<1x128xf32>
    %162 = arith.subf %159, %161 : vector<1x128xf32>
    %cst_77 = arith.constant 9.99999974E-6 : f32
    %163 = vector.broadcast %cst_77 : f32 to vector<1x128xf32>
    %164 = arith.addf %162, %163 : vector<1x128xf32>
    %165 = math.rsqrt %164 : vector<1x128xf32>
    %166 = arith.mulf %160, %165 : vector<1x128xf32>
    %167 = vector.extract_strided_slice %150 {offsets = [1, 0], sizes = [1, 128], strides = [1, 1]} : vector<2x128xf32> to vector<1x128xf32>
    %168 = arith.mulf %154, %166 : vector<1x128xf32>
    %169 = arith.subf %167, %168 : vector<1x128xf32>
    %170 = vector.broadcast %166 : vector<1x128xf32> to vector<32x128xf32>
    %171 = arith.mulf %148, %170 : vector<32x128xf32>
    %172 = vector.broadcast %169 : vector<1x128xf32> to vector<32x128xf32>
    %173 = arith.addf %171, %172 : vector<32x128xf32>
    %cst_78 = arith.constant 0.000000e+00 : f32
    %174 = vector.broadcast %cst_78 : f32 to vector<32x128xf32>
    %175 = arith.maximumf %173, %174 : vector<32x128xf32>
    %c1_i32_79 = arith.constant 1 : i32
    %176 = tpu.dynamic_rotate %175 by %c1_i32_79 dim 0 : vector<32x128xf32>, i32 -> vector<32x128xf32>
    %177 = vector.broadcast %20 : vector<32x1xf32> to vector<32x128xf32>
    %178 = arith.mulf %176, %177 : vector<32x128xf32>
    %179 = vector.extract_strided_slice %178 {offsets = [0, 0], sizes = [32, 32], strides = [1, 1]} : vector<32x128xf32> to vector<32x32xf32>
    %180 = vector.extract_strided_slice %175 {offsets = [0, 0], sizes = [32, 32], strides = [1, 1]} : vector<32x128xf32> to vector<32x32xf32>
    %c31_i32_80 = arith.constant 31 : i32
    %181 = tpu.dynamic_rotate %175 by %c31_i32_80 dim 0 : vector<32x128xf32>, i32 -> vector<32x128xf32>
    %182 = vector.broadcast %24 : vector<32x1xf32> to vector<32x128xf32>
    %183 = arith.mulf %181, %182 : vector<32x128xf32>
    %184 = vector.extract_strided_slice %183 {offsets = [0, 0], sizes = [32, 32], strides = [1, 1]} : vector<32x128xf32> to vector<32x32xf32>
    %185 = arith.truncf %179 : vector<32x32xf32> to vector<32x32xbf16>
    %c3 = arith.constant 3 : index
    %c0_81 = arith.constant 0 : index
    %c0_82 = arith.constant 0 : index
    %c0_83 = arith.constant 0 : index
    %186 = vector.load %arg1[%c3, %c0_81, %c0_82, %c0_83] : memref<10x3x32x128xbf16, #tpu.memory_space<vmem>>, vector<1x1x32x128xbf16>
    %187 = vector.shape_cast %186 : vector<1x1x32x128xbf16> to vector<32x128xbf16>
    %cst_84 = arith.constant dense<0.000000e+00> : vector<32x128xf32>
    %188 = tpu.matmul %185, %187, %cst_84 {dimension_numbers = #tpu.dot_dimension_numbers<[1], [0], [0], [1], [0, 0, 1, 1], [], []>} : vector<32x32xbf16>, vector<32x128xbf16>, vector<32x128xf32> -> vector<32x128xf32>
    %189 = arith.truncf %180 : vector<32x32xf32> to vector<32x32xbf16>
    %c3_85 = arith.constant 3 : index
    %c1_86 = arith.constant 1 : index
    %c0_87 = arith.constant 0 : index
    %c0_88 = arith.constant 0 : index
    %190 = vector.load %arg1[%c3_85, %c1_86, %c0_87, %c0_88] : memref<10x3x32x128xbf16, #tpu.memory_space<vmem>>, vector<1x1x32x128xbf16>
    %191 = vector.shape_cast %190 : vector<1x1x32x128xbf16> to vector<32x128xbf16>
    %cst_89 = arith.constant dense<0.000000e+00> : vector<32x128xf32>
    %192 = tpu.matmul %189, %191, %cst_89 {dimension_numbers = #tpu.dot_dimension_numbers<[1], [0], [0], [1], [0, 0, 1, 1], [], []>} : vector<32x32xbf16>, vector<32x128xbf16>, vector<32x128xf32> -> vector<32x128xf32>
    %193 = arith.addf %188, %192 : vector<32x128xf32>
    %194 = arith.truncf %184 : vector<32x32xf32> to vector<32x32xbf16>
    %c3_90 = arith.constant 3 : index
    %c2_91 = arith.constant 2 : index
    %c0_92 = arith.constant 0 : index
    %c0_93 = arith.constant 0 : index
    %195 = vector.load %arg1[%c3_90, %c2_91, %c0_92, %c0_93] : memref<10x3x32x128xbf16, #tpu.memory_space<vmem>>, vector<1x1x32x128xbf16>
    %196 = vector.shape_cast %195 : vector<1x1x32x128xbf16> to vector<32x128xbf16>
    %cst_94 = arith.constant dense<0.000000e+00> : vector<32x128xf32>
    %197 = tpu.matmul %194, %196, %cst_94 {dimension_numbers = #tpu.dot_dimension_numbers<[1], [0], [0], [1], [0, 0, 1, 1], [], []>} : vector<32x32xbf16>, vector<32x128xbf16>, vector<32x128xf32> -> vector<32x128xf32>
    %198 = arith.addf %193, %197 : vector<32x128xf32>
    %c3_95 = arith.constant 3 : index
    %c0_96 = arith.constant 0 : index
    %c0_97 = arith.constant 0 : index
    %199 = vector.load %arg2[%c3_95, %c0_96, %c0_97] : memref<10x2x128xf32, #tpu.memory_space<vmem>>, vector<1x2x128xf32>
    %200 = vector.shape_cast %199 : vector<1x2x128xf32> to vector<2x128xf32>
    %cst_98 = arith.constant dense<0.000000e+00> : vector<128xf32>
    %201 = vector.multi_reduction <add>, %198, %cst_98 [0] : vector<32x128xf32> to vector<128xf32>
    %202 = vector.shape_cast %201 : vector<128xf32> to vector<1x128xf32>
    %cst_99 = arith.constant 3.125000e-02 : f32
    %203 = vector.broadcast %cst_99 : f32 to vector<1x128xf32>
    %204 = arith.mulf %202, %203 : vector<1x128xf32>
    %205 = arith.mulf %198, %198 : vector<32x128xf32>
    %cst_100 = arith.constant dense<0.000000e+00> : vector<128xf32>
    %206 = vector.multi_reduction <add>, %205, %cst_100 [0] : vector<32x128xf32> to vector<128xf32>
    %207 = vector.shape_cast %206 : vector<128xf32> to vector<1x128xf32>
    %cst_101 = arith.constant 3.125000e-02 : f32
    %208 = vector.broadcast %cst_101 : f32 to vector<1x128xf32>
    %209 = arith.mulf %207, %208 : vector<1x128xf32>
    %210 = vector.extract_strided_slice %200 {offsets = [0, 0], sizes = [1, 128], strides = [1, 1]} : vector<2x128xf32> to vector<1x128xf32>
    %211 = arith.mulf %204, %204 : vector<1x128xf32>
    %212 = arith.subf %209, %211 : vector<1x128xf32>
    %cst_102 = arith.constant 9.99999974E-6 : f32
    %213 = vector.broadcast %cst_102 : f32 to vector<1x128xf32>
    %214 = arith.addf %212, %213 : vector<1x128xf32>
    %215 = math.rsqrt %214 : vector<1x128xf32>
    %216 = arith.mulf %210, %215 : vector<1x128xf32>
    %217 = vector.extract_strided_slice %200 {offsets = [1, 0], sizes = [1, 128], strides = [1, 1]} : vector<2x128xf32> to vector<1x128xf32>
    %218 = arith.mulf %204, %216 : vector<1x128xf32>
    %219 = arith.subf %217, %218 : vector<1x128xf32>
    %220 = vector.broadcast %216 : vector<1x128xf32> to vector<32x128xf32>
    %221 = arith.mulf %198, %220 : vector<32x128xf32>
    %222 = vector.broadcast %219 : vector<1x128xf32> to vector<32x128xf32>
    %223 = arith.addf %221, %222 : vector<32x128xf32>
    %cst_103 = arith.constant 0.000000e+00 : f32
    %224 = vector.broadcast %cst_103 : f32 to vector<32x128xf32>
    %225 = arith.maximumf %223, %224 : vector<32x128xf32>
    %c1_i32_104 = arith.constant 1 : i32
    %226 = tpu.dynamic_rotate %225 by %c1_i32_104 dim 0 : vector<32x128xf32>, i32 -> vector<32x128xf32>
    %227 = vector.broadcast %20 : vector<32x1xf32> to vector<32x128xf32>
    %228 = arith.mulf %226, %227 : vector<32x128xf32>
    %229 = vector.extract_strided_slice %228 {offsets = [0, 0], sizes = [32, 32], strides = [1, 1]} : vector<32x128xf32> to vector<32x32xf32>
    %230 = vector.extract_strided_slice %225 {offsets = [0, 0], sizes = [32, 32], strides = [1, 1]} : vector<32x128xf32> to vector<32x32xf32>
    %c31_i32_105 = arith.constant 31 : i32
    %231 = tpu.dynamic_rotate %225 by %c31_i32_105 dim 0 : vector<32x128xf32>, i32 -> vector<32x128xf32>
    %232 = vector.broadcast %24 : vector<32x1xf32> to vector<32x128xf32>
    %233 = arith.mulf %231, %232 : vector<32x128xf32>
    %234 = vector.extract_strided_slice %233 {offsets = [0, 0], sizes = [32, 32], strides = [1, 1]} : vector<32x128xf32> to vector<32x32xf32>
    %235 = arith.truncf %229 : vector<32x32xf32> to vector<32x32xbf16>
    %c4 = arith.constant 4 : index
    %c0_106 = arith.constant 0 : index
    %c0_107 = arith.constant 0 : index
    %c0_108 = arith.constant 0 : index
    %236 = vector.load %arg1[%c4, %c0_106, %c0_107, %c0_108] : memref<10x3x32x128xbf16, #tpu.memory_space<vmem>>, vector<1x1x32x128xbf16>
    %237 = vector.shape_cast %236 : vector<1x1x32x128xbf16> to vector<32x128xbf16>
    %cst_109 = arith.constant dense<0.000000e+00> : vector<32x128xf32>
    %238 = tpu.matmul %235, %237, %cst_109 {dimension_numbers = #tpu.dot_dimension_numbers<[1], [0], [0], [1], [0, 0, 1, 1], [], []>} : vector<32x32xbf16>, vector<32x128xbf16>, vector<32x128xf32> -> vector<32x128xf32>
    %239 = arith.truncf %230 : vector<32x32xf32> to vector<32x32xbf16>
    %c4_110 = arith.constant 4 : index
    %c1_111 = arith.constant 1 : index
    %c0_112 = arith.constant 0 : index
    %c0_113 = arith.constant 0 : index
    %240 = vector.load %arg1[%c4_110, %c1_111, %c0_112, %c0_113] : memref<10x3x32x128xbf16, #tpu.memory_space<vmem>>, vector<1x1x32x128xbf16>
    %241 = vector.shape_cast %240 : vector<1x1x32x128xbf16> to vector<32x128xbf16>
    %cst_114 = arith.constant dense<0.000000e+00> : vector<32x128xf32>
    %242 = tpu.matmul %239, %241, %cst_114 {dimension_numbers = #tpu.dot_dimension_numbers<[1], [0], [0], [1], [0, 0, 1, 1], [], []>} : vector<32x32xbf16>, vector<32x128xbf16>, vector<32x128xf32> -> vector<32x128xf32>
    %243 = arith.addf %238, %242 : vector<32x128xf32>
    %244 = arith.truncf %234 : vector<32x32xf32> to vector<32x32xbf16>
    %c4_115 = arith.constant 4 : index
    %c2_116 = arith.constant 2 : index
    %c0_117 = arith.constant 0 : index
    %c0_118 = arith.constant 0 : index
    %245 = vector.load %arg1[%c4_115, %c2_116, %c0_117, %c0_118] : memref<10x3x32x128xbf16, #tpu.memory_space<vmem>>, vector<1x1x32x128xbf16>
    %246 = vector.shape_cast %245 : vector<1x1x32x128xbf16> to vector<32x128xbf16>
    %cst_119 = arith.constant dense<0.000000e+00> : vector<32x128xf32>
    %247 = tpu.matmul %244, %246, %cst_119 {dimension_numbers = #tpu.dot_dimension_numbers<[1], [0], [0], [1], [0, 0, 1, 1], [], []>} : vector<32x32xbf16>, vector<32x128xbf16>, vector<32x128xf32> -> vector<32x128xf32>
    %248 = arith.addf %243, %247 : vector<32x128xf32>
    %c4_120 = arith.constant 4 : index
    %c0_121 = arith.constant 0 : index
    %c0_122 = arith.constant 0 : index
    %249 = vector.load %arg2[%c4_120, %c0_121, %c0_122] : memref<10x2x128xf32, #tpu.memory_space<vmem>>, vector<1x2x128xf32>
    %250 = vector.shape_cast %249 : vector<1x2x128xf32> to vector<2x128xf32>
    %cst_123 = arith.constant dense<0.000000e+00> : vector<128xf32>
    %251 = vector.multi_reduction <add>, %248, %cst_123 [0] : vector<32x128xf32> to vector<128xf32>
    %252 = vector.shape_cast %251 : vector<128xf32> to vector<1x128xf32>
    %cst_124 = arith.constant 3.125000e-02 : f32
    %253 = vector.broadcast %cst_124 : f32 to vector<1x128xf32>
    %254 = arith.mulf %252, %253 : vector<1x128xf32>
    %255 = arith.mulf %248, %248 : vector<32x128xf32>
    %cst_125 = arith.constant dense<0.000000e+00> : vector<128xf32>
    %256 = vector.multi_reduction <add>, %255, %cst_125 [0] : vector<32x128xf32> to vector<128xf32>
    %257 = vector.shape_cast %256 : vector<128xf32> to vector<1x128xf32>
    %cst_126 = arith.constant 3.125000e-02 : f32
    %258 = vector.broadcast %cst_126 : f32 to vector<1x128xf32>
    %259 = arith.mulf %257, %258 : vector<1x128xf32>
    %260 = vector.extract_strided_slice %250 {offsets = [0, 0], sizes = [1, 128], strides = [1, 1]} : vector<2x128xf32> to vector<1x128xf32>
    %261 = arith.mulf %254, %254 : vector<1x128xf32>
    %262 = arith.subf %259, %261 : vector<1x128xf32>
    %cst_127 = arith.constant 9.99999974E-6 : f32
    %263 = vector.broadcast %cst_127 : f32 to vector<1x128xf32>
    %264 = arith.addf %262, %263 : vector<1x128xf32>
    %265 = math.rsqrt %264 : vector<1x128xf32>
    %266 = arith.mulf %260, %265 : vector<1x128xf32>
    %267 = vector.extract_strided_slice %250 {offsets = [1, 0], sizes = [1, 128], strides = [1, 1]} : vector<2x128xf32> to vector<1x128xf32>
    %268 = arith.mulf %254, %266 : vector<1x128xf32>
    %269 = arith.subf %267, %268 : vector<1x128xf32>
    %270 = vector.broadcast %266 : vector<1x128xf32> to vector<32x128xf32>
    %271 = arith.mulf %248, %270 : vector<32x128xf32>
    %272 = vector.broadcast %269 : vector<1x128xf32> to vector<32x128xf32>
    %273 = arith.addf %271, %272 : vector<32x128xf32>
    %cst_128 = arith.constant 0.000000e+00 : f32
    %274 = vector.broadcast %cst_128 : f32 to vector<32x128xf32>
    %275 = arith.maximumf %273, %274 : vector<32x128xf32>
    %c1_i32_129 = arith.constant 1 : i32
    %276 = tpu.dynamic_rotate %275 by %c1_i32_129 dim 0 : vector<32x128xf32>, i32 -> vector<32x128xf32>
    %277 = vector.broadcast %20 : vector<32x1xf32> to vector<32x128xf32>
    %278 = arith.mulf %276, %277 : vector<32x128xf32>
    %279 = vector.extract_strided_slice %278 {offsets = [0, 0], sizes = [32, 32], strides = [1, 1]} : vector<32x128xf32> to vector<32x32xf32>
    %280 = vector.extract_strided_slice %275 {offsets = [0, 0], sizes = [32, 32], strides = [1, 1]} : vector<32x128xf32> to vector<32x32xf32>
    %c31_i32_130 = arith.constant 31 : i32
    %281 = tpu.dynamic_rotate %275 by %c31_i32_130 dim 0 : vector<32x128xf32>, i32 -> vector<32x128xf32>
    %282 = vector.broadcast %24 : vector<32x1xf32> to vector<32x128xf32>
    %283 = arith.mulf %281, %282 : vector<32x128xf32>
    %284 = vector.extract_strided_slice %283 {offsets = [0, 0], sizes = [32, 32], strides = [1, 1]} : vector<32x128xf32> to vector<32x32xf32>
    %285 = arith.truncf %279 : vector<32x32xf32> to vector<32x32xbf16>
    %c5 = arith.constant 5 : index
    %c0_131 = arith.constant 0 : index
    %c0_132 = arith.constant 0 : index
    %c0_133 = arith.constant 0 : index
    %286 = vector.load %arg1[%c5, %c0_131, %c0_132, %c0_133] : memref<10x3x32x128xbf16, #tpu.memory_space<vmem>>, vector<1x1x32x128xbf16>
    %287 = vector.shape_cast %286 : vector<1x1x32x128xbf16> to vector<32x128xbf16>
    %cst_134 = arith.constant dense<0.000000e+00> : vector<32x128xf32>
    %288 = tpu.matmul %285, %287, %cst_134 {dimension_numbers = #tpu.dot_dimension_numbers<[1], [0], [0], [1], [0, 0, 1, 1], [], []>} : vector<32x32xbf16>, vector<32x128xbf16>, vector<32x128xf32> -> vector<32x128xf32>
    %289 = arith.truncf %280 : vector<32x32xf32> to vector<32x32xbf16>
    %c5_135 = arith.constant 5 : index
    %c1_136 = arith.constant 1 : index
    %c0_137 = arith.constant 0 : index
    %c0_138 = arith.constant 0 : index
    %290 = vector.load %arg1[%c5_135, %c1_136, %c0_137, %c0_138] : memref<10x3x32x128xbf16, #tpu.memory_space<vmem>>, vector<1x1x32x128xbf16>
    %291 = vector.shape_cast %290 : vector<1x1x32x128xbf16> to vector<32x128xbf16>
    %cst_139 = arith.constant dense<0.000000e+00> : vector<32x128xf32>
    %292 = tpu.matmul %289, %291, %cst_139 {dimension_numbers = #tpu.dot_dimension_numbers<[1], [0], [0], [1], [0, 0, 1, 1], [], []>} : vector<32x32xbf16>, vector<32x128xbf16>, vector<32x128xf32> -> vector<32x128xf32>
    %293 = arith.addf %288, %292 : vector<32x128xf32>
    %294 = arith.truncf %284 : vector<32x32xf32> to vector<32x32xbf16>
    %c5_140 = arith.constant 5 : index
    %c2_141 = arith.constant 2 : index
    %c0_142 = arith.constant 0 : index
    %c0_143 = arith.constant 0 : index
    %295 = vector.load %arg1[%c5_140, %c2_141, %c0_142, %c0_143] : memref<10x3x32x128xbf16, #tpu.memory_space<vmem>>, vector<1x1x32x128xbf16>
    %296 = vector.shape_cast %295 : vector<1x1x32x128xbf16> to vector<32x128xbf16>
    %cst_144 = arith.constant dense<0.000000e+00> : vector<32x128xf32>
    %297 = tpu.matmul %294, %296, %cst_144 {dimension_numbers = #tpu.dot_dimension_numbers<[1], [0], [0], [1], [0, 0, 1, 1], [], []>} : vector<32x32xbf16>, vector<32x128xbf16>, vector<32x128xf32> -> vector<32x128xf32>
    %298 = arith.addf %293, %297 : vector<32x128xf32>
    %c5_145 = arith.constant 5 : index
    %c0_146 = arith.constant 0 : index
    %c0_147 = arith.constant 0 : index
    %299 = vector.load %arg2[%c5_145, %c0_146, %c0_147] : memref<10x2x128xf32, #tpu.memory_space<vmem>>, vector<1x2x128xf32>
    %300 = vector.shape_cast %299 : vector<1x2x128xf32> to vector<2x128xf32>
    %cst_148 = arith.constant dense<0.000000e+00> : vector<128xf32>
    %301 = vector.multi_reduction <add>, %298, %cst_148 [0] : vector<32x128xf32> to vector<128xf32>
    %302 = vector.shape_cast %301 : vector<128xf32> to vector<1x128xf32>
    %cst_149 = arith.constant 3.125000e-02 : f32
    %303 = vector.broadcast %cst_149 : f32 to vector<1x128xf32>
    %304 = arith.mulf %302, %303 : vector<1x128xf32>
    %305 = arith.mulf %298, %298 : vector<32x128xf32>
    %cst_150 = arith.constant dense<0.000000e+00> : vector<128xf32>
    %306 = vector.multi_reduction <add>, %305, %cst_150 [0] : vector<32x128xf32> to vector<128xf32>
    %307 = vector.shape_cast %306 : vector<128xf32> to vector<1x128xf32>
    %cst_151 = arith.constant 3.125000e-02 : f32
    %308 = vector.broadcast %cst_151 : f32 to vector<1x128xf32>
    %309 = arith.mulf %307, %308 : vector<1x128xf32>
    %310 = vector.extract_strided_slice %300 {offsets = [0, 0], sizes = [1, 128], strides = [1, 1]} : vector<2x128xf32> to vector<1x128xf32>
    %311 = arith.mulf %304, %304 : vector<1x128xf32>
    %312 = arith.subf %309, %311 : vector<1x128xf32>
    %cst_152 = arith.constant 9.99999974E-6 : f32
    %313 = vector.broadcast %cst_152 : f32 to vector<1x128xf32>
    %314 = arith.addf %312, %313 : vector<1x128xf32>
    %315 = math.rsqrt %314 : vector<1x128xf32>
    %316 = arith.mulf %310, %315 : vector<1x128xf32>
    %317 = vector.extract_strided_slice %300 {offsets = [1, 0], sizes = [1, 128], strides = [1, 1]} : vector<2x128xf32> to vector<1x128xf32>
    %318 = arith.mulf %304, %316 : vector<1x128xf32>
    %319 = arith.subf %317, %318 : vector<1x128xf32>
    %320 = vector.broadcast %316 : vector<1x128xf32> to vector<32x128xf32>
    %321 = arith.mulf %298, %320 : vector<32x128xf32>
    %322 = vector.broadcast %319 : vector<1x128xf32> to vector<32x128xf32>
    %323 = arith.addf %321, %322 : vector<32x128xf32>
    %cst_153 = arith.constant 0.000000e+00 : f32
    %324 = vector.broadcast %cst_153 : f32 to vector<32x128xf32>
    %325 = arith.maximumf %323, %324 : vector<32x128xf32>
    %326 = arith.addf %325, %225 : vector<32x128xf32>
    %c1_i32_154 = arith.constant 1 : i32
    %327 = tpu.dynamic_rotate %326 by %c1_i32_154 dim 0 : vector<32x128xf32>, i32 -> vector<32x128xf32>
    %328 = vector.broadcast %20 : vector<32x1xf32> to vector<32x128xf32>
    %329 = arith.mulf %327, %328 : vector<32x128xf32>
    %330 = vector.extract_strided_slice %329 {offsets = [0, 0], sizes = [32, 32], strides = [1, 1]} : vector<32x128xf32> to vector<32x32xf32>
    %331 = vector.extract_strided_slice %326 {offsets = [0, 0], sizes = [32, 32], strides = [1, 1]} : vector<32x128xf32> to vector<32x32xf32>
    %c31_i32_155 = arith.constant 31 : i32
    %332 = tpu.dynamic_rotate %326 by %c31_i32_155 dim 0 : vector<32x128xf32>, i32 -> vector<32x128xf32>
    %333 = vector.broadcast %24 : vector<32x1xf32> to vector<32x128xf32>
    %334 = arith.mulf %332, %333 : vector<32x128xf32>
    %335 = vector.extract_strided_slice %334 {offsets = [0, 0], sizes = [32, 32], strides = [1, 1]} : vector<32x128xf32> to vector<32x32xf32>
    %336 = arith.truncf %330 : vector<32x32xf32> to vector<32x32xbf16>
    %c6 = arith.constant 6 : index
    %c0_156 = arith.constant 0 : index
    %c0_157 = arith.constant 0 : index
    %c0_158 = arith.constant 0 : index
    %337 = vector.load %arg1[%c6, %c0_156, %c0_157, %c0_158] : memref<10x3x32x128xbf16, #tpu.memory_space<vmem>>, vector<1x1x32x128xbf16>
    %338 = vector.shape_cast %337 : vector<1x1x32x128xbf16> to vector<32x128xbf16>
    %cst_159 = arith.constant dense<0.000000e+00> : vector<32x128xf32>
    %339 = tpu.matmul %336, %338, %cst_159 {dimension_numbers = #tpu.dot_dimension_numbers<[1], [0], [0], [1], [0, 0, 1, 1], [], []>} : vector<32x32xbf16>, vector<32x128xbf16>, vector<32x128xf32> -> vector<32x128xf32>
    %340 = arith.truncf %331 : vector<32x32xf32> to vector<32x32xbf16>
    %c6_160 = arith.constant 6 : index
    %c1_161 = arith.constant 1 : index
    %c0_162 = arith.constant 0 : index
    %c0_163 = arith.constant 0 : index
    %341 = vector.load %arg1[%c6_160, %c1_161, %c0_162, %c0_163] : memref<10x3x32x128xbf16, #tpu.memory_space<vmem>>, vector<1x1x32x128xbf16>
    %342 = vector.shape_cast %341 : vector<1x1x32x128xbf16> to vector<32x128xbf16>
    %cst_164 = arith.constant dense<0.000000e+00> : vector<32x128xf32>
    %343 = tpu.matmul %340, %342, %cst_164 {dimension_numbers = #tpu.dot_dimension_numbers<[1], [0], [0], [1], [0, 0, 1, 1], [], []>} : vector<32x32xbf16>, vector<32x128xbf16>, vector<32x128xf32> -> vector<32x128xf32>
    %344 = arith.addf %339, %343 : vector<32x128xf32>
    %345 = arith.truncf %335 : vector<32x32xf32> to vector<32x32xbf16>
    %c6_165 = arith.constant 6 : index
    %c2_166 = arith.constant 2 : index
    %c0_167 = arith.constant 0 : index
    %c0_168 = arith.constant 0 : index
    %346 = vector.load %arg1[%c6_165, %c2_166, %c0_167, %c0_168] : memref<10x3x32x128xbf16, #tpu.memory_space<vmem>>, vector<1x1x32x128xbf16>
    %347 = vector.shape_cast %346 : vector<1x1x32x128xbf16> to vector<32x128xbf16>
    %cst_169 = arith.constant dense<0.000000e+00> : vector<32x128xf32>
    %348 = tpu.matmul %345, %347, %cst_169 {dimension_numbers = #tpu.dot_dimension_numbers<[1], [0], [0], [1], [0, 0, 1, 1], [], []>} : vector<32x32xbf16>, vector<32x128xbf16>, vector<32x128xf32> -> vector<32x128xf32>
    %349 = arith.addf %344, %348 : vector<32x128xf32>
    %c6_170 = arith.constant 6 : index
    %c0_171 = arith.constant 0 : index
    %c0_172 = arith.constant 0 : index
    %350 = vector.load %arg2[%c6_170, %c0_171, %c0_172] : memref<10x2x128xf32, #tpu.memory_space<vmem>>, vector<1x2x128xf32>
    %351 = vector.shape_cast %350 : vector<1x2x128xf32> to vector<2x128xf32>
    %cst_173 = arith.constant dense<0.000000e+00> : vector<128xf32>
    %352 = vector.multi_reduction <add>, %349, %cst_173 [0] : vector<32x128xf32> to vector<128xf32>
    %353 = vector.shape_cast %352 : vector<128xf32> to vector<1x128xf32>
    %cst_174 = arith.constant 3.125000e-02 : f32
    %354 = vector.broadcast %cst_174 : f32 to vector<1x128xf32>
    %355 = arith.mulf %353, %354 : vector<1x128xf32>
    %356 = arith.mulf %349, %349 : vector<32x128xf32>
    %cst_175 = arith.constant dense<0.000000e+00> : vector<128xf32>
    %357 = vector.multi_reduction <add>, %356, %cst_175 [0] : vector<32x128xf32> to vector<128xf32>
    %358 = vector.shape_cast %357 : vector<128xf32> to vector<1x128xf32>
    %cst_176 = arith.constant 3.125000e-02 : f32
    %359 = vector.broadcast %cst_176 : f32 to vector<1x128xf32>
    %360 = arith.mulf %358, %359 : vector<1x128xf32>
    %361 = vector.extract_strided_slice %351 {offsets = [0, 0], sizes = [1, 128], strides = [1, 1]} : vector<2x128xf32> to vector<1x128xf32>
    %362 = arith.mulf %355, %355 : vector<1x128xf32>
    %363 = arith.subf %360, %362 : vector<1x128xf32>
    %cst_177 = arith.constant 9.99999974E-6 : f32
    %364 = vector.broadcast %cst_177 : f32 to vector<1x128xf32>
    %365 = arith.addf %363, %364 : vector<1x128xf32>
    %366 = math.rsqrt %365 : vector<1x128xf32>
    %367 = arith.mulf %361, %366 : vector<1x128xf32>
    %368 = vector.extract_strided_slice %351 {offsets = [1, 0], sizes = [1, 128], strides = [1, 1]} : vector<2x128xf32> to vector<1x128xf32>
    %369 = arith.mulf %355, %367 : vector<1x128xf32>
    %370 = arith.subf %368, %369 : vector<1x128xf32>
    %371 = vector.broadcast %367 : vector<1x128xf32> to vector<32x128xf32>
    %372 = arith.mulf %349, %371 : vector<32x128xf32>
    %373 = vector.broadcast %370 : vector<1x128xf32> to vector<32x128xf32>
    %374 = arith.addf %372, %373 : vector<32x128xf32>
    %cst_178 = arith.constant 0.000000e+00 : f32
    %375 = vector.broadcast %cst_178 : f32 to vector<32x128xf32>
    %376 = arith.maximumf %374, %375 : vector<32x128xf32>
    %c1_i32_179 = arith.constant 1 : i32
    %377 = tpu.dynamic_rotate %376 by %c1_i32_179 dim 0 : vector<32x128xf32>, i32 -> vector<32x128xf32>
    %378 = vector.broadcast %20 : vector<32x1xf32> to vector<32x128xf32>
    %379 = arith.mulf %377, %378 : vector<32x128xf32>
    %380 = vector.extract_strided_slice %379 {offsets = [0, 0], sizes = [32, 32], strides = [1, 1]} : vector<32x128xf32> to vector<32x32xf32>
    %381 = vector.extract_strided_slice %376 {offsets = [0, 0], sizes = [32, 32], strides = [1, 1]} : vector<32x128xf32> to vector<32x32xf32>
    %c31_i32_180 = arith.constant 31 : i32
    %382 = tpu.dynamic_rotate %376 by %c31_i32_180 dim 0 : vector<32x128xf32>, i32 -> vector<32x128xf32>
    %383 = vector.broadcast %24 : vector<32x1xf32> to vector<32x128xf32>
    %384 = arith.mulf %382, %383 : vector<32x128xf32>
    %385 = vector.extract_strided_slice %384 {offsets = [0, 0], sizes = [32, 32], strides = [1, 1]} : vector<32x128xf32> to vector<32x32xf32>
    %386 = arith.truncf %380 : vector<32x32xf32> to vector<32x32xbf16>
    %c7 = arith.constant 7 : index
    %c0_181 = arith.constant 0 : index
    %c0_182 = arith.constant 0 : index
    %c0_183 = arith.constant 0 : index
    %387 = vector.load %arg1[%c7, %c0_181, %c0_182, %c0_183] : memref<10x3x32x128xbf16, #tpu.memory_space<vmem>>, vector<1x1x32x128xbf16>
    %388 = vector.shape_cast %387 : vector<1x1x32x128xbf16> to vector<32x128xbf16>
    %cst_184 = arith.constant dense<0.000000e+00> : vector<32x128xf32>
    %389 = tpu.matmul %386, %388, %cst_184 {dimension_numbers = #tpu.dot_dimension_numbers<[1], [0], [0], [1], [0, 0, 1, 1], [], []>} : vector<32x32xbf16>, vector<32x128xbf16>, vector<32x128xf32> -> vector<32x128xf32>
    %390 = arith.truncf %381 : vector<32x32xf32> to vector<32x32xbf16>
    %c7_185 = arith.constant 7 : index
    %c1_186 = arith.constant 1 : index
    %c0_187 = arith.constant 0 : index
    %c0_188 = arith.constant 0 : index
    %391 = vector.load %arg1[%c7_185, %c1_186, %c0_187, %c0_188] : memref<10x3x32x128xbf16, #tpu.memory_space<vmem>>, vector<1x1x32x128xbf16>
    %392 = vector.shape_cast %391 : vector<1x1x32x128xbf16> to vector<32x128xbf16>
    %cst_189 = arith.constant dense<0.000000e+00> : vector<32x128xf32>
    %393 = tpu.matmul %390, %392, %cst_189 {dimension_numbers = #tpu.dot_dimension_numbers<[1], [0], [0], [1], [0, 0, 1, 1], [], []>} : vector<32x32xbf16>, vector<32x128xbf16>, vector<32x128xf32> -> vector<32x128xf32>
    %394 = arith.addf %389, %393 : vector<32x128xf32>
    %395 = arith.truncf %385 : vector<32x32xf32> to vector<32x32xbf16>
    %c7_190 = arith.constant 7 : index
    %c2_191 = arith.constant 2 : index
    %c0_192 = arith.constant 0 : index
    %c0_193 = arith.constant 0 : index
    %396 = vector.load %arg1[%c7_190, %c2_191, %c0_192, %c0_193] : memref<10x3x32x128xbf16, #tpu.memory_space<vmem>>, vector<1x1x32x128xbf16>
    %397 = vector.shape_cast %396 : vector<1x1x32x128xbf16> to vector<32x128xbf16>
    %cst_194 = arith.constant dense<0.000000e+00> : vector<32x128xf32>
    %398 = tpu.matmul %395, %397, %cst_194 {dimension_numbers = #tpu.dot_dimension_numbers<[1], [0], [0], [1], [0, 0, 1, 1], [], []>} : vector<32x32xbf16>, vector<32x128xbf16>, vector<32x128xf32> -> vector<32x128xf32>
    %399 = arith.addf %394, %398 : vector<32x128xf32>
    %c7_195 = arith.constant 7 : index
    %c0_196 = arith.constant 0 : index
    %c0_197 = arith.constant 0 : index
    %400 = vector.load %arg2[%c7_195, %c0_196, %c0_197] : memref<10x2x128xf32, #tpu.memory_space<vmem>>, vector<1x2x128xf32>
    %401 = vector.shape_cast %400 : vector<1x2x128xf32> to vector<2x128xf32>
    %cst_198 = arith.constant dense<0.000000e+00> : vector<128xf32>
    %402 = vector.multi_reduction <add>, %399, %cst_198 [0] : vector<32x128xf32> to vector<128xf32>
    %403 = vector.shape_cast %402 : vector<128xf32> to vector<1x128xf32>
    %cst_199 = arith.constant 3.125000e-02 : f32
    %404 = vector.broadcast %cst_199 : f32 to vector<1x128xf32>
    %405 = arith.mulf %403, %404 : vector<1x128xf32>
    %406 = arith.mulf %399, %399 : vector<32x128xf32>
    %cst_200 = arith.constant dense<0.000000e+00> : vector<128xf32>
    %407 = vector.multi_reduction <add>, %406, %cst_200 [0] : vector<32x128xf32> to vector<128xf32>
    %408 = vector.shape_cast %407 : vector<128xf32> to vector<1x128xf32>
    %cst_201 = arith.constant 3.125000e-02 : f32
    %409 = vector.broadcast %cst_201 : f32 to vector<1x128xf32>
    %410 = arith.mulf %408, %409 : vector<1x128xf32>
    %411 = vector.extract_strided_slice %401 {offsets = [0, 0], sizes = [1, 128], strides = [1, 1]} : vector<2x128xf32> to vector<1x128xf32>
    %412 = arith.mulf %405, %405 : vector<1x128xf32>
    %413 = arith.subf %410, %412 : vector<1x128xf32>
    %cst_202 = arith.constant 9.99999974E-6 : f32
    %414 = vector.broadcast %cst_202 : f32 to vector<1x128xf32>
    %415 = arith.addf %413, %414 : vector<1x128xf32>
    %416 = math.rsqrt %415 : vector<1x128xf32>
    %417 = arith.mulf %411, %416 : vector<1x128xf32>
    %418 = vector.extract_strided_slice %401 {offsets = [1, 0], sizes = [1, 128], strides = [1, 1]} : vector<2x128xf32> to vector<1x128xf32>
    %419 = arith.mulf %405, %417 : vector<1x128xf32>
    %420 = arith.subf %418, %419 : vector<1x128xf32>
    %421 = vector.broadcast %417 : vector<1x128xf32> to vector<32x128xf32>
    %422 = arith.mulf %399, %421 : vector<32x128xf32>
    %423 = vector.broadcast %420 : vector<1x128xf32> to vector<32x128xf32>
    %424 = arith.addf %422, %423 : vector<32x128xf32>
    %cst_203 = arith.constant 0.000000e+00 : f32
    %425 = vector.broadcast %cst_203 : f32 to vector<32x128xf32>
    %426 = arith.maximumf %424, %425 : vector<32x128xf32>
    %427 = arith.addf %426, %125 : vector<32x128xf32>
    %c1_i32_204 = arith.constant 1 : i32
    %428 = tpu.dynamic_rotate %427 by %c1_i32_204 dim 0 : vector<32x128xf32>, i32 -> vector<32x128xf32>
    %429 = vector.broadcast %20 : vector<32x1xf32> to vector<32x128xf32>
    %430 = arith.mulf %428, %429 : vector<32x128xf32>
    %431 = vector.extract_strided_slice %430 {offsets = [0, 0], sizes = [32, 32], strides = [1, 1]} : vector<32x128xf32> to vector<32x32xf32>
    %432 = vector.extract_strided_slice %427 {offsets = [0, 0], sizes = [32, 32], strides = [1, 1]} : vector<32x128xf32> to vector<32x32xf32>
    %c31_i32_205 = arith.constant 31 : i32
    %433 = tpu.dynamic_rotate %427 by %c31_i32_205 dim 0 : vector<32x128xf32>, i32 -> vector<32x128xf32>
    %434 = vector.broadcast %24 : vector<32x1xf32> to vector<32x128xf32>
    %435 = arith.mulf %433, %434 : vector<32x128xf32>
    %436 = vector.extract_strided_slice %435 {offsets = [0, 0], sizes = [32, 32], strides = [1, 1]} : vector<32x128xf32> to vector<32x32xf32>
    %437 = arith.truncf %431 : vector<32x32xf32> to vector<32x32xbf16>
    %c8 = arith.constant 8 : index
    %c0_206 = arith.constant 0 : index
    %c0_207 = arith.constant 0 : index
    %c0_208 = arith.constant 0 : index
    %438 = vector.load %arg1[%c8, %c0_206, %c0_207, %c0_208] : memref<10x3x32x128xbf16, #tpu.memory_space<vmem>>, vector<1x1x32x128xbf16>
    %439 = vector.shape_cast %438 : vector<1x1x32x128xbf16> to vector<32x128xbf16>
    %cst_209 = arith.constant dense<0.000000e+00> : vector<32x128xf32>
    %440 = tpu.matmul %437, %439, %cst_209 {dimension_numbers = #tpu.dot_dimension_numbers<[1], [0], [0], [1], [0, 0, 1, 1], [], []>} : vector<32x32xbf16>, vector<32x128xbf16>, vector<32x128xf32> -> vector<32x128xf32>
    %441 = arith.truncf %432 : vector<32x32xf32> to vector<32x32xbf16>
    %c8_210 = arith.constant 8 : index
    %c1_211 = arith.constant 1 : index
    %c0_212 = arith.constant 0 : index
    %c0_213 = arith.constant 0 : index
    %442 = vector.load %arg1[%c8_210, %c1_211, %c0_212, %c0_213] : memref<10x3x32x128xbf16, #tpu.memory_space<vmem>>, vector<1x1x32x128xbf16>
    %443 = vector.shape_cast %442 : vector<1x1x32x128xbf16> to vector<32x128xbf16>
    %cst_214 = arith.constant dense<0.000000e+00> : vector<32x128xf32>
    %444 = tpu.matmul %441, %443, %cst_214 {dimension_numbers = #tpu.dot_dimension_numbers<[1], [0], [0], [1], [0, 0, 1, 1], [], []>} : vector<32x32xbf16>, vector<32x128xbf16>, vector<32x128xf32> -> vector<32x128xf32>
    %445 = arith.addf %440, %444 : vector<32x128xf32>
    %446 = arith.truncf %436 : vector<32x32xf32> to vector<32x32xbf16>
    %c8_215 = arith.constant 8 : index
    %c2_216 = arith.constant 2 : index
    %c0_217 = arith.constant 0 : index
    %c0_218 = arith.constant 0 : index
    %447 = vector.load %arg1[%c8_215, %c2_216, %c0_217, %c0_218] : memref<10x3x32x128xbf16, #tpu.memory_space<vmem>>, vector<1x1x32x128xbf16>
    %448 = vector.shape_cast %447 : vector<1x1x32x128xbf16> to vector<32x128xbf16>
    %cst_219 = arith.constant dense<0.000000e+00> : vector<32x128xf32>
    %449 = tpu.matmul %446, %448, %cst_219 {dimension_numbers = #tpu.dot_dimension_numbers<[1], [0], [0], [1], [0, 0, 1, 1], [], []>} : vector<32x32xbf16>, vector<32x128xbf16>, vector<32x128xf32> -> vector<32x128xf32>
    %450 = arith.addf %445, %449 : vector<32x128xf32>
    %c8_220 = arith.constant 8 : index
    %c0_221 = arith.constant 0 : index
    %c0_222 = arith.constant 0 : index
    %451 = vector.load %arg2[%c8_220, %c0_221, %c0_222] : memref<10x2x128xf32, #tpu.memory_space<vmem>>, vector<1x2x128xf32>
    %452 = vector.shape_cast %451 : vector<1x2x128xf32> to vector<2x128xf32>
    %cst_223 = arith.constant dense<0.000000e+00> : vector<128xf32>
    %453 = vector.multi_reduction <add>, %450, %cst_223 [0] : vector<32x128xf32> to vector<128xf32>
    %454 = vector.shape_cast %453 : vector<128xf32> to vector<1x128xf32>
    %cst_224 = arith.constant 3.125000e-02 : f32
    %455 = vector.broadcast %cst_224 : f32 to vector<1x128xf32>
    %456 = arith.mulf %454, %455 : vector<1x128xf32>
    %457 = arith.mulf %450, %450 : vector<32x128xf32>
    %cst_225 = arith.constant dense<0.000000e+00> : vector<128xf32>
    %458 = vector.multi_reduction <add>, %457, %cst_225 [0] : vector<32x128xf32> to vector<128xf32>
    %459 = vector.shape_cast %458 : vector<128xf32> to vector<1x128xf32>
    %cst_226 = arith.constant 3.125000e-02 : f32
    %460 = vector.broadcast %cst_226 : f32 to vector<1x128xf32>
    %461 = arith.mulf %459, %460 : vector<1x128xf32>
    %462 = vector.extract_strided_slice %452 {offsets = [0, 0], sizes = [1, 128], strides = [1, 1]} : vector<2x128xf32> to vector<1x128xf32>
    %463 = arith.mulf %456, %456 : vector<1x128xf32>
    %464 = arith.subf %461, %463 : vector<1x128xf32>
    %cst_227 = arith.constant 9.99999974E-6 : f32
    %465 = vector.broadcast %cst_227 : f32 to vector<1x128xf32>
    %466 = arith.addf %464, %465 : vector<1x128xf32>
    %467 = math.rsqrt %466 : vector<1x128xf32>
    %468 = arith.mulf %462, %467 : vector<1x128xf32>
    %469 = vector.extract_strided_slice %452 {offsets = [1, 0], sizes = [1, 128], strides = [1, 1]} : vector<2x128xf32> to vector<1x128xf32>
    %470 = arith.mulf %456, %468 : vector<1x128xf32>
    %471 = arith.subf %469, %470 : vector<1x128xf32>
    %472 = vector.broadcast %468 : vector<1x128xf32> to vector<32x128xf32>
    %473 = arith.mulf %450, %472 : vector<32x128xf32>
    %474 = vector.broadcast %471 : vector<1x128xf32> to vector<32x128xf32>
    %475 = arith.addf %473, %474 : vector<32x128xf32>
    %cst_228 = arith.constant 0.000000e+00 : f32
    %476 = vector.broadcast %cst_228 : f32 to vector<32x128xf32>
    %477 = arith.maximumf %475, %476 : vector<32x128xf32>
    %c1_i32_229 = arith.constant 1 : i32
    %478 = tpu.dynamic_rotate %477 by %c1_i32_229 dim 0 : vector<32x128xf32>, i32 -> vector<32x128xf32>
    %479 = vector.broadcast %20 : vector<32x1xf32> to vector<32x128xf32>
    %480 = arith.mulf %478, %479 : vector<32x128xf32>
    %481 = vector.extract_strided_slice %480 {offsets = [0, 0], sizes = [32, 32], strides = [1, 1]} : vector<32x128xf32> to vector<32x32xf32>
    %482 = vector.extract_strided_slice %477 {offsets = [0, 0], sizes = [32, 32], strides = [1, 1]} : vector<32x128xf32> to vector<32x32xf32>
    %c31_i32_230 = arith.constant 31 : i32
    %483 = tpu.dynamic_rotate %477 by %c31_i32_230 dim 0 : vector<32x128xf32>, i32 -> vector<32x128xf32>
    %484 = vector.broadcast %24 : vector<32x1xf32> to vector<32x128xf32>
    %485 = arith.mulf %483, %484 : vector<32x128xf32>
    %486 = vector.extract_strided_slice %485 {offsets = [0, 0], sizes = [32, 32], strides = [1, 1]} : vector<32x128xf32> to vector<32x32xf32>
    %487 = arith.truncf %481 : vector<32x32xf32> to vector<32x32xbf16>
    %c9 = arith.constant 9 : index
    %c0_231 = arith.constant 0 : index
    %c0_232 = arith.constant 0 : index
    %c0_233 = arith.constant 0 : index
    %488 = vector.load %arg1[%c9, %c0_231, %c0_232, %c0_233] : memref<10x3x32x128xbf16, #tpu.memory_space<vmem>>, vector<1x1x32x128xbf16>
    %489 = vector.shape_cast %488 : vector<1x1x32x128xbf16> to vector<32x128xbf16>
    %cst_234 = arith.constant dense<0.000000e+00> : vector<32x128xf32>
    %490 = tpu.matmul %487, %489, %cst_234 {dimension_numbers = #tpu.dot_dimension_numbers<[1], [0], [0], [1], [0, 0, 1, 1], [], []>} : vector<32x32xbf16>, vector<32x128xbf16>, vector<32x128xf32> -> vector<32x128xf32>
    %491 = arith.truncf %482 : vector<32x32xf32> to vector<32x32xbf16>
    %c9_235 = arith.constant 9 : index
    %c1_236 = arith.constant 1 : index
    %c0_237 = arith.constant 0 : index
    %c0_238 = arith.constant 0 : index
    %492 = vector.load %arg1[%c9_235, %c1_236, %c0_237, %c0_238] : memref<10x3x32x128xbf16, #tpu.memory_space<vmem>>, vector<1x1x32x128xbf16>
    %493 = vector.shape_cast %492 : vector<1x1x32x128xbf16> to vector<32x128xbf16>
    %cst_239 = arith.constant dense<0.000000e+00> : vector<32x128xf32>
    %494 = tpu.matmul %491, %493, %cst_239 {dimension_numbers = #tpu.dot_dimension_numbers<[1], [0], [0], [1], [0, 0, 1, 1], [], []>} : vector<32x32xbf16>, vector<32x128xbf16>, vector<32x128xf32> -> vector<32x128xf32>
    %495 = arith.addf %490, %494 : vector<32x128xf32>
    %496 = arith.truncf %486 : vector<32x32xf32> to vector<32x32xbf16>
    %c9_240 = arith.constant 9 : index
    %c2_241 = arith.constant 2 : index
    %c0_242 = arith.constant 0 : index
    %c0_243 = arith.constant 0 : index
    %497 = vector.load %arg1[%c9_240, %c2_241, %c0_242, %c0_243] : memref<10x3x32x128xbf16, #tpu.memory_space<vmem>>, vector<1x1x32x128xbf16>
    %498 = vector.shape_cast %497 : vector<1x1x32x128xbf16> to vector<32x128xbf16>
    %cst_244 = arith.constant dense<0.000000e+00> : vector<32x128xf32>
    %499 = tpu.matmul %496, %498, %cst_244 {dimension_numbers = #tpu.dot_dimension_numbers<[1], [0], [0], [1], [0, 0, 1, 1], [], []>} : vector<32x32xbf16>, vector<32x128xbf16>, vector<32x128xf32> -> vector<32x128xf32>
    %500 = arith.addf %495, %499 : vector<32x128xf32>
    %c9_245 = arith.constant 9 : index
    %c0_246 = arith.constant 0 : index
    %c0_247 = arith.constant 0 : index
    %501 = vector.load %arg2[%c9_245, %c0_246, %c0_247] : memref<10x2x128xf32, #tpu.memory_space<vmem>>, vector<1x2x128xf32>
    %502 = vector.shape_cast %501 : vector<1x2x128xf32> to vector<2x128xf32>
    %cst_248 = arith.constant dense<0.000000e+00> : vector<128xf32>
    %503 = vector.multi_reduction <add>, %500, %cst_248 [0] : vector<32x128xf32> to vector<128xf32>
    %504 = vector.shape_cast %503 : vector<128xf32> to vector<1x128xf32>
    %cst_249 = arith.constant 3.125000e-02 : f32
    %505 = vector.broadcast %cst_249 : f32 to vector<1x128xf32>
    %506 = arith.mulf %504, %505 : vector<1x128xf32>
    %507 = arith.mulf %500, %500 : vector<32x128xf32>
    %cst_250 = arith.constant dense<0.000000e+00> : vector<128xf32>
    %508 = vector.multi_reduction <add>, %507, %cst_250 [0] : vector<32x128xf32> to vector<128xf32>
    %509 = vector.shape_cast %508 : vector<128xf32> to vector<1x128xf32>
    %cst_251 = arith.constant 3.125000e-02 : f32
    %510 = vector.broadcast %cst_251 : f32 to vector<1x128xf32>
    %511 = arith.mulf %509, %510 : vector<1x128xf32>
    %512 = vector.extract_strided_slice %502 {offsets = [0, 0], sizes = [1, 128], strides = [1, 1]} : vector<2x128xf32> to vector<1x128xf32>
    %513 = arith.mulf %506, %506 : vector<1x128xf32>
    %514 = arith.subf %511, %513 : vector<1x128xf32>
    %cst_252 = arith.constant 9.99999974E-6 : f32
    %515 = vector.broadcast %cst_252 : f32 to vector<1x128xf32>
    %516 = arith.addf %514, %515 : vector<1x128xf32>
    %517 = math.rsqrt %516 : vector<1x128xf32>
    %518 = arith.mulf %512, %517 : vector<1x128xf32>
    %519 = vector.extract_strided_slice %502 {offsets = [1, 0], sizes = [1, 128], strides = [1, 1]} : vector<2x128xf32> to vector<1x128xf32>
    %520 = arith.mulf %506, %518 : vector<1x128xf32>
    %521 = arith.subf %519, %520 : vector<1x128xf32>
    %522 = vector.broadcast %518 : vector<1x128xf32> to vector<32x128xf32>
    %523 = arith.mulf %500, %522 : vector<32x128xf32>
    %524 = vector.broadcast %521 : vector<1x128xf32> to vector<32x128xf32>
    %525 = arith.addf %523, %524 : vector<32x128xf32>
    %cst_253 = arith.constant 0.000000e+00 : f32
    %526 = vector.broadcast %cst_253 : f32 to vector<32x128xf32>
    %527 = arith.maximumf %525, %526 : vector<32x128xf32>
    %c0_254 = arith.constant 0 : index
    %c0_255 = arith.constant 0 : index
    %528 = vector.load %arg3[%c0_254, %c0_255] : memref<32x128xf32, #tpu.memory_space<vmem>>, vector<32x128xf32>
    tpu.vector_store %arg3[%c0_254, %c0_255], %527 {strides = array<i32>} : memref<32x128xf32, #tpu.memory_space<vmem>>, vector<32x128xf32>,
    return
  }
}

</mosaic_0001>

<llo_original>
// kernel: unet_pallas.1
$region0: #{unet_pallas.1}
  #allocation0 [shape = 'u32[]', space=smem, size = 0x4, offset = 0x4, fixed_abs, tag = 'smem constant byte address 0x4 - core index']
  #allocation1 [shape = 'u32[144,128]{1,0:T(1,128)}', space=vmem, size = 0x12000, scoped, tag = 'internal scratch']
  %s0 = inlined_call_operand.vmem [shape: f32[32,128], index: 0, kind: input, shape index: {}]
  %s1 = inlined_call_operand.vmem [shape: bf16[10,3,32,128], index: 1, kind: input, shape index: {}]
  %s2 = inlined_call_operand.vmem [shape: f32[10,2,128], index: 2, kind: input, shape index: {}]
  %s3 = inlined_call_operand.vmem [shape: f32[32,128], index: 3, kind: output, shape index: {}]
  %s4 = sld [smem:[#allocation0]]
  $region22: #{unet_pallas.1} parent=0
    _
  %s6 = ssub.s32 1, %s4
  %s7 = scalar_select 0, %s6, %s4
  // Predicated region
  $region2: #{unet_pallas.1} parent=0 // pred_check
    _
  $region3: #{unet_pallas.1} parent=0 // pred_check_branch
    %9 = sbr.rel (0) target = $region5
  $region4: #{unet_pallas.1} parent=0 // pred_region
    _
  $region5: #{unet_pallas.1} parent=0 // pred_fallthru
    _
  // Predicated region
  $region6: #{unet_pallas.1} parent=0 // pred_check
    _
  $region7: #{unet_pallas.1} parent=0 // pred_check_branch
    %11 = sbr.rel (0) target = $region9
  $region8: #{unet_pallas.1} parent=0 // pred_region
    _
  $region9: #{unet_pallas.1} parent=0 // pred_fallthru
    _
  // Predicated region
  $region10: #{unet_pallas.1} parent=0 // pred_check
    _
  $region11: #{unet_pallas.1} parent=0 // pred_check_branch
    %13 = sbr.rel (0) target = $region13
  $region12: #{unet_pallas.1} parent=0 // pred_region
    _
  $region13: #{unet_pallas.1} parent=0 // pred_fallthru
    _
  %v15 = vlaneseq
  %v16 = vshrl.u32 %v15, 7
  %v17 = vadd.s32 %v16, 8
  %v18 = vadd.s32 %v16, 16
  %v19 = vadd.s32 %v16, 24
  %vm20 = vcmp.lt.s32.totalorder %v16, 0
  %v21 = vsub.s32 0, %v16
  %v22 = vsel %vm20, %v21, %v16
  %v23 = vshrl.u32 %v22, 4
  %v24 = vand.u32 %v22, 15
  %v25 = vsub.s32 0, %v24
  %v26 = vsel %vm20, %v25, %v24
  %vm27 = vcmp.lt.s32.totalorder %v17, 0
  %v28 = vsub.s32 0, %v17
  %v29 = vsel %vm27, %v28, %v17
  %v30 = vshrl.u32 %v29, 4
  %v31 = vand.u32 %v29, 15
  %v32 = vsub.s32 0, %v31
  %v33 = vsel %vm27, %v32, %v31
  %vm34 = vcmp.lt.s32.totalorder %v18, 0
  %v35 = vsub.s32 0, %v18
  %v36 = vsel %vm34, %v35, %v18
  %v37 = vshrl.u32 %v36, 4
  %v38 = vand.u32 %v36, 15
  %v39 = vsub.s32 0, %v38
  %v40 = vsel %vm34, %v39, %v38
  %vm41 = vcmp.lt.s32.totalorder %v19, 0
  %v42 = vsub.s32 0, %v19
  %v43 = vsel %vm41, %v42, %v19
  %v44 = vshrl.u32 %v43, 4
  %v45 = vand.u32 %v43, 15
  %v46 = vsub.s32 0, %v45
  %v47 = vsel %vm41, %v46, %v45
  %vm48 = vcmp.ne.s32.totalorder %v26, 0
  %vm49 = vcmp.ne.s32.totalorder %v33, 0
  %vm50 = vcmp.ne.s32.totalorder %v40, 0
  %vm51 = vcmp.ne.s32.totalorder %v47, 0
  %vm52 = vcmp.lt.s32.totalorder %v26, 0
  %vm53 = vcmp.lt.s32.totalorder %v33, 0
  %vm54 = vcmp.lt.s32.totalorder %v40, 0
  %vm55 = vcmp.lt.s32.totalorder %v47, 0
  %vm56 = vmand %vm52, %vm48
  %vm57 = vmand %vm53, %vm49
  %vm58 = vmand %vm54, %vm50
  %vm59 = vmand %vm55, %vm51
  %v60 = vadd.s32 %v26, 16
  %v61 = vadd.s32 %v33, 16
  %v62 = vadd.s32 %v40, 16
  %v63 = vadd.s32 %v47, 16
  %v64 = vsel %vm56, %v60, %v26
  %v65 = vsel %vm57, %v61, %v33
  %v66 = vsel %vm58, %v62, %v40
  %v67 = vsel %vm59, %v63, %v47
  %vm68 = vcmp.ne.s32.totalorder %v64, 0
  %vm69 = vcmp.ne.s32.totalorder %v65, 0
  %vm70 = vcmp.ne.s32.totalorder %v66, 0
  %vm71 = vcmp.ne.s32.totalorder %v67, 0
  %v72 = vsel %vm68, 1, 0
  %v73 = vsel %vm69, 1, 0
  %v74 = vsel %vm70, 1, 0
  %v75 = vsel %vm71, 1, 0
  %v76 = vcvt.s32.f32 %v72
  %v77 = vcvt.s32.f32 %v73
  %v78 = vcvt.s32.f32 %v74
  %v79 = vcvt.s32.f32 %v75
  %vm80 = vcmp.ne.s32.totalorder %v64, 15
  %vm81 = vcmp.ne.s32.totalorder %v65, 15
  %vm82 = vcmp.ne.s32.totalorder %v66, 15
  %vm83 = vcmp.ne.s32.totalorder %v67, 15
  %v84 = vsel %vm80, 1, 0
  %v85 = vsel %vm81, 1, 0
  %v86 = vsel %vm82, 1, 0
  %v87 = vsel %vm83, 1, 0
  %v88 = vcvt.s32.f32 %v84
  %v89 = vcvt.s32.f32 %v85
  %v90 = vcvt.s32.f32 %v86
  %v91 = vcvt.s32.f32 %v87
  %v92 = vld [vmem:[%s0] sm:$0xff]
  %v93 = vld [vmem:[%s0 + $0x8] sm:$0xff]
  %v94 = vld [vmem:[%s0 + $0x10] sm:$0xff]
  %v95 = vld [vmem:[%s0 + $0x18] sm:$0xff]
  %v96 = vrot.slane %v92, 7
  %v97 = vrot.slane %v93, 7
  %v98 = vrot.slane %v94, 7
  %v99 = vrot.slane %v95, 7
  %vm100 = vcmp.lt.s32.totalorder %v16, 1
  %v101 = vsel %vm100, %v98, %v99
  %v102 = vsel %vm100, %v97, %v98
  %v103 = vsel %vm100, %v96, %v97
  %v104 = vsel %vm100, %v99, %v96
  %v105 = vmul.f32 %v104, %v76
  %v106 = vmul.f32 %v103, %v77
  %v107 = vmul.f32 %v102, %v78
  %v108 = vmul.f32 %v101, %v79
  %v109 = vrot.slane %v92, 1
  %v110 = vrot.slane %v93, 1
  %v111 = vrot.slane %v94, 1
  %v112 = vrot.slane %v95, 1
  %vm113 = vcmp.lt.s32.totalorder %v16, 7
  %v114 = vsel %vm113, %v111, %v112
  %v115 = vsel %vm113, %v110, %v111
  %v116 = vsel %vm113, %v109, %v110
  %v117 = vsel %vm113, %v112, %v109
  %v118 = vmul.f32 %v116, %v88
  %v119 = vmul.f32 %v115, %v89
  %v120 = vmul.f32 %v114, %v90
  %v121 = vmul.f32 %v117, %v91
  %v122 = vpack.c.bf16 %v106, %v105
  %v123 = vpack.c.bf16 %v108, %v107
  %v124 = vld [vmem:[%s1] sm:$0xf]
  %v125 = vld [vmem:[%s1 + $0x4] sm:$0xf]
  %v126 = vld [vmem:[%s1 + $0x8] sm:$0xf]
  %v127 = vld [vmem:[%s1 + $0xc] sm:$0xf]
  %v128 = vpack.c.bf16 %v93, %v92
  %v129 = vpack.c.bf16 %v95, %v94
  %s130 = scalar_lea.vmem %s1, 16
  %v131 = vld [vmem:[%s130] sm:$0xf]
  %v132 = vld [vmem:[%s130 + $0x4] sm:$0xf]
  %v133 = vld [vmem:[%s130 + $0x8] sm:$0xf]
  %v134 = vld [vmem:[%s130 + $0xc] sm:$0xf]
  %v139 = vunpack.c.l.b16 %v131
  %v140 = vunpack.c.l.b16 %v132
  %v141 = vunpack.c.l.b16 %v133
  %v142 = vunpack.c.l.b16 %v134
  %v143 = vpack.c.b16 %v140, %v139
  %v144 = vpack.c.b16 %v142, %v141
  %vm147 = vcmask 261120
  %v149 = vsel %vm147, %v128, 0
  %v152 = vsel %vm147, %v129, 0
  %154 = vmatprep.subr.bf16.mxu0 0
  %155 = vmatpush1.bf16.msra.mxu0 %v143
  %156 = vmatprep.subr.bf16.mxu0 0
  %157 = vmatpush1.bf16.msra.mxu0 %v144
  %158 = vmatprep.subr.bf16.mxu0 0
  %159 = vmatpush1.bf16.msra.mxu0 0
  %160 = vmatprep.subr.bf16.mxu0 0
  %161 = vmatpush1.bf16.msra.mxu0 0
  %162 = vmatprep.subr.bf16.mxu0 0
  %163 = vmatpush1.bf16.msra.mxu0 0
  %164 = vmatprep.subr.bf16.mxu0 0
  %165 = vmatpush1.bf16.msra.mxu0 0
  %166 = vmatprep.subr.bf16.mxu0 0
  %167 = vmatpush1.bf16.msra.mxu0 0
  %168 = vmatprep.subr.bf16.mxu0 0
  %169 = vmatpush1.bf16.msra.mxu0 0
  %170 = vmatprep.subr.bf16.mxu0 0
  %171 = vmatpush1.bf16.msra.mxu0 0
  %172 = vmatprep.subr.bf16.mxu0 0
  %173 = vmatpush1.bf16.msra.mxu0 0
  %174 = vmatprep.subr.bf16.mxu0 0
  %175 = vmatpush1.bf16.msra.mxu0 0
  %176 = vmatprep.subr.bf16.mxu0 0
  %177 = vmatpush1.bf16.msra.mxu0 0
  %178 = vmatprep.subr.bf16.mxu0 0
  %179 = vmatpush1.bf16.msra.mxu0 0
  %180 = vmatprep.subr.bf16.mxu0 0
  %181 = vmatpush1.bf16.msra.mxu0 0
  %182 = vmatprep.subr.bf16.mxu0 0
  %183 = vmatpush1.bf16.msra.mxu0 0
  %184 = vmatprep.subr.bf16.mxu0 0
  %185 = vmatpush1.bf16.msra.mxu0 0
  %186 = vmatprep.mubr.bf16.mxu0 0
  %187 = vmatmul.mubr.bf16.gmra.mrb[0].mxu0 %v149
  %v188 = vpop.f32.mrb[0].mxu0
  %v189 = vadd.f32 0.0, %v188
  %v190 = vpop.f32.mrb[0].mxu0
  %v191 = vpop.f32.mrb[0].mxu0
  %v192 = vadd.f32 0.0, %v191
  %v193 = vpop.f32.mrb[0].mxu0
  %194 = vmatprep.mubr.bf16.mxu0 0
  %195 = vmatmul.mubr.bf16.gmra.mrb[0].mxu0 %v152
  %v196 = vpop.f32.mrb[0].mxu0
  %v197 = vadd.f32 0.0, %v196
  %v198 = vpop.f32.mrb[0].mxu0
  %v199 = vpop.f32.mrb[0].mxu0
  %v200 = vadd.f32 0.0, %v199
  %v201 = vpop.f32.mrb[0].mxu0
  %202 = vdwg.mxu0
  %v207 = vunpack.c.l.b16 %v124
  %v208 = vunpack.c.l.b16 %v125
  %v209 = vunpack.c.l.b16 %v126
  %v210 = vunpack.c.l.b16 %v127
  %v211 = vpack.c.b16 %v208, %v207
  %v212 = vpack.c.b16 %v210, %v209
  %v216 = vsel %vm147, %v122, 0
  %v219 = vsel %vm147, %v123, 0
  %221 = vmatprep.subr.bf16.mxu0 0
  %222 = vmatpush1.bf16.msra.mxu0 %v211
  %223 = vmatprep.subr.bf16.mxu0 0
  %224 = vmatpush1.bf16.msra.mxu0 %v212
  %225 = vmatprep.subr.bf16.mxu0 0
  %226 = vmatpush1.bf16.msra.mxu0 0
  %227 = vmatprep.subr.bf16.mxu0 0
  %228 = vmatpush1.bf16.msra.mxu0 0
  %229 = vmatprep.subr.bf16.mxu0 0
  %230 = vmatpush1.bf16.msra.mxu0 0
  %231 = vmatprep.subr.bf16.mxu0 0
  %232 = vmatpush1.bf16.msra.mxu0 0
  %233 = vmatprep.subr.bf16.mxu0 0
  %234 = vmatpush1.bf16.msra.mxu0 0
  %235 = vmatprep.subr.bf16.mxu0 0
  %236 = vmatpush1.bf16.msra.mxu0 0
  %237 = vmatprep.subr.bf16.mxu0 0
  %238 = vmatpush1.bf16.msra.mxu0 0
  %239 = vmatprep.subr.bf16.mxu0 0
  %240 = vmatpush1.bf16.msra.mxu0 0
  %241 = vmatprep.subr.bf16.mxu0 0
  %242 = vmatpush1.bf16.msra.mxu0 0
  %243 = vmatprep.subr.bf16.mxu0 0
  %244 = vmatpush1.bf16.msra.mxu0 0
  %245 = vmatprep.subr.bf16.mxu0 0
  %246 = vmatpush1.bf16.msra.mxu0 0
  %247 = vmatprep.subr.bf16.mxu0 0
  %248 = vmatpush1.bf16.msra.mxu0 0
  %249 = vmatprep.subr.bf16.mxu0 0
  %250 = vmatpush1.bf16.msra.mxu0 0
  %251 = vmatprep.subr.bf16.mxu0 0
  %252 = vmatpush1.bf16.msra.mxu0 0
  %253 = vmatprep.mubr.bf16.mxu0 0
  %254 = vmatmul.mubr.bf16.gmra.mrb[0].mxu0 %v216
  %v255 = vpop.f32.mrb[0].mxu0
  %v256 = vadd.f32 %v189, %v255
  %v257 = vpop.f32.mrb[0].mxu0
  %v258 = vpop.f32.mrb[0].mxu0
  %v259 = vadd.f32 %v192, %v258
  %v260 = vpop.f32.mrb[0].mxu0
  %261 = vmatprep.mubr.bf16.mxu0 0
  %262 = vmatmul.mubr.bf16.gmra.mrb[0].mxu0 %v219
  %v263 = vpop.f32.mrb[0].mxu0
  %v264 = vadd.f32 %v197, %v263
  %v265 = vpop.f32.mrb[0].mxu0
  %v266 = vpop.f32.mrb[0].mxu0
  %v267 = vadd.f32 %v200, %v266
  %v268 = vpop.f32.mrb[0].mxu0
  %269 = vdwg.mxu0
  %v270 = vpack.c.bf16 %v119, %v118
  %v271 = vpack.c.bf16 %v121, %v120
  %s272 = scalar_lea.vmem %s1, 32
  %v273 = vld [vmem:[%s272] sm:$0xf]
  %v274 = vld [vmem:[%s272 + $0x4] sm:$0xf]
  %v275 = vld [vmem:[%s272 + $0x8] sm:$0xf]
  %v276 = vld [vmem:[%s272 + $0xc] sm:$0xf]
  %v281 = vunpack.c.l.b16 %v273
  %v282 = vunpack.c.l.b16 %v274
  %v283 = vunpack.c.l.b16 %v275
  %v284 = vunpack.c.l.b16 %v276
  %v285 = vpack.c.b16 %v282, %v281
  %v286 = vpack.c.b16 %v284, %v283
  %v290 = vsel %vm147, %v270, 0
  %v293 = vsel %vm147, %v271, 0
  %295 = vmatprep.subr.bf16.mxu0 0
  %296 = vmatpush1.bf16.msra.mxu0 %v285
  %297 = vmatprep.subr.bf16.mxu0 0
  %298 = vmatpush1.bf16.msra.mxu0 %v286
  %299 = vmatprep.subr.bf16.mxu0 0
  %300 = vmatpush1.bf16.msra.mxu0 0
  %301 = vmatprep.subr.bf16.mxu0 0
  %302 = vmatpush1.bf16.msra.mxu0 0
  %303 = vmatprep.subr.bf16.mxu0 0
  %304 = vmatpush1.bf16.msra.mxu0 0
  %305 = vmatprep.subr.bf16.mxu0 0
  %306 = vmatpush1.bf16.msra.mxu0 0
  %307 = vmatprep.subr.bf16.mxu0 0
  %308 = vmatpush1.bf16.msra.mxu0 0
  %309 = vmatprep.subr.bf16.mxu0 0
  %310 = vmatpush1.bf16.msra.mxu0 0
  %311 = vmatprep.subr.bf16.mxu0 0
  %312 = vmatpush1.bf16.msra.mxu0 0
  %313 = vmatprep.subr.bf16.mxu0 0
  %314 = vmatpush1.bf16.msra.mxu0 0
  %315 = vmatprep.subr.bf16.mxu0 0
  %316 = vmatpush1.bf16.msra.mxu0 0
  %317 = vmatprep.subr.bf16.mxu0 0
  %318 = vmatpush1.bf16.msra.mxu0 0
  %319 = vmatprep.subr.bf16.mxu0 0
  %320 = vmatpush1.bf16.msra.mxu0 0
  %321 = vmatprep.subr.bf16.mxu0 0
  %322 = vmatpush1.bf16.msra.mxu0 0
  %323 = vmatprep.subr.bf16.mxu0 0
  %324 = vmatpush1.bf16.msra.mxu0 0
  %325 = vmatprep.subr.bf16.mxu0 0
  %326 = vmatpush1.bf16.msra.mxu0 0
  %327 = vmatprep.mubr.bf16.mxu0 0
  %328 = vmatmul.mubr.bf16.gmra.mrb[0].mxu0 %v290
  %v329 = vpop.f32.mrb[0].mxu0
  %v330 = vadd.f32 0.0, %v329
  %v331 = vpop.f32.mrb[0].mxu0
  %v332 = vpop.f32.mrb[0].mxu0
  %v333 = vadd.f32 0.0, %v332
  %v334 = vpop.f32.mrb[0].mxu0
  %335 = vmatprep.mubr.bf16.mxu0 0
  %336 = vmatmul.mubr.bf16.gmra.mrb[0].mxu0 %v293
  %v337 = vpop.f32.mrb[0].mxu0
  %v338 = vadd.f32 0.0, %v337
  %v339 = vpop.f32.mrb[0].mxu0
  %v340 = vpop.f32.mrb[0].mxu0
  %v341 = vadd.f32 0.0, %v340
  %v342 = vpop.f32.mrb[0].mxu0
  %343 = vdwg.mxu0
  %v344 = vadd.f32 %v256, %v330
  %v345 = vadd.f32 %v259, %v333
  %v346 = vadd.f32 %v264, %v338
  %v347 = vadd.f32 %v267, %v341
  %v348 = vld [vmem:[%s2] sm:$0x3]
  %v349 = vadd.f32 %v344, %v345
  %v350 = vadd.f32 %v349, %v346
  %v351 = vadd.f32 %v350, %v347
  %v352 = vrot.slane %v351, 4
  %v353 = vadd.f32 %v351, %v352
  %v354 = vrot.slane %v353, 2
  %v355 = vadd.f32 %v353, %v354
  %v356 = vrot.slane %v355, 1
  %v357 = vadd.f32 %v355, %v356
  %v358 = vmul.f32 %v357, 0.03125
  %v359 = vmul.f32 %v344, %v344
  %v360 = vmul.f32 %v345, %v345
  %v361 = vmul.f32 %v346, %v346
  %v362 = vmul.f32 %v347, %v347
  %v363 = vadd.f32 %v359, %v360
  %v364 = vadd.f32 %v363, %v361
  %v365 = vadd.f32 %v364, %v362
  %v366 = vrot.slane %v365, 4
  %v367 = vadd.f32 %v365, %v366
  %v368 = vrot.slane %v367, 2
  %v369 = vadd.f32 %v367, %v368
  %v370 = vrot.slane %v369, 1
  %v371 = vadd.f32 %v369, %v370
  %v372 = vmul.f32 %v371, 0.03125
  %v373 = vmul.f32 %v358, %v358
  %v374 = vsub.f32 %v372, %v373
  %v375 = vadd.f32 %v374, 1e-05
  %v376 = vrsqrt.pop %v375
  %v377 = vmul.f32 %v348, %v376
  %v378 = vmul.f32 %v358, %v377
  %v380 = vrot.slane %v378, 7
  %v382 = vsub.f32 %v348, %v380
  %v383 = vlaneseq
  %v384 = vshrl.u32 %v383, 7
  %v385 = vsub.s32 0, %v384
  %v386 = vrot.slane %v377, %v385
  %v387 = vmul.f32 %v344, %v386
  %v388 = vmul.f32 %v345, %v386
  %v389 = vmul.f32 %v346, %v386
  %v390 = vmul.f32 %v347, %v386
  %v391 = vlaneseq
  %v392 = vshrl.u32 %v391, 7
  %v393 = vsub.s32 1, %v392
  %v394 = vrot.slane %v382, %v393
  %v395 = vadd.f32 %v387, %v394
  %v396 = vadd.f32 %v388, %v394
  %v397 = vadd.f32 %v389, %v394
  %v398 = vadd.f32 %v390, %v394
  %v399 = vmax.f32 %v395, 0.0
  %v400 = vmax.f32 %v396, 0.0
  %v401 = vmax.f32 %v397, 0.0
  %v402 = vmax.f32 %v398, 0.0
  %v403 = vrot.slane %v399, 7
  %v404 = vrot.slane %v400, 7
  %v405 = vrot.slane %v401, 7
  %v406 = vrot.slane %v402, 7
  %v407 = vsel %vm100, %v405, %v406
  %v408 = vsel %vm100, %v404, %v405
  %v409 = vsel %vm100, %v403, %v404
  %v410 = vsel %vm100, %v406, %v403
  %v411 = vmul.f32 %v410, %v76
  %v412 = vmul.f32 %v409, %v77
  %v413 = vmul.f32 %v408, %v78
  %v414 = vmul.f32 %v407, %v79
  %v415 = vrot.slane %v399, 1
  %v416 = vrot.slane %v400, 1
  %v417 = vrot.slane %v401, 1
  %v418 = vrot.slane %v402, 1
  %v419 = vsel %vm113, %v417, %v418
  %v420 = vsel %vm113, %v416, %v417
  %v421 = vsel %vm113, %v415, %v416
  %v422 = vsel %vm113, %v418, %v415
  %v423 = vmul.f32 %v421, %v88
  %v424 = vmul.f32 %v420, %v89
  %v425 = vmul.f32 %v419, %v90
  %v426 = vmul.f32 %v422, %v91
  %v427 = vpack.c.bf16 %v412, %v411
  %v428 = vpack.c.bf16 %v414, %v413
  %s429 = scalar_lea.vmem %s1, 48
  %v430 = vld [vmem:[%s429] sm:$0xf]
  %v431 = vld [vmem:[%s429 + $0x4] sm:$0xf]
  %v432 = vld [vmem:[%s429 + $0x8] sm:$0xf]
  %v433 = vld [vmem:[%s429 + $0xc] sm:$0xf]
  %v434 = vpack.c.bf16 %v400, %v399
  %v435 = vpack.c.bf16 %v402, %v401
  %s436 = scalar_lea.vmem %s1, 64
  %v437 = vld [vmem:[%s436] sm:$0xf]
  %v438 = vld [vmem:[%s436 + $0x4] sm:$0xf]
  %v439 = vld [vmem:[%s436 + $0x8] sm:$0xf]
  %v440 = vld [vmem:[%s436 + $0xc] sm:$0xf]
  %v445 = vunpack.c.l.b16 %v437
  %v446 = vunpack.c.l.b16 %v438
  %v447 = vunpack.c.l.b16 %v439
  %v448 = vunpack.c.l.b16 %v440
  %v449 = vpack.c.b16 %v446, %v445
  %v450 = vpack.c.b16 %v448, %v447
  %v454 = vsel %vm147, %v434, 0
  %v457 = vsel %vm147, %v435, 0
  %459 = vmatprep.subr.bf16.mxu0 0
  %460 = vmatpush1.bf16.msra.mxu0 %v449
  %461 = vmatprep.subr.bf16.mxu0 0
  %462 = vmatpush1.bf16.msra.mxu0 %v450
  %463 = vmatprep.subr.bf16.mxu0 0
  %464 = vmatpush1.bf16.msra.mxu0 0
  %465 = vmatprep.subr.bf16.mxu0 0
  %466 = vmatpush1.bf16.msra.mxu0 0
  %467 = vmatprep.subr.bf16.mxu0 0
  %468 = vmatpush1.bf16.msra.mxu0 0
  %469 = vmatprep.subr.bf16.mxu0 0
  %470 = vmatpush1.bf16.msra.mxu0 0
  %471 = vmatprep.subr.bf16.mxu0 0
  %472 = vmatpush1.bf16.msra.mxu0 0
  %473 = vmatprep.subr.bf16.mxu0 0
  %474 = vmatpush1.bf16.msra.mxu0 0
  %475 = vmatprep.subr.bf16.mxu0 0
  %476 = vmatpush1.bf16.msra.mxu0 0
  %477 = vmatprep.subr.bf16.mxu0 0
  %478 = vmatpush1.bf16.msra.mxu0 0
  %479 = vmatprep.subr.bf16.mxu0 0
  %480 = vmatpush1.bf16.msra.mxu0 0
  %481 = vmatprep.subr.bf16.mxu0 0
  %482 = vmatpush1.bf16.msra.mxu0 0
  %483 = vmatprep.subr.bf16.mxu0 0
  %484 = vmatpush1.bf16.msra.mxu0 0
  %485 = vmatprep.subr.bf16.mxu0 0
  %486 = vmatpush1.bf16.msra.mxu0 0
  %487 = vmatprep.subr.bf16.mxu0 0
  %488 = vmatpush1.bf16.msra.mxu0 0
  %489 = vmatprep.subr.bf16.mxu0 0
  %490 = vmatpush1.bf16.msra.mxu0 0
  %491 = vmatprep.mubr.bf16.mxu0 0
  %492 = vmatmul.mubr.bf16.gmra.mrb[0].mxu0 %v454
  %v493 = vpop.f32.mrb[0].mxu0
  %v494 = vadd.f32 0.0, %v493
  %v495 = vpop.f32.mrb[0].mxu0
  %v496 = vpop.f32.mrb[0].mxu0
  %v497 = vadd.f32 0.0, %v496
  %v498 = vpop.f32.mrb[0].mxu0
  %499 = vmatprep.mubr.bf16.mxu0 0
  %500 = vmatmul.mubr.bf16.gmra.mrb[0].mxu0 %v457
  %v501 = vpop.f32.mrb[0].mxu0
  %v502 = vadd.f32 0.0, %v501
  %v503 = vpop.f32.mrb[0].mxu0
  %v504 = vpop.f32.mrb[0].mxu0
  %v505 = vadd.f32 0.0, %v504
  %v506 = vpop.f32.mrb[0].mxu0
  %507 = vdwg.mxu0
  %v512 = vunpack.c.l.b16 %v430
  %v513 = vunpack.c.l.b16 %v431
  %v514 = vunpack.c.l.b16 %v432
  %v515 = vunpack.c.l.b16 %v433
  %v516 = vpack.c.b16 %v513, %v512
  %v517 = vpack.c.b16 %v515, %v514
  %v521 = vsel %vm147, %v427, 0
  %v524 = vsel %vm147, %v428, 0
  %526 = vmatprep.subr.bf16.mxu0 0
  %527 = vmatpush1.bf16.msra.mxu0 %v516
  %528 = vmatprep.subr.bf16.mxu0 0
  %529 = vmatpush1.bf16.msra.mxu0 %v517
  %530 = vmatprep.subr.bf16.mxu0 0
  %531 = vmatpush1.bf16.msra.mxu0 0
  %532 = vmatprep.subr.bf16.mxu0 0
  %533 = vmatpush1.bf16.msra.mxu0 0
  %534 = vmatprep.subr.bf16.mxu0 0
  %535 = vmatpush1.bf16.msra.mxu0 0
  %536 = vmatprep.subr.bf16.mxu0 0
  %537 = vmatpush1.bf16.msra.mxu0 0
  %538 = vmatprep.subr.bf16.mxu0 0
  %539 = vmatpush1.bf16.msra.mxu0 0
  %540 = vmatprep.subr.bf16.mxu0 0
  %541 = vmatpush1.bf16.msra.mxu0 0
  %542 = vmatprep.subr.bf16.mxu0 0
  %543 = vmatpush1.bf16.msra.mxu0 0
  %544 = vmatprep.subr.bf16.mxu0 0
  %545 = vmatpush1.bf16.msra.mxu0 0
  %546 = vmatprep.subr.bf16.mxu0 0
  %547 = vmatpush1.bf16.msra.mxu0 0
  %548 = vmatprep.subr.bf16.mxu0 0
  %549 = vmatpush1.bf16.msra.mxu0 0
  %550 = vmatprep.subr.bf16.mxu0 0
  %551 = vmatpush1.bf16.msra.mxu0 0
  %552 = vmatprep.subr.bf16.mxu0 0
  %553 = vmatpush1.bf16.msra.mxu0 0
  %554 = vmatprep.subr.bf16.mxu0 0
  %555 = vmatpush1.bf16.msra.mxu0 0
  %556 = vmatprep.subr.bf16.mxu0 0
  %557 = vmatpush1.bf16.msra.mxu0 0
  %558 = vmatprep.mubr.bf16.mxu0 0
  %559 = vmatmul.mubr.bf16.gmra.mrb[0].mxu0 %v521
  %v560 = vpop.f32.mrb[0].mxu0
  %v561 = vadd.f32 %v494, %v560
  %v562 = vpop.f32.mrb[0].mxu0
  %v563 = vpop.f32.mrb[0].mxu0
  %v564 = vadd.f32 %v497, %v563
  %v565 = vpop.f32.mrb[0].mxu0
  %566 = vmatprep.mubr.bf16.mxu0 0
  %567 = vmatmul.mubr.bf16.gmra.mrb[0].mxu0 %v524
  %v568 = vpop.f32.mrb[0].mxu0
  %v569 = vadd.f32 %v502, %v568
  %v570 = vpop.f32.mrb[0].mxu0
  %v571 = vpop.f32.mrb[0].mxu0
  %v572 = vadd.f32 %v505, %v571
  %v573 = vpop.f32.mrb[0].mxu0
  %574 = vdwg.mxu0
  %v575 = vpack.c.bf16 %v424, %v423
  %v576 = vpack.c.bf16 %v426, %v425
  %s577 = scalar_lea.vmem %s1, 80
  %v578 = vld [vmem:[%s577] sm:$0xf]
  %v579 = vld [vmem:[%s577 + $0x4] sm:$0xf]
  %v580 = vld [vmem:[%s577 + $0x8] sm:$0xf]
  %v581 = vld [vmem:[%s577 + $0xc] sm:$0xf]
  %v586 = vunpack.c.l.b16 %v578
  %v587 = vunpack.c.l.b16 %v579
  %v588 = vunpack.c.l.b16 %v580
  %v589 = vunpack.c.l.b16 %v581
  %v590 = vpack.c.b16 %v587, %v586
  %v591 = vpack.c.b16 %v589, %v588
  %v595 = vsel %vm147, %v575, 0
  %v598 = vsel %vm147, %v576, 0
  %600 = vmatprep.subr.bf16.mxu0 0
  %601 = vmatpush1.bf16.msra.mxu0 %v590
  %602 = vmatprep.subr.bf16.mxu0 0
  %603 = vmatpush1.bf16.msra.mxu0 %v591
  %604 = vmatprep.subr.bf16.mxu0 0
  %605 = vmatpush1.bf16.msra.mxu0 0
  %606 = vmatprep.subr.bf16.mxu0 0
  %607 = vmatpush1.bf16.msra.mxu0 0
  %608 = vmatprep.subr.bf16.mxu0 0
  %609 = vmatpush1.bf16.msra.mxu0 0
  %610 = vmatprep.subr.bf16.mxu0 0
  %611 = vmatpush1.bf16.msra.mxu0 0
  %612 = vmatprep.subr.bf16.mxu0 0
  %613 = vmatpush1.bf16.msra.mxu0 0
  %614 = vmatprep.subr.bf16.mxu0 0
  %615 = vmatpush1.bf16.msra.mxu0 0
  %616 = vmatprep.subr.bf16.mxu0 0
  %617 = vmatpush1.bf16.msra.mxu0 0
  %618 = vmatprep.subr.bf16.mxu0 0
  %619 = vmatpush1.bf16.msra.mxu0 0
  %620 = vmatprep.subr.bf16.mxu0 0
  %621 = vmatpush1.bf16.msra.mxu0 0
  %622 = vmatprep.subr.bf16.mxu0 0
  %623 = vmatpush1.bf16.msra.mxu0 0
  %624 = vmatprep.subr.bf16.mxu0 0
  %625 = vmatpush1.bf16.msra.mxu0 0
  %626 = vmatprep.subr.bf16.mxu0 0
  %627 = vmatpush1.bf16.msra.mxu0 0
  %628 = vmatprep.subr.bf16.mxu0 0
  %629 = vmatpush1.bf16.msra.mxu0 0
  %630 = vmatprep.subr.bf16.mxu0 0
  %631 = vmatpush1.bf16.msra.mxu0 0
  %632 = vmatprep.mubr.bf16.mxu0 0
  %633 = vmatmul.mubr.bf16.gmra.mrb[0].mxu0 %v595
  %v634 = vpop.f32.mrb[0].mxu0
  %v635 = vadd.f32 0.0, %v634
  %v636 = vpop.f32.mrb[0].mxu0
  %v637 = vpop.f32.mrb[0].mxu0
  %v638 = vadd.f32 0.0, %v637
  %v639 = vpop.f32.mrb[0].mxu0
  %640 = vmatprep.mubr.bf16.mxu0 0
  %641 = vmatmul.mubr.bf16.gmra.mrb[0].mxu0 %v598
  %v642 = vpop.f32.mrb[0].mxu0
  %v643 = vadd.f32 0.0, %v642
  %v644 = vpop.f32.mrb[0].mxu0
  %v645 = vpop.f32.mrb[0].mxu0
  %v646 = vadd.f32 0.0, %v645
  %v647 = vpop.f32.mrb[0].mxu0
  %648 = vdwg.mxu0
  %v649 = vadd.f32 %v561, %v635
  %v650 = vadd.f32 %v564, %v638
  %v651 = vadd.f32 %v569, %v643
  %v652 = vadd.f32 %v572, %v646
  %s653 = scalar_lea.vmem %s2, 2
  %v654 = vld [vmem:[%s653] sm:$0x3]
  %v655 = vadd.f32 %v649, %v650
  %v656 = vadd.f32 %v655, %v651
  %v657 = vadd.f32 %v656, %v652
  %v658 = vrot.slane %v657, 4
  %v659 = vadd.f32 %v657, %v658
  %v660 = vrot.slane %v659, 2
  %v661 = vadd.f32 %v659, %v660
  %v662 = vrot.slane %v661, 1
  %v663 = vadd.f32 %v661, %v662
  %v664 = vmul.f32 %v663, 0.03125
  %v665 = vmul.f32 %v649, %v649
  %v666 = vmul.f32 %v650, %v650
  %v667 = vmul.f32 %v651, %v651
  %v668 = vmul.f32 %v652, %v652
  %v669 = vadd.f32 %v665, %v666
  %v670 = vadd.f32 %v669, %v667
  %v671 = vadd.f32 %v670, %v668
  %v672 = vrot.slane %v671, 4
  %v673 = vadd.f32 %v671, %v672
  %v674 = vrot.slane %v673, 2
  %v675 = vadd.f32 %v673, %v674
  %v676 = vrot.slane %v675, 1
  %v677 = vadd.f32 %v675, %v676
  %v678 = vmul.f32 %v677, 0.03125
  %v679 = vmul.f32 %v664, %v664
  %v680 = vsub.f32 %v678, %v679
  %v681 = vadd.f32 %v680, 1e-05
  %v682 = vrsqrt.pop %v681
  %v683 = vmul.f32 %v654, %v682
  %v684 = vmul.f32 %v664, %v683
  %v686 = vrot.slane %v684, 7
  %v688 = vsub.f32 %v654, %v686
  %v689 = vlaneseq
  %v690 = vshrl.u32 %v689, 7
  %v691 = vsub.s32 0, %v690
  %v692 = vrot.slane %v683, %v691
  %v693 = vmul.f32 %v649, %v692
  %v694 = vmul.f32 %v650, %v692
  %v695 = vmul.f32 %v651, %v692
  %v696 = vmul.f32 %v652, %v692
  %v697 = vlaneseq
  %v698 = vshrl.u32 %v697, 7
  %v699 = vsub.s32 1, %v698
  %v700 = vrot.slane %v688, %v699
  %v701 = vadd.f32 %v693, %v700
  %v702 = vadd.f32 %v694, %v700
  %v703 = vadd.f32 %v695, %v700
  %v704 = vadd.f32 %v696, %v700
  %v705 = vmax.f32 %v701, 0.0
  %v706 = vmax.f32 %v702, 0.0
  %v707 = vmax.f32 %v703, 0.0
  %v708 = vmax.f32 %v704, 0.0
  %v709 = vrot.slane %v705, 7
  %v710 = vrot.slane %v706, 7
  %v711 = vrot.slane %v707, 7
  %v712 = vrot.slane %v708, 7
  %v713 = vsel %vm100, %v711, %v712
  %v714 = vsel %vm100, %v710, %v711
  %v715 = vsel %vm100, %v709, %v710
  %v716 = vsel %vm100, %v712, %v709
  %v717 = vmul.f32 %v716, %v76
  %v718 = vmul.f32 %v715, %v77
  %v719 = vmul.f32 %v714, %v78
  %v720 = vmul.f32 %v713, %v79
  %v721 = vrot.slane %v705, 1
  %v722 = vrot.slane %v706, 1
  %v723 = vrot.slane %v707, 1
  %v724 = vrot.slane %v708, 1
  %v725 = vsel %vm113, %v723, %v724
  %v726 = vsel %vm113, %v722, %v723
  %v727 = vsel %vm113, %v721, %v722
  %v728 = vsel %vm113, %v724, %v721
  %v729 = vmul.f32 %v727, %v88
  %v730 = vmul.f32 %v726, %v89
  %v731 = vmul.f32 %v725, %v90
  %v732 = vmul.f32 %v728, %v91
  %v733 = vpack.c.bf16 %v718, %v717
  %v734 = vpack.c.bf16 %v720, %v719
  %s735 = scalar_lea.vmem %s1, 96
  %v736 = vld [vmem:[%s735] sm:$0xf]
  %v737 = vld [vmem:[%s735 + $0x4] sm:$0xf]
  %v738 = vld [vmem:[%s735 + $0x8] sm:$0xf]
  %v739 = vld [vmem:[%s735 + $0xc] sm:$0xf]
  %v740 = vpack.c.bf16 %v706, %v705
  %v741 = vpack.c.bf16 %v708, %v707
  %s742 = scalar_lea.vmem %s1, 112
  %v743 = vld [vmem:[%s742] sm:$0xf]
  %v744 = vld [vmem:[%s742 + $0x4] sm:$0xf]
  %v745 = vld [vmem:[%s742 + $0x8] sm:$0xf]
  %v746 = vld [vmem:[%s742 + $0xc] sm:$0xf]
  %v751 = vunpack.c.l.b16 %v743
  %v752 = vunpack.c.l.b16 %v744
  %v753 = vunpack.c.l.b16 %v745
  %v754 = vunpack.c.l.b16 %v746
  %v755 = vpack.c.b16 %v752, %v751
  %v756 = vpack.c.b16 %v754, %v753
  %v760 = vsel %vm147, %v740, 0
  %v763 = vsel %vm147, %v741, 0
  %765 = vmatprep.subr.bf16.mxu0 0
  %766 = vmatpush1.bf16.msra.mxu0 %v755
  %767 = vmatprep.subr.bf16.mxu0 0
  %768 = vmatpush1.bf16.msra.mxu0 %v756
  %769 = vmatprep.subr.bf16.mxu0 0
  %770 = vmatpush1.bf16.msra.mxu0 0
  %771 = vmatprep.subr.bf16.mxu0 0
  %772 = vmatpush1.bf16.msra.mxu0 0
  %773 = vmatprep.subr.bf16.mxu0 0
  %774 = vmatpush1.bf16.msra.mxu0 0
  %775 = vmatprep.subr.bf16.mxu0 0
  %776 = vmatpush1.bf16.msra.mxu0 0
  %777 = vmatprep.subr.bf16.mxu0 0
  %778 = vmatpush1.bf16.msra.mxu0 0
  %779 = vmatprep.subr.bf16.mxu0 0
  %780 = vmatpush1.bf16.msra.mxu0 0
  %781 = vmatprep.subr.bf16.mxu0 0
  %782 = vmatpush1.bf16.msra.mxu0 0
  %783 = vmatprep.subr.bf16.mxu0 0
  %784 = vmatpush1.bf16.msra.mxu0 0
  %785 = vmatprep.subr.bf16.mxu0 0
  %786 = vmatpush1.bf16.msra.mxu0 0
  %787 = vmatprep.subr.bf16.mxu0 0
  %788 = vmatpush1.bf16.msra.mxu0 0
  %789 = vmatprep.subr.bf16.mxu0 0
  %790 = vmatpush1.bf16.msra.mxu0 0
  %791 = vmatprep.subr.bf16.mxu0 0
  %792 = vmatpush1.bf16.msra.mxu0 0
  %793 = vmatprep.subr.bf16.mxu0 0
  %794 = vmatpush1.bf16.msra.mxu0 0
  %795 = vmatprep.subr.bf16.mxu0 0
  %796 = vmatpush1.bf16.msra.mxu0 0
  %797 = vmatprep.mubr.bf16.mxu0 0
  %798 = vmatmul.mubr.bf16.gmra.mrb[0].mxu0 %v760
  %v799 = vpop.f32.mrb[0].mxu0
  %v800 = vadd.f32 0.0, %v799
  %v801 = vpop.f32.mrb[0].mxu0
  %v802 = vpop.f32.mrb[0].mxu0
  %v803 = vadd.f32 0.0, %v802
  %v804 = vpop.f32.mrb[0].mxu0
  %805 = vmatprep.mubr.bf16.mxu0 0
  %806 = vmatmul.mubr.bf16.gmra.mrb[0].mxu0 %v763
  %v807 = vpop.f32.mrb[0].mxu0
  %v808 = vadd.f32 0.0, %v807
  %v809 = vpop.f32.mrb[0].mxu0
  %v810 = vpop.f32.mrb[0].mxu0
  %v811 = vadd.f32 0.0, %v810
  %v812 = vpop.f32.mrb[0].mxu0
  %813 = vdwg.mxu0
  %v818 = vunpack.c.l.b16 %v736
  %v819 = vunpack.c.l.b16 %v737
  %v820 = vunpack.c.l.b16 %v738
  %v821 = vunpack.c.l.b16 %v739
  %v822 = vpack.c.b16 %v819, %v818
  %v823 = vpack.c.b16 %v821, %v820
  %v827 = vsel %vm147, %v733, 0
  %v830 = vsel %vm147, %v734, 0
  %832 = vmatprep.subr.bf16.mxu0 0
  %833 = vmatpush1.bf16.msra.mxu0 %v822
  %834 = vmatprep.subr.bf16.mxu0 0
  %835 = vmatpush1.bf16.msra.mxu0 %v823
  %836 = vmatprep.subr.bf16.mxu0 0
  %837 = vmatpush1.bf16.msra.mxu0 0
  %838 = vmatprep.subr.bf16.mxu0 0
  %839 = vmatpush1.bf16.msra.mxu0 0
  %840 = vmatprep.subr.bf16.mxu0 0
  %841 = vmatpush1.bf16.msra.mxu0 0
  %842 = vmatprep.subr.bf16.mxu0 0
  %843 = vmatpush1.bf16.msra.mxu0 0
  %844 = vmatprep.subr.bf16.mxu0 0
  %845 = vmatpush1.bf16.msra.mxu0 0
  %846 = vmatprep.subr.bf16.mxu0 0
  %847 = vmatpush1.bf16.msra.mxu0 0
  %848 = vmatprep.subr.bf16.mxu0 0
  %849 = vmatpush1.bf16.msra.mxu0 0
  %850 = vmatprep.subr.bf16.mxu0 0
  %851 = vmatpush1.bf16.msra.mxu0 0
  %852 = vmatprep.subr.bf16.mxu0 0
  %853 = vmatpush1.bf16.msra.mxu0 0
  %854 = vmatprep.subr.bf16.mxu0 0
  %855 = vmatpush1.bf16.msra.mxu0 0
  %856 = vmatprep.subr.bf16.mxu0 0
  %857 = vmatpush1.bf16.msra.mxu0 0
  %858 = vmatprep.subr.bf16.mxu0 0
  %859 = vmatpush1.bf16.msra.mxu0 0
  %860 = vmatprep.subr.bf16.mxu0 0
  %861 = vmatpush1.bf16.msra.mxu0 0
  %862 = vmatprep.subr.bf16.mxu0 0
  %863 = vmatpush1.bf16.msra.mxu0 0
  %864 = vmatprep.mubr.bf16.mxu0 0
  %865 = vmatmul.mubr.bf16.gmra.mrb[0].mxu0 %v827
  %v866 = vpop.f32.mrb[0].mxu0
  %v867 = vadd.f32 %v800, %v866
  %v868 = vpop.f32.mrb[0].mxu0
  %v869 = vpop.f32.mrb[0].mxu0
  %v870 = vadd.f32 %v803, %v869
  %v871 = vpop.f32.mrb[0].mxu0
  %872 = vmatprep.mubr.bf16.mxu0 0
  %873 = vmatmul.mubr.bf16.gmra.mrb[0].mxu0 %v830
  %v874 = vpop.f32.mrb[0].mxu0
  %v875 = vadd.f32 %v808, %v874
  %v876 = vpop.f32.mrb[0].mxu0
  %v877 = vpop.f32.mrb[0].mxu0
  %v878 = vadd.f32 %v811, %v877
  %v879 = vpop.f32.mrb[0].mxu0
  %880 = vdwg.mxu0
  %v881 = vpack.c.bf16 %v730, %v729
  %v882 = vpack.c.bf16 %v732, %v731
  %s883 = scalar_lea.vmem %s1, 128
  %v884 = vld [vmem:[%s883] sm:$0xf]
  %v885 = vld [vmem:[%s883 + $0x4] sm:$0xf]
  %v886 = vld [vmem:[%s883 + $0x8] sm:$0xf]
  %v887 = vld [vmem:[%s883 + $0xc] sm:$0xf]
  %v892 = vunpack.c.l.b16 %v884
  %v893 = vunpack.c.l.b16 %v885
  %v894 = vunpack.c.l.b16 %v886
  %v895 = vunpack.c.l.b16 %v887
  %v896 = vpack.c.b16 %v893, %v892
  %v897 = vpack.c.b16 %v895, %v894
  %v901 = vsel %vm147, %v881, 0
  %v904 = vsel %vm147, %v882, 0
  %906 = vmatprep.subr.bf16.mxu0 0
  %907 = vmatpush1.bf16.msra.mxu0 %v896
  %908 = vmatprep.subr.bf16.mxu0 0
  %909 = vmatpush1.bf16.msra.mxu0 %v897
  %910 = vmatprep.subr.bf16.mxu0 0
  %911 = vmatpush1.bf16.msra.mxu0 0
  %912 = vmatprep.subr.bf16.mxu0 0
  %913 = vmatpush1.bf16.msra.mxu0 0
  %914 = vmatprep.subr.bf16.mxu0 0
  %915 = vmatpush1.bf16.msra.mxu0 0
  %916 = vmatprep.subr.bf16.mxu0 0
  %917 = vmatpush1.bf16.msra.mxu0 0
  %918 = vmatprep.subr.bf16.mxu0 0
  %919 = vmatpush1.bf16.msra.mxu0 0
  %920 = vmatprep.subr.bf16.mxu0 0
  %921 = vmatpush1.bf16.msra.mxu0 0
  %922 = vmatprep.subr.bf16.mxu0 0
  %923 = vmatpush1.bf16.msra.mxu0 0
  %924 = vmatprep.subr.bf16.mxu0 0
  %925 = vmatpush1.bf16.msra.mxu0 0
  %926 = vmatprep.subr.bf16.mxu0 0
  %927 = vmatpush1.bf16.msra.mxu0 0
  %928 = vmatprep.subr.bf16.mxu0 0
  %929 = vmatpush1.bf16.msra.mxu0 0
  %930 = vmatprep.subr.bf16.mxu0 0
  %931 = vmatpush1.bf16.msra.mxu0 0
  %932 = vmatprep.subr.bf16.mxu0 0
  %933 = vmatpush1.bf16.msra.mxu0 0
  %934 = vmatprep.subr.bf16.mxu0 0
  %935 = vmatpush1.bf16.msra.mxu0 0
  %936 = vmatprep.subr.bf16.mxu0 0
  %937 = vmatpush1.bf16.msra.mxu0 0
  %938 = vmatprep.mubr.bf16.mxu0 0
  %939 = vmatmul.mubr.bf16.gmra.mrb[0].mxu0 %v901
  %v940 = vpop.f32.mrb[0].mxu0
  %v941 = vadd.f32 0.0, %v940
  %v942 = vpop.f32.mrb[0].mxu0
  %v943 = vpop.f32.mrb[0].mxu0
  %v944 = vadd.f32 0.0, %v943
  %v945 = vpop.f32.mrb[0].mxu0
  %946 = vmatprep.mubr.bf16.mxu0 0
  %947 = vmatmul.mubr.bf16.gmra.mrb[0].mxu0 %v904
  %v948 = vpop.f32.mrb[0].mxu0
  %v949 = vadd.f32 0.0, %v948
  %v950 = vpop.f32.mrb[0].mxu0
  %v951 = vpop.f32.mrb[0].mxu0
  %v952 = vadd.f32 0.0, %v951
  %v953 = vpop.f32.mrb[0].mxu0
  %954 = vdwg.mxu0
  %v955 = vadd.f32 %v867, %v941
  %v956 = vadd.f32 %v870, %v944
  %v957 = vadd.f32 %v875, %v949
  %v958 = vadd.f32 %v878, %v952
  %s959 = scalar_lea.vmem %s2, 4
  %v960 = vld [vmem:[%s959] sm:$0x3]
  %v961 = vadd.f32 %v955, %v956
  %v962 = vadd.f32 %v961, %v957
  %v963 = vadd.f32 %v962, %v958
  %v964 = vrot.slane %v963, 4
  %v965 = vadd.f32 %v963, %v964
  %v966 = vrot.slane %v965, 2
  %v967 = vadd.f32 %v965, %v966
  %v968 = vrot.slane %v967, 1
  %v969 = vadd.f32 %v967, %v968
  %v970 = vmul.f32 %v969, 0.03125
  %v971 = vmul.f32 %v955, %v955
  %v972 = vmul.f32 %v956, %v956
  %v973 = vmul.f32 %v957, %v957
  %v974 = vmul.f32 %v958, %v958
  %v975 = vadd.f32 %v971, %v972
  %v976 = vadd.f32 %v975, %v973
  %v977 = vadd.f32 %v976, %v974
  %v978 = vrot.slane %v977, 4
  %v979 = vadd.f32 %v977, %v978
  %v980 = vrot.slane %v979, 2
  %v981 = vadd.f32 %v979, %v980
  %v982 = vrot.slane %v981, 1
  %v983 = vadd.f32 %v981, %v982
  %v984 = vmul.f32 %v983, 0.03125
  %v985 = vmul.f32 %v970, %v970
  %v986 = vsub.f32 %v984, %v985
  %v987 = vadd.f32 %v986, 1e-05
  %v988 = vrsqrt.pop %v987
  %v989 = vmul.f32 %v960, %v988
  %v990 = vmul.f32 %v970, %v989
  %v992 = vrot.slane %v990, 7
  %v994 = vsub.f32 %v960, %v992
  %v995 = vlaneseq
  %v996 = vshrl.u32 %v995, 7
  %v997 = vsub.s32 0, %v996
  %v998 = vrot.slane %v989, %v997
  %v999 = vmul.f32 %v955, %v998
  %v1000 = vmul.f32 %v956, %v998
  %v1001 = vmul.f32 %v957, %v998
  %v1002 = vmul.f32 %v958, %v998
  %v1003 = vlaneseq
  %v1004 = vshrl.u32 %v1003, 7
  %v1005 = vsub.s32 1, %v1004
  %v1006 = vrot.slane %v994, %v1005
  %v1007 = vadd.f32 %v999, %v1006
  %v1008 = vadd.f32 %v1000, %v1006
  %v1009 = vadd.f32 %v1001, %v1006
  %v1010 = vadd.f32 %v1002, %v1006
  %v1011 = vmax.f32 %v1007, 0.0
  %v1012 = vmax.f32 %v1008, 0.0
  %v1013 = vmax.f32 %v1009, 0.0
  %v1014 = vmax.f32 %v1010, 0.0
  %v1015 = vrot.slane %v1011, 7
  %v1016 = vrot.slane %v1012, 7
  %v1017 = vrot.slane %v1013, 7
  %v1018 = vrot.slane %v1014, 7
  %v1019 = vsel %vm100, %v1017, %v1018
  %v1020 = vsel %vm100, %v1016, %v1017
  %v1021 = vsel %vm100, %v1015, %v1016
  %v1022 = vsel %vm100, %v1018, %v1015
  %v1023 = vmul.f32 %v1022, %v76
  %v1024 = vmul.f32 %v1021, %v77
  %v1025 = vmul.f32 %v1020, %v78
  %v1026 = vmul.f32 %v1019, %v79
  %v1027 = vrot.slane %v1011, 1
  %v1028 = vrot.slane %v1012, 1
  %v1029 = vrot.slane %v1013, 1
  %v1030 = vrot.slane %v1014, 1
  %v1031 = vsel %vm113, %v1029, %v1030
  %v1032 = vsel %vm113, %v1028, %v1029
  %v1033 = vsel %vm113, %v1027, %v1028
  %v1034 = vsel %vm113, %v1030, %v1027
  %v1035 = vmul.f32 %v1033, %v88
  %v1036 = vmul.f32 %v1032, %v89
  %v1037 = vmul.f32 %v1031, %v90
  %v1038 = vmul.f32 %v1034, %v91
  %v1039 = vpack.c.bf16 %v1024, %v1023
  %v1040 = vpack.c.bf16 %v1026, %v1025
  %s1041 = scalar_lea.vmem %s1, 144
  %v1042 = vld [vmem:[%s1041] sm:$0xf]
  %v1043 = vld [vmem:[%s1041 + $0x4] sm:$0xf]
  %v1044 = vld [vmem:[%s1041 + $0x8] sm:$0xf]
  %v1045 = vld [vmem:[%s1041 + $0xc] sm:$0xf]
  %v1046 = vpack.c.bf16 %v1012, %v1011
  %v1047 = vpack.c.bf16 %v1014, %v1013
  %s1048 = scalar_lea.vmem %s1, 160
  %v1049 = vld [vmem:[%s1048] sm:$0xf]
  %v1050 = vld [vmem:[%s1048 + $0x4] sm:$0xf]
  %v1051 = vld [vmem:[%s1048 + $0x8] sm:$0xf]
  %v1052 = vld [vmem:[%s1048 + $0xc] sm:$0xf]
  %v1057 = vunpack.c.l.b16 %v1049
  %v1058 = vunpack.c.l.b16 %v1050
  %v1059 = vunpack.c.l.b16 %v1051
  %v1060 = vunpack.c.l.b16 %v1052
  %v1061 = vpack.c.b16 %v1058, %v1057
  %v1062 = vpack.c.b16 %v1060, %v1059
  %v1066 = vsel %vm147, %v1046, 0
  %v1069 = vsel %vm147, %v1047, 0
  %1071 = vmatprep.subr.bf16.mxu0 0
  %1072 = vmatpush1.bf16.msra.mxu0 %v1061
  %1073 = vmatprep.subr.bf16.mxu0 0
  %1074 = vmatpush1.bf16.msra.mxu0 %v1062
  %1075 = vmatprep.subr.bf16.mxu0 0
  %1076 = vmatpush1.bf16.msra.mxu0 0
  %1077 = vmatprep.subr.bf16.mxu0 0
  %1078 = vmatpush1.bf16.msra.mxu0 0
  %1079 = vmatprep.subr.bf16.mxu0 0
  %1080 = vmatpush1.bf16.msra.mxu0 0
  %1081 = vmatprep.subr.bf16.mxu0 0
  %1082 = vmatpush1.bf16.msra.mxu0 0
  %1083 = vmatprep.subr.bf16.mxu0 0
  %1084 = vmatpush1.bf16.msra.mxu0 0
  %1085 = vmatprep.subr.bf16.mxu0 0
  %1086 = vmatpush1.bf16.msra.mxu0 0
  %1087 = vmatprep.subr.bf16.mxu0 0
  %1088 = vmatpush1.bf16.msra.mxu0 0
  %1089 = vmatprep.subr.bf16.mxu0 0
  %1090 = vmatpush1.bf16.msra.mxu0 0
  %1091 = vmatprep.subr.bf16.mxu0 0
  %1092 = vmatpush1.bf16.msra.mxu0 0
  %1093 = vmatprep.subr.bf16.mxu0 0
  %1094 = vmatpush1.bf16.msra.mxu0 0
  %1095 = vmatprep.subr.bf16.mxu0 0
  %1096 = vmatpush1.bf16.msra.mxu0 0
  %1097 = vmatprep.subr.bf16.mxu0 0
  %1098 = vmatpush1.bf16.msra.mxu0 0
  %1099 = vmatprep.subr.bf16.mxu0 0
  %1100 = vmatpush1.bf16.msra.mxu0 0
  %1101 = vmatprep.subr.bf16.mxu0 0
  %1102 = vmatpush1.bf16.msra.mxu0 0
  %1103 = vmatprep.mubr.bf16.mxu0 0
  %1104 = vmatmul.mubr.bf16.gmra.mrb[0].mxu0 %v1066
  %v1105 = vpop.f32.mrb[0].mxu0
  %v1106 = vadd.f32 0.0, %v1105
  %v1107 = vpop.f32.mrb[0].mxu0
  %v1108 = vpop.f32.mrb[0].mxu0
  %v1109 = vadd.f32 0.0, %v1108
  %v1110 = vpop.f32.mrb[0].mxu0
  %1111 = vmatprep.mubr.bf16.mxu0 0
  %1112 = vmatmul.mubr.bf16.gmra.mrb[0].mxu0 %v1069
  %v1113 = vpop.f32.mrb[0].mxu0
  %v1114 = vadd.f32 0.0, %v1113
  %v1115 = vpop.f32.mrb[0].mxu0
  %v1116 = vpop.f32.mrb[0].mxu0
  %v1117 = vadd.f32 0.0, %v1116
  %v1118 = vpop.f32.mrb[0].mxu0
  %1119 = vdwg.mxu0
  %v1124 = vunpack.c.l.b16 %v1042
  %v1125 = vunpack.c.l.b16 %v1043
  %v1126 = vunpack.c.l.b16 %v1044
  %v1127 = vunpack.c.l.b16 %v1045
  %v1128 = vpack.c.b16 %v1125, %v1124
  %v1129 = vpack.c.b16 %v1127, %v1126
  %v1133 = vsel %vm147, %v1039, 0
  %v1136 = vsel %vm147, %v1040, 0
  %1138 = vmatprep.subr.bf16.mxu0 0
  %1139 = vmatpush1.bf16.msra.mxu0 %v1128
  %1140 = vmatprep.subr.bf16.mxu0 0
  %1141 = vmatpush1.bf16.msra.mxu0 %v1129
  %1142 = vmatprep.subr.bf16.mxu0 0
  %1143 = vmatpush1.bf16.msra.mxu0 0
  %1144 = vmatprep.subr.bf16.mxu0 0
  %1145 = vmatpush1.bf16.msra.mxu0 0
  %1146 = vmatprep.subr.bf16.mxu0 0
  %1147 = vmatpush1.bf16.msra.mxu0 0
  %1148 = vmatprep.subr.bf16.mxu0 0
  %1149 = vmatpush1.bf16.msra.mxu0 0
  %1150 = vmatprep.subr.bf16.mxu0 0
  %1151 = vmatpush1.bf16.msra.mxu0 0
  %1152 = vmatprep.subr.bf16.mxu0 0
  %1153 = vmatpush1.bf16.msra.mxu0 0
  %1154 = vmatprep.subr.bf16.mxu0 0
  %1155 = vmatpush1.bf16.msra.mxu0 0
  %1156 = vmatprep.subr.bf16.mxu0 0
  %1157 = vmatpush1.bf16.msra.mxu0 0
  %1158 = vmatprep.subr.bf16.mxu0 0
  %1159 = vmatpush1.bf16.msra.mxu0 0
  %1160 = vmatprep.subr.bf16.mxu0 0
  %1161 = vmatpush1.bf16.msra.mxu0 0
  %1162 = vmatprep.subr.bf16.mxu0 0
  %1163 = vmatpush1.bf16.msra.mxu0 0
  %1164 = vmatprep.subr.bf16.mxu0 0
  %1165 = vmatpush1.bf16.msra.mxu0 0
  %1166 = vmatprep.subr.bf16.mxu0 0
  %1167 = vmatpush1.bf16.msra.mxu0 0
  %1168 = vmatprep.subr.bf16.mxu0 0
  %1169 = vmatpush1.bf16.msra.mxu0 0
  %1170 = vmatprep.mubr.bf16.mxu0 0
  %1171 = vmatmul.mubr.bf16.gmra.mrb[0].mxu0 %v1133
  %v1172 = vpop.f32.mrb[0].mxu0
  %v1173 = vadd.f32 %v1106, %v1172
  %v1174 = vpop.f32.mrb[0].mxu0
  %v1175 = vpop.f32.mrb[0].mxu0
  %v1176 = vadd.f32 %v1109, %v1175
  %v1177 = vpop.f32.mrb[0].mxu0
  %1178 = vmatprep.mubr.bf16.mxu0 0
  %1179 = vmatmul.mubr.bf16.gmra.mrb[0].mxu0 %v1136
  %v1180 = vpop.f32.mrb[0].mxu0
  %v1181 = vadd.f32 %v1114, %v1180
  %v1182 = vpop.f32.mrb[0].mxu0
  %v1183 = vpop.f32.mrb[0].mxu0
  %v1184 = vadd.f32 %v1117, %v1183
  %v1185 = vpop.f32.mrb[0].mxu0
  %1186 = vdwg.mxu0
  %v1187 = vpack.c.bf16 %v1036, %v1035
  %v1188 = vpack.c.bf16 %v1038, %v1037
  %s1189 = scalar_lea.vmem %s1, 176
  %v1190 = vld [vmem:[%s1189] sm:$0xf]
  %v1191 = vld [vmem:[%s1189 + $0x4] sm:$0xf]
  %v1192 = vld [vmem:[%s1189 + $0x8] sm:$0xf]
  %v1193 = vld [vmem:[%s1189 + $0xc] sm:$0xf]
  %v1198 = vunpack.c.l.b16 %v1190
  %v1199 = vunpack.c.l.b16 %v1191
  %v1200 = vunpack.c.l.b16 %v1192
  %v1201 = vunpack.c.l.b16 %v1193
  %v1202 = vpack.c.b16 %v1199, %v1198
  %v1203 = vpack.c.b16 %v1201, %v1200
  %v1207 = vsel %vm147, %v1187, 0
  %v1210 = vsel %vm147, %v1188, 0
  %1212 = vmatprep.subr.bf16.mxu0 0
  %1213 = vmatpush1.bf16.msra.mxu0 %v1202
  %1214 = vmatprep.subr.bf16.mxu0 0
  %1215 = vmatpush1.bf16.msra.mxu0 %v1203
  %1216 = vmatprep.subr.bf16.mxu0 0
  %1217 = vmatpush1.bf16.msra.mxu0 0
  %1218 = vmatprep.subr.bf16.mxu0 0
  %1219 = vmatpush1.bf16.msra.mxu0 0
  %1220 = vmatprep.subr.bf16.mxu0 0
  %1221 = vmatpush1.bf16.msra.mxu0 0
  %1222 = vmatprep.subr.bf16.mxu0 0
  %1223 = vmatpush1.bf16.msra.mxu0 0
  %1224 = vmatprep.subr.bf16.mxu0 0
  %1225 = vmatpush1.bf16.msra.mxu0 0
  %1226 = vmatprep.subr.bf16.mxu0 0
  %1227 = vmatpush1.bf16.msra.mxu0 0
  %1228 = vmatprep.subr.bf16.mxu0 0
  %1229 = vmatpush1.bf16.msra.mxu0 0
  %1230 = vmatprep.subr.bf16.mxu0 0
  %1231 = vmatpush1.bf16.msra.mxu0 0
  %1232 = vmatprep.subr.bf16.mxu0 0
  %1233 = vmatpush1.bf16.msra.mxu0 0
  %1234 = vmatprep.subr.bf16.mxu0 0
  %1235 = vmatpush1.bf16.msra.mxu0 0
  %1236 = vmatprep.subr.bf16.mxu0 0
  %1237 = vmatpush1.bf16.msra.mxu0 0
  %1238 = vmatprep.subr.bf16.mxu0 0
  %1239 = vmatpush1.bf16.msra.mxu0 0
  %1240 = vmatprep.subr.bf16.mxu0 0
  %1241 = vmatpush1.bf16.msra.mxu0 0
  %1242 = vmatprep.subr.bf16.mxu0 0
  %1243 = vmatpush1.bf16.msra.mxu0 0
  %1244 = vmatprep.mubr.bf16.mxu0 0
  %1245 = vmatmul.mubr.bf16.gmra.mrb[0].mxu0 %v1207
  %v1246 = vpop.f32.mrb[0].mxu0
  %v1247 = vadd.f32 0.0, %v1246
  %v1248 = vpop.f32.mrb[0].mxu0
  %v1249 = vpop.f32.mrb[0].mxu0
  %v1250 = vadd.f32 0.0, %v1249
  %v1251 = vpop.f32.mrb[0].mxu0
  %1252 = vmatprep.mubr.bf16.mxu0 0
  %1253 = vmatmul.mubr.bf16.gmra.mrb[0].mxu0 %v1210
  %v1254 = vpop.f32.mrb[0].mxu0
  %v1255 = vadd.f32 0.0, %v1254
  %v1256 = vpop.f32.mrb[0].mxu0
  %v1257 = vpop.f32.mrb[0].mxu0
  %v1258 = vadd.f32 0.0, %v1257
  %v1259 = vpop.f32.mrb[0].mxu0
  %1260 = vdwg.mxu0
  %v1261 = vadd.f32 %v1173, %v1247
  %v1262 = vadd.f32 %v1176, %v1250
  %v1263 = vadd.f32 %v1181, %v1255
  %v1264 = vadd.f32 %v1184, %v1258
  %s1265 = scalar_lea.vmem %s2, 6
  %v1266 = vld [vmem:[%s1265] sm:$0x3]
  %v1267 = vadd.f32 %v1261, %v1262
  %v1268 = vadd.f32 %v1267, %v1263
  %v1269 = vadd.f32 %v1268, %v1264
  %v1270 = vrot.slane %v1269, 4
  %v1271 = vadd.f32 %v1269, %v1270
  %v1272 = vrot.slane %v1271, 2
  %v1273 = vadd.f32 %v1271, %v1272
  %v1274 = vrot.slane %v1273, 1
  %v1275 = vadd.f32 %v1273, %v1274
  %v1276 = vmul.f32 %v1275, 0.03125
  %v1277 = vmul.f32 %v1261, %v1261
  %v1278 = vmul.f32 %v1262, %v1262
  %v1279 = vmul.f32 %v1263, %v1263
  %v1280 = vmul.f32 %v1264, %v1264
  %v1281 = vadd.f32 %v1277, %v1278
  %v1282 = vadd.f32 %v1281, %v1279
  %v1283 = vadd.f32 %v1282, %v1280
  %v1284 = vrot.slane %v1283, 4
  %v1285 = vadd.f32 %v1283, %v1284
  %v1286 = vrot.slane %v1285, 2
  %v1287 = vadd.f32 %v1285, %v1286
  %v1288 = vrot.slane %v1287, 1
  %v1289 = vadd.f32 %v1287, %v1288
  %v1290 = vmul.f32 %v1289, 0.03125
  %v1291 = vmul.f32 %v1276, %v1276
  %v1292 = vsub.f32 %v1290, %v1291
  %v1293 = vadd.f32 %v1292, 1e-05
  %v1294 = vrsqrt.pop %v1293
  %v1295 = vmul.f32 %v1266, %v1294
  %v1296 = vmul.f32 %v1276, %v1295
  %v1298 = vrot.slane %v1296, 7
  %v1300 = vsub.f32 %v1266, %v1298
  %v1301 = vlaneseq
  %v1302 = vshrl.u32 %v1301, 7
  %v1303 = vsub.s32 0, %v1302
  %v1304 = vrot.slane %v1295, %v1303
  %v1305 = vmul.f32 %v1261, %v1304
  %v1306 = vmul.f32 %v1262, %v1304
  %v1307 = vmul.f32 %v1263, %v1304
  %v1308 = vmul.f32 %v1264, %v1304
  %v1309 = vlaneseq
  %v1310 = vshrl.u32 %v1309, 7
  %v1311 = vsub.s32 1, %v1310
  %v1312 = vrot.slane %v1300, %v1311
  %v1313 = vadd.f32 %v1305, %v1312
  %v1314 = vadd.f32 %v1306, %v1312
  %v1315 = vadd.f32 %v1307, %v1312
  %v1316 = vadd.f32 %v1308, %v1312
  %v1317 = vmax.f32 %v1313, 0.0
  %v1318 = vmax.f32 %v1314, 0.0
  %v1319 = vmax.f32 %v1315, 0.0
  %v1320 = vmax.f32 %v1316, 0.0
  %v1321 = vrot.slane %v1317, 7
  %v1322 = vrot.slane %v1318, 7
  %v1323 = vrot.slane %v1319, 7
  %v1324 = vrot.slane %v1320, 7
  %v1325 = vsel %vm100, %v1323, %v1324
  %v1326 = vsel %vm100, %v1322, %v1323
  %v1327 = vsel %vm100, %v1321, %v1322
  %v1328 = vsel %vm100, %v1324, %v1321
  %v1329 = vmul.f32 %v1328, %v76
  %v1330 = vmul.f32 %v1327, %v77
  %v1331 = vmul.f32 %v1326, %v78
  %v1332 = vmul.f32 %v1325, %v79
  %v1333 = vrot.slane %v1317, 1
  %v1334 = vrot.slane %v1318, 1
  %v1335 = vrot.slane %v1319, 1
  %v1336 = vrot.slane %v1320, 1
  %v1337 = vsel %vm113, %v1335, %v1336
  %v1338 = vsel %vm113, %v1334, %v1335
  %v1339 = vsel %vm113, %v1333, %v1334
  %v1340 = vsel %vm113, %v1336, %v1333
  %v1341 = vmul.f32 %v1339, %v88
  %v1342 = vmul.f32 %v1338, %v89
  %v1343 = vmul.f32 %v1337, %v90
  %v1344 = vmul.f32 %v1340, %v91
  %v1345 = vpack.c.bf16 %v1330, %v1329
  %v1346 = vpack.c.bf16 %v1332, %v1331
  %s1347 = scalar_lea.vmem %s1, 192
  %v1348 = vld [vmem:[%s1347] sm:$0xf]
  %v1349 = vld [vmem:[%s1347 + $0x4] sm:$0xf]
  %v1350 = vld [vmem:[%s1347 + $0x8] sm:$0xf]
  %v1351 = vld [vmem:[%s1347 + $0xc] sm:$0xf]
  %v1352 = vpack.c.bf16 %v1318, %v1317
  %v1353 = vpack.c.bf16 %v1320, %v1319
  %s1354 = scalar_lea.vmem %s1, 208
  %v1355 = vld [vmem:[%s1354] sm:$0xf]
  %v1356 = vld [vmem:[%s1354 + $0x4] sm:$0xf]
  %v1357 = vld [vmem:[%s1354 + $0x8] sm:$0xf]
  %v1358 = vld [vmem:[%s1354 + $0xc] sm:$0xf]
  %v1363 = vunpack.c.l.b16 %v1355
  %v1364 = vunpack.c.l.b16 %v1356
  %v1365 = vunpack.c.l.b16 %v1357
  %v1366 = vunpack.c.l.b16 %v1358
  %v1367 = vpack.c.b16 %v1364, %v1363
  %v1368 = vpack.c.b16 %v1366, %v1365
  %v1372 = vsel %vm147, %v1352, 0
  %v1375 = vsel %vm147, %v1353, 0
  %1377 = vmatprep.subr.bf16.mxu0 0
  %1378 = vmatpush1.bf16.msra.mxu0 %v1367
  %1379 = vmatprep.subr.bf16.mxu0 0
  %1380 = vmatpush1.bf16.msra.mxu0 %v1368
  %1381 = vmatprep.subr.bf16.mxu0 0
  %1382 = vmatpush1.bf16.msra.mxu0 0
  %1383 = vmatprep.subr.bf16.mxu0 0
  %1384 = vmatpush1.bf16.msra.mxu0 0
  %1385 = vmatprep.subr.bf16.mxu0 0
  %1386 = vmatpush1.bf16.msra.mxu0 0
  %1387 = vmatprep.subr.bf16.mxu0 0
  %1388 = vmatpush1.bf16.msra.mxu0 0
  %1389 = vmatprep.subr.bf16.mxu0 0
  %1390 = vmatpush1.bf16.msra.mxu0 0
  %1391 = vmatprep.subr.bf16.mxu0 0
  %1392 = vmatpush1.bf16.msra.mxu0 0
  %1393 = vmatprep.subr.bf16.mxu0 0
  %1394 = vmatpush1.bf16.msra.mxu0 0
  %1395 = vmatprep.subr.bf16.mxu0 0
  %1396 = vmatpush1.bf16.msra.mxu0 0
  %1397 = vmatprep.subr.bf16.mxu0 0
  %1398 = vmatpush1.bf16.msra.mxu0 0
  %1399 = vmatprep.subr.bf16.mxu0 0
  %1400 = vmatpush1.bf16.msra.mxu0 0
  %1401 = vmatprep.subr.bf16.mxu0 0
  %1402 = vmatpush1.bf16.msra.mxu0 0
  %1403 = vmatprep.subr.bf16.mxu0 0
  %1404 = vmatpush1.bf16.msra.mxu0 0
  %1405 = vmatprep.subr.bf16.mxu0 0
  %1406 = vmatpush1.bf16.msra.mxu0 0
  %1407 = vmatprep.subr.bf16.mxu0 0
  %1408 = vmatpush1.bf16.msra.mxu0 0
  %1409 = vmatprep.mubr.bf16.mxu0 0
  %1410 = vmatmul.mubr.bf16.gmra.mrb[0].mxu0 %v1372
  %v1411 = vpop.f32.mrb[0].mxu0
  %v1412 = vadd.f32 0.0, %v1411
  %v1413 = vpop.f32.mrb[0].mxu0
  %v1414 = vpop.f32.mrb[0].mxu0
  %v1415 = vadd.f32 0.0, %v1414
  %v1416 = vpop.f32.mrb[0].mxu0
  %1417 = vmatprep.mubr.bf16.mxu0 0
  %1418 = vmatmul.mubr.bf16.gmra.mrb[0].mxu0 %v1375
  %v1419 = vpop.f32.mrb[0].mxu0
  %v1420 = vadd.f32 0.0, %v1419
  %v1421 = vpop.f32.mrb[0].mxu0
  %v1422 = vpop.f32.mrb[0].mxu0
  %v1423 = vadd.f32 0.0, %v1422
  %v1424 = vpop.f32.mrb[0].mxu0
  %1425 = vdwg.mxu0
  %v1430 = vunpack.c.l.b16 %v1348
  %v1431 = vunpack.c.l.b16 %v1349
  %v1432 = vunpack.c.l.b16 %v1350
  %v1433 = vunpack.c.l.b16 %v1351
  %v1434 = vpack.c.b16 %v1431, %v1430
  %v1435 = vpack.c.b16 %v1433, %v1432
  %v1439 = vsel %vm147, %v1345, 0
  %v1442 = vsel %vm147, %v1346, 0
  %1444 = vmatprep.subr.bf16.mxu0 0
  %1445 = vmatpush1.bf16.msra.mxu0 %v1434
  %1446 = vmatprep.subr.bf16.mxu0 0
  %1447 = vmatpush1.bf16.msra.mxu0 %v1435
  %1448 = vmatprep.subr.bf16.mxu0 0
  %1449 = vmatpush1.bf16.msra.mxu0 0
  %1450 = vmatprep.subr.bf16.mxu0 0
  %1451 = vmatpush1.bf16.msra.mxu0 0
  %1452 = vmatprep.subr.bf16.mxu0 0
  %1453 = vmatpush1.bf16.msra.mxu0 0
  %1454 = vmatprep.subr.bf16.mxu0 0
  %1455 = vmatpush1.bf16.msra.mxu0 0
  %1456 = vmatprep.subr.bf16.mxu0 0
  %1457 = vmatpush1.bf16.msra.mxu0 0
  %1458 = vmatprep.subr.bf16.mxu0 0
  %1459 = vmatpush1.bf16.msra.mxu0 0
  %1460 = vmatprep.subr.bf16.mxu0 0
  %1461 = vmatpush1.bf16.msra.mxu0 0
  %1462 = vmatprep.subr.bf16.mxu0 0
  %1463 = vmatpush1.bf16.msra.mxu0 0
  %1464 = vmatprep.subr.bf16.mxu0 0
  %1465 = vmatpush1.bf16.msra.mxu0 0
  %1466 = vmatprep.subr.bf16.mxu0 0
  %1467 = vmatpush1.bf16.msra.mxu0 0
  %1468 = vmatprep.subr.bf16.mxu0 0
  %1469 = vmatpush1.bf16.msra.mxu0 0
  %1470 = vmatprep.subr.bf16.mxu0 0
  %1471 = vmatpush1.bf16.msra.mxu0 0
  %1472 = vmatprep.subr.bf16.mxu0 0
  %1473 = vmatpush1.bf16.msra.mxu0 0
  %1474 = vmatprep.subr.bf16.mxu0 0
  %1475 = vmatpush1.bf16.msra.mxu0 0
  %1476 = vmatprep.mubr.bf16.mxu0 0
  %1477 = vmatmul.mubr.bf16.gmra.mrb[0].mxu0 %v1439
  %v1478 = vpop.f32.mrb[0].mxu0
  %v1479 = vadd.f32 %v1412, %v1478
  %v1480 = vpop.f32.mrb[0].mxu0
  %v1481 = vpop.f32.mrb[0].mxu0
  %v1482 = vadd.f32 %v1415, %v1481
  %v1483 = vpop.f32.mrb[0].mxu0
  %1484 = vmatprep.mubr.bf16.mxu0 0
  %1485 = vmatmul.mubr.bf16.gmra.mrb[0].mxu0 %v1442
  %v1486 = vpop.f32.mrb[0].mxu0
  %v1487 = vadd.f32 %v1420, %v1486
  %v1488 = vpop.f32.mrb[0].mxu0
  %v1489 = vpop.f32.mrb[0].mxu0
  %v1490 = vadd.f32 %v1423, %v1489
  %v1491 = vpop.f32.mrb[0].mxu0
  %1492 = vdwg.mxu0
  %v1493 = vpack.c.bf16 %v1342, %v1341
  %v1494 = vpack.c.bf16 %v1344, %v1343
  %s1495 = scalar_lea.vmem %s1, 224
  %v1496 = vld [vmem:[%s1495] sm:$0xf]
  %v1497 = vld [vmem:[%s1495 + $0x4] sm:$0xf]
  %v1498 = vld [vmem:[%s1495 + $0x8] sm:$0xf]
  %v1499 = vld [vmem:[%s1495 + $0xc] sm:$0xf]
  %v1504 = vunpack.c.l.b16 %v1496
  %v1505 = vunpack.c.l.b16 %v1497
  %v1506 = vunpack.c.l.b16 %v1498
  %v1507 = vunpack.c.l.b16 %v1499
  %v1508 = vpack.c.b16 %v1505, %v1504
  %v1509 = vpack.c.b16 %v1507, %v1506
  %v1513 = vsel %vm147, %v1493, 0
  %v1516 = vsel %vm147, %v1494, 0
  %1518 = vmatprep.subr.bf16.mxu0 0
  %1519 = vmatpush1.bf16.msra.mxu0 %v1508
  %1520 = vmatprep.subr.bf16.mxu0 0
  %1521 = vmatpush1.bf16.msra.mxu0 %v1509
  %1522 = vmatprep.subr.bf16.mxu0 0
  %1523 = vmatpush1.bf16.msra.mxu0 0
  %1524 = vmatprep.subr.bf16.mxu0 0
  %1525 = vmatpush1.bf16.msra.mxu0 0
  %1526 = vmatprep.subr.bf16.mxu0 0
  %1527 = vmatpush1.bf16.msra.mxu0 0
  %1528 = vmatprep.subr.bf16.mxu0 0
  %1529 = vmatpush1.bf16.msra.mxu0 0
  %1530 = vmatprep.subr.bf16.mxu0 0
  %1531 = vmatpush1.bf16.msra.mxu0 0
  %1532 = vmatprep.subr.bf16.mxu0 0
  %1533 = vmatpush1.bf16.msra.mxu0 0
  %1534 = vmatprep.subr.bf16.mxu0 0
  %1535 = vmatpush1.bf16.msra.mxu0 0
  %1536 = vmatprep.subr.bf16.mxu0 0
  %1537 = vmatpush1.bf16.msra.mxu0 0
  %1538 = vmatprep.subr.bf16.mxu0 0
  %1539 = vmatpush1.bf16.msra.mxu0 0
  %1540 = vmatprep.subr.bf16.mxu0 0
  %1541 = vmatpush1.bf16.msra.mxu0 0
  %1542 = vmatprep.subr.bf16.mxu0 0
  %1543 = vmatpush1.bf16.msra.mxu0 0
  %1544 = vmatprep.subr.bf16.mxu0 0
  %1545 = vmatpush1.bf16.msra.mxu0 0
  %1546 = vmatprep.subr.bf16.mxu0 0
  %1547 = vmatpush1.bf16.msra.mxu0 0
  %1548 = vmatprep.subr.bf16.mxu0 0
  %1549 = vmatpush1.bf16.msra.mxu0 0
  %1550 = vmatprep.mubr.bf16.mxu0 0
  %1551 = vmatmul.mubr.bf16.gmra.mrb[0].mxu0 %v1513
  %v1552 = vpop.f32.mrb[0].mxu0
  %v1553 = vadd.f32 0.0, %v1552
  %v1554 = vpop.f32.mrb[0].mxu0
  %v1555 = vpop.f32.mrb[0].mxu0
  %v1556 = vadd.f32 0.0, %v1555
  %v1557 = vpop.f32.mrb[0].mxu0
  %1558 = vmatprep.mubr.bf16.mxu0 0
  %1559 = vmatmul.mubr.bf16.gmra.mrb[0].mxu0 %v1516
  %v1560 = vpop.f32.mrb[0].mxu0
  %v1561 = vadd.f32 0.0, %v1560
  %v1562 = vpop.f32.mrb[0].mxu0
  %v1563 = vpop.f32.mrb[0].mxu0
  %v1564 = vadd.f32 0.0, %v1563
  %v1565 = vpop.f32.mrb[0].mxu0
  %1566 = vdwg.mxu0
  %v1567 = vadd.f32 %v1479, %v1553
  %v1568 = vadd.f32 %v1482, %v1556
  %v1569 = vadd.f32 %v1487, %v1561
  %v1570 = vadd.f32 %v1490, %v1564
  %s1571 = scalar_lea.vmem %s2, 8
  %v1572 = vld [vmem:[%s1571] sm:$0x3]
  %v1573 = vadd.f32 %v1567, %v1568
  %v1574 = vadd.f32 %v1573, %v1569
  %v1575 = vadd.f32 %v1574, %v1570
  %v1576 = vrot.slane %v1575, 4
  %v1577 = vadd.f32 %v1575, %v1576
  %v1578 = vrot.slane %v1577, 2
  %v1579 = vadd.f32 %v1577, %v1578
  %v1580 = vrot.slane %v1579, 1
  %v1581 = vadd.f32 %v1579, %v1580
  %v1582 = vmul.f32 %v1581, 0.03125
  %v1583 = vmul.f32 %v1567, %v1567
  %v1584 = vmul.f32 %v1568, %v1568
  %v1585 = vmul.f32 %v1569, %v1569
  %v1586 = vmul.f32 %v1570, %v1570
  %v1587 = vadd.f32 %v1583, %v1584
  %v1588 = vadd.f32 %v1587, %v1585
  %v1589 = vadd.f32 %v1588, %v1586
  %v1590 = vrot.slane %v1589, 4
  %v1591 = vadd.f32 %v1589, %v1590
  %v1592 = vrot.slane %v1591, 2
  %v1593 = vadd.f32 %v1591, %v1592
  %v1594 = vrot.slane %v1593, 1
  %v1595 = vadd.f32 %v1593, %v1594
  %v1596 = vmul.f32 %v1595, 0.03125
  %v1597 = vmul.f32 %v1582, %v1582
  %v1598 = vsub.f32 %v1596, %v1597
  %v1599 = vadd.f32 %v1598, 1e-05
  %v1600 = vrsqrt.pop %v1599
  %v1601 = vmul.f32 %v1572, %v1600
  %v1602 = vmul.f32 %v1582, %v1601
  %v1604 = vrot.slane %v1602, 7
  %v1606 = vsub.f32 %v1572, %v1604
  %v1607 = vlaneseq
  %v1608 = vshrl.u32 %v1607, 7
  %v1609 = vsub.s32 0, %v1608
  %v1610 = vrot.slane %v1601, %v1609
  %v1611 = vmul.f32 %v1567, %v1610
  %v1612 = vmul.f32 %v1568, %v1610
  %v1613 = vmul.f32 %v1569, %v1610
  %v1614 = vmul.f32 %v1570, %v1610
  %v1615 = vlaneseq
  %v1616 = vshrl.u32 %v1615, 7
  %v1617 = vsub.s32 1, %v1616
  %v1618 = vrot.slane %v1606, %v1617
  %v1619 = vadd.f32 %v1611, %v1618
  %v1620 = vadd.f32 %v1612, %v1618
  %v1621 = vadd.f32 %v1613, %v1618
  %v1622 = vadd.f32 %v1614, %v1618
  %v1623 = vmax.f32 %v1619, 0.0
  %v1624 = vmax.f32 %v1620, 0.0
  %v1625 = vmax.f32 %v1621, 0.0
  %v1626 = vmax.f32 %v1622, 0.0
  %v1627 = vrot.slane %v1623, 7
  %v1628 = vrot.slane %v1624, 7
  %v1629 = vrot.slane %v1625, 7
  %v1630 = vrot.slane %v1626, 7
  %v1631 = vsel %vm100, %v1629, %v1630
  %v1632 = vsel %vm100, %v1628, %v1629
  %v1633 = vsel %vm100, %v1627, %v1628
  %v1634 = vsel %vm100, %v1630, %v1627
  %v1635 = vmul.f32 %v1634, %v76
  %v1636 = vmul.f32 %v1633, %v77
  %v1637 = vmul.f32 %v1632, %v78
  %v1638 = vmul.f32 %v1631, %v79
  %v1639 = vrot.slane %v1623, 1
  %v1640 = vrot.slane %v1624, 1
  %v1641 = vrot.slane %v1625, 1
  %v1642 = vrot.slane %v1626, 1
  %v1643 = vsel %vm113, %v1641, %v1642
  %v1644 = vsel %vm113, %v1640, %v1641
  %v1645 = vsel %vm113, %v1639, %v1640
  %v1646 = vsel %vm113, %v1642, %v1639
  %v1647 = vmul.f32 %v1645, %v88
  %v1648 = vmul.f32 %v1644, %v89
  %v1649 = vmul.f32 %v1643, %v90
  %v1650 = vmul.f32 %v1646, %v91
  %v1651 = vpack.c.bf16 %v1636, %v1635
  %v1652 = vpack.c.bf16 %v1638, %v1637
  %s1653 = scalar_lea.vmem %s1, 240
  %v1654 = vld [vmem:[%s1653] sm:$0xf]
  %v1655 = vld [vmem:[%s1653 + $0x4] sm:$0xf]
  %v1656 = vld [vmem:[%s1653 + $0x8] sm:$0xf]
  %v1657 = vld [vmem:[%s1653 + $0xc] sm:$0xf]
  %v1658 = vpack.c.bf16 %v1624, %v1623
  %v1659 = vpack.c.bf16 %v1626, %v1625
  %s1660 = scalar_lea.vmem %s1, 256
  %v1661 = vld [vmem:[%s1660] sm:$0xf]
  %v1662 = vld [vmem:[%s1660 + $0x4] sm:$0xf]
  %v1663 = vld [vmem:[%s1660 + $0x8] sm:$0xf]
  %v1664 = vld [vmem:[%s1660 + $0xc] sm:$0xf]
  %v1669 = vunpack.c.l.b16 %v1661
  %v1670 = vunpack.c.l.b16 %v1662
  %v1671 = vunpack.c.l.b16 %v1663
  %v1672 = vunpack.c.l.b16 %v1664
  %v1673 = vpack.c.b16 %v1670, %v1669
  %v1674 = vpack.c.b16 %v1672, %v1671
  %v1678 = vsel %vm147, %v1658, 0
  %v1681 = vsel %vm147, %v1659, 0
  %1683 = vmatprep.subr.bf16.mxu0 0
  %1684 = vmatpush1.bf16.msra.mxu0 %v1673
  %1685 = vmatprep.subr.bf16.mxu0 0
  %1686 = vmatpush1.bf16.msra.mxu0 %v1674
  %1687 = vmatprep.subr.bf16.mxu0 0
  %1688 = vmatpush1.bf16.msra.mxu0 0
  %1689 = vmatprep.subr.bf16.mxu0 0
  %1690 = vmatpush1.bf16.msra.mxu0 0
  %1691 = vmatprep.subr.bf16.mxu0 0
  %1692 = vmatpush1.bf16.msra.mxu0 0
  %1693 = vmatprep.subr.bf16.mxu0 0
  %1694 = vmatpush1.bf16.msra.mxu0 0
  %1695 = vmatprep.subr.bf16.mxu0 0
  %1696 = vmatpush1.bf16.msra.mxu0 0
  %1697 = vmatprep.subr.bf16.mxu0 0
  %1698 = vmatpush1.bf16.msra.mxu0 0
  %1699 = vmatprep.subr.bf16.mxu0 0
  %1700 = vmatpush1.bf16.msra.mxu0 0
  %1701 = vmatprep.subr.bf16.mxu0 0
  %1702 = vmatpush1.bf16.msra.mxu0 0
  %1703 = vmatprep.subr.bf16.mxu0 0
  %1704 = vmatpush1.bf16.msra.mxu0 0
  %1705 = vmatprep.subr.bf16.mxu0 0
  %1706 = vmatpush1.bf16.msra.mxu0 0
  %1707 = vmatprep.subr.bf16.mxu0 0
  %1708 = vmatpush1.bf16.msra.mxu0 0
  %1709 = vmatprep.subr.bf16.mxu0 0
  %1710 = vmatpush1.bf16.msra.mxu0 0
  %1711 = vmatprep.subr.bf16.mxu0 0
  %1712 = vmatpush1.bf16.msra.mxu0 0
  %1713 = vmatprep.subr.bf16.mxu0 0
  %1714 = vmatpush1.bf16.msra.mxu0 0
  %1715 = vmatprep.mubr.bf16.mxu0 0
  %1716 = vmatmul.mubr.bf16.gmra.mrb[0].mxu0 %v1678
  %v1717 = vpop.f32.mrb[0].mxu0
  %v1718 = vadd.f32 0.0, %v1717
  %v1719 = vpop.f32.mrb[0].mxu0
  %v1720 = vpop.f32.mrb[0].mxu0
  %v1721 = vadd.f32 0.0, %v1720
  %v1722 = vpop.f32.mrb[0].mxu0
  %1723 = vmatprep.mubr.bf16.mxu0 0
  %1724 = vmatmul.mubr.bf16.gmra.mrb[0].mxu0 %v1681
  %v1725 = vpop.f32.mrb[0].mxu0
  %v1726 = vadd.f32 0.0, %v1725
  %v1727 = vpop.f32.mrb[0].mxu0
  %v1728 = vpop.f32.mrb[0].mxu0
  %v1729 = vadd.f32 0.0, %v1728
  %v1730 = vpop.f32.mrb[0].mxu0
  %1731 = vdwg.mxu0
  %v1736 = vunpack.c.l.b16 %v1654
  %v1737 = vunpack.c.l.b16 %v1655
  %v1738 = vunpack.c.l.b16 %v1656
  %v1739 = vunpack.c.l.b16 %v1657
  %v1740 = vpack.c.b16 %v1737, %v1736
  %v1741 = vpack.c.b16 %v1739, %v1738
  %v1745 = vsel %vm147, %v1651, 0
  %v1748 = vsel %vm147, %v1652, 0
  %1750 = vmatprep.subr.bf16.mxu0 0
  %1751 = vmatpush1.bf16.msra.mxu0 %v1740
  %1752 = vmatprep.subr.bf16.mxu0 0
  %1753 = vmatpush1.bf16.msra.mxu0 %v1741
  %1754 = vmatprep.subr.bf16.mxu0 0
  %1755 = vmatpush1.bf16.msra.mxu0 0
  %1756 = vmatprep.subr.bf16.mxu0 0
  %1757 = vmatpush1.bf16.msra.mxu0 0
  %1758 = vmatprep.subr.bf16.mxu0 0
  %1759 = vmatpush1.bf16.msra.mxu0 0
  %1760 = vmatprep.subr.bf16.mxu0 0
  %1761 = vmatpush1.bf16.msra.mxu0 0
  %1762 = vmatprep.subr.bf16.mxu0 0
  %1763 = vmatpush1.bf16.msra.mxu0 0
  %1764 = vmatprep.subr.bf16.mxu0 0
  %1765 = vmatpush1.bf16.msra.mxu0 0
  %1766 = vmatprep.subr.bf16.mxu0 0
  %1767 = vmatpush1.bf16.msra.mxu0 0
  %1768 = vmatprep.subr.bf16.mxu0 0
  %1769 = vmatpush1.bf16.msra.mxu0 0
  %1770 = vmatprep.subr.bf16.mxu0 0
  %1771 = vmatpush1.bf16.msra.mxu0 0
  %1772 = vmatprep.subr.bf16.mxu0 0
  %1773 = vmatpush1.bf16.msra.mxu0 0
  %1774 = vmatprep.subr.bf16.mxu0 0
  %1775 = vmatpush1.bf16.msra.mxu0 0
  %1776 = vmatprep.subr.bf16.mxu0 0
  %1777 = vmatpush1.bf16.msra.mxu0 0
  %1778 = vmatprep.subr.bf16.mxu0 0
  %1779 = vmatpush1.bf16.msra.mxu0 0
  %1780 = vmatprep.subr.bf16.mxu0 0
  %1781 = vmatpush1.bf16.msra.mxu0 0
  %1782 = vmatprep.mubr.bf16.mxu0 0
  %1783 = vmatmul.mubr.bf16.gmra.mrb[0].mxu0 %v1745
  %v1784 = vpop.f32.mrb[0].mxu0
  %v1785 = vadd.f32 %v1718, %v1784
  %v1786 = vpop.f32.mrb[0].mxu0
  %v1787 = vpop.f32.mrb[0].mxu0
  %v1788 = vadd.f32 %v1721, %v1787
  %v1789 = vpop.f32.mrb[0].mxu0
  %1790 = vmatprep.mubr.bf16.mxu0 0
  %1791 = vmatmul.mubr.bf16.gmra.mrb[0].mxu0 %v1748
  %v1792 = vpop.f32.mrb[0].mxu0
  %v1793 = vadd.f32 %v1726, %v1792
  %v1794 = vpop.f32.mrb[0].mxu0
  %v1795 = vpop.f32.mrb[0].mxu0
  %v1796 = vadd.f32 %v1729, %v1795
  %v1797 = vpop.f32.mrb[0].mxu0
  %1798 = vdwg.mxu0
  %v1799 = vpack.c.bf16 %v1648, %v1647
  %v1800 = vpack.c.bf16 %v1650, %v1649
  %s1801 = scalar_lea.vmem %s1, 272
  %v1802 = vld [vmem:[%s1801] sm:$0xf]
  %v1803 = vld [vmem:[%s1801 + $0x4] sm:$0xf]
  %v1804 = vld [vmem:[%s1801 + $0x8] sm:$0xf]
  %v1805 = vld [vmem:[%s1801 + $0xc] sm:$0xf]
  %v1810 = vunpack.c.l.b16 %v1802
  %v1811 = vunpack.c.l.b16 %v1803
  %v1812 = vunpack.c.l.b16 %v1804
  %v1813 = vunpack.c.l.b16 %v1805
  %v1814 = vpack.c.b16 %v1811, %v1810
  %v1815 = vpack.c.b16 %v1813, %v1812
  %v1819 = vsel %vm147, %v1799, 0
  %v1822 = vsel %vm147, %v1800, 0
  %1824 = vmatprep.subr.bf16.mxu0 0
  %1825 = vmatpush1.bf16.msra.mxu0 %v1814
  %1826 = vmatprep.subr.bf16.mxu0 0
  %1827 = vmatpush1.bf16.msra.mxu0 %v1815
  %1828 = vmatprep.subr.bf16.mxu0 0
  %1829 = vmatpush1.bf16.msra.mxu0 0
  %1830 = vmatprep.subr.bf16.mxu0 0
  %1831 = vmatpush1.bf16.msra.mxu0 0
  %1832 = vmatprep.subr.bf16.mxu0 0
  %1833 = vmatpush1.bf16.msra.mxu0 0
  %1834 = vmatprep.subr.bf16.mxu0 0
  %1835 = vmatpush1.bf16.msra.mxu0 0
  %1836 = vmatprep.subr.bf16.mxu0 0
  %1837 = vmatpush1.bf16.msra.mxu0 0
  %1838 = vmatprep.subr.bf16.mxu0 0
  %1839 = vmatpush1.bf16.msra.mxu0 0
  %1840 = vmatprep.subr.bf16.mxu0 0
  %1841 = vmatpush1.bf16.msra.mxu0 0
  %1842 = vmatprep.subr.bf16.mxu0 0
  %1843 = vmatpush1.bf16.msra.mxu0 0
  %1844 = vmatprep.subr.bf16.mxu0 0
  %1845 = vmatpush1.bf16.msra.mxu0 0
  %1846 = vmatprep.subr.bf16.mxu0 0
  %1847 = vmatpush1.bf16.msra.mxu0 0
  %1848 = vmatprep.subr.bf16.mxu0 0
  %1849 = vmatpush1.bf16.msra.mxu0 0
  %1850 = vmatprep.subr.bf16.mxu0 0
  %1851 = vmatpush1.bf16.msra.mxu0 0
  %1852 = vmatprep.subr.bf16.mxu0 0
  %1853 = vmatpush1.bf16.msra.mxu0 0
  %1854 = vmatprep.subr.bf16.mxu0 0
  %1855 = vmatpush1.bf16.msra.mxu0 0
  %1856 = vmatprep.mubr.bf16.mxu0 0
  %1857 = vmatmul.mubr.bf16.gmra.mrb[0].mxu0 %v1819
  %v1858 = vpop.f32.mrb[0].mxu0
  %v1859 = vadd.f32 0.0, %v1858
  %v1860 = vpop.f32.mrb[0].mxu0
  %v1861 = vpop.f32.mrb[0].mxu0
  %v1862 = vadd.f32 0.0, %v1861
  %v1863 = vpop.f32.mrb[0].mxu0
  %1864 = vmatprep.mubr.bf16.mxu0 0
  %1865 = vmatmul.mubr.bf16.gmra.mrb[0].mxu0 %v1822
  %v1866 = vpop.f32.mrb[0].mxu0
  %v1867 = vadd.f32 0.0, %v1866
  %v1868 = vpop.f32.mrb[0].mxu0
  %v1869 = vpop.f32.mrb[0].mxu0
  %v1870 = vadd.f32 0.0, %v1869
  %v1871 = vpop.f32.mrb[0].mxu0
  %1872 = vdwg.mxu0
  %v1873 = vadd.f32 %v1785, %v1859
  %v1874 = vadd.f32 %v1788, %v1862
  %v1875 = vadd.f32 %v1793, %v1867
  %v1876 = vadd.f32 %v1796, %v1870
  %s1877 = scalar_lea.vmem %s2, 10
  %v1878 = vld [vmem:[%s1877] sm:$0x3]
  %v1879 = vadd.f32 %v1873, %v1874
  %v1880 = vadd.f32 %v1879, %v1875
  %v1881 = vadd.f32 %v1880, %v1876
  %v1882 = vrot.slane %v1881, 4
  %v1883 = vadd.f32 %v1881, %v1882
  %v1884 = vrot.slane %v1883, 2
  %v1885 = vadd.f32 %v1883, %v1884
  %v1886 = vrot.slane %v1885, 1
  %v1887 = vadd.f32 %v1885, %v1886
  %v1888 = vmul.f32 %v1887, 0.03125
  %v1889 = vmul.f32 %v1873, %v1873
  %v1890 = vmul.f32 %v1874, %v1874
  %v1891 = vmul.f32 %v1875, %v1875
  %v1892 = vmul.f32 %v1876, %v1876
  %v1893 = vadd.f32 %v1889, %v1890
  %v1894 = vadd.f32 %v1893, %v1891
  %v1895 = vadd.f32 %v1894, %v1892
  %v1896 = vrot.slane %v1895, 4
  %v1897 = vadd.f32 %v1895, %v1896
  %v1898 = vrot.slane %v1897, 2
  %v1899 = vadd.f32 %v1897, %v1898
  %v1900 = vrot.slane %v1899, 1
  %v1901 = vadd.f32 %v1899, %v1900
  %v1902 = vmul.f32 %v1901, 0.03125
  %v1903 = vmul.f32 %v1888, %v1888
  %v1904 = vsub.f32 %v1902, %v1903
  %v1905 = vadd.f32 %v1904, 1e-05
  %v1906 = vrsqrt.pop %v1905
  %v1907 = vmul.f32 %v1878, %v1906
  %v1908 = vmul.f32 %v1888, %v1907
  %v1910 = vrot.slane %v1908, 7
  %v1912 = vsub.f32 %v1878, %v1910
  %v1913 = vlaneseq
  %v1914 = vshrl.u32 %v1913, 7
  %v1915 = vsub.s32 0, %v1914
  %v1916 = vrot.slane %v1907, %v1915
  %v1917 = vmul.f32 %v1873, %v1916
  %v1918 = vmul.f32 %v1874, %v1916
  %v1919 = vmul.f32 %v1875, %v1916
  %v1920 = vmul.f32 %v1876, %v1916
  %v1921 = vlaneseq
  %v1922 = vshrl.u32 %v1921, 7
  %v1923 = vsub.s32 1, %v1922
  %v1924 = vrot.slane %v1912, %v1923
  %v1925 = vadd.f32 %v1917, %v1924
  %v1926 = vadd.f32 %v1918, %v1924
  %v1927 = vadd.f32 %v1919, %v1924
  %v1928 = vadd.f32 %v1920, %v1924
  %v1929 = vmax.f32 %v1925, 0.0
  %v1930 = vmax.f32 %v1926, 0.0
  %v1931 = vmax.f32 %v1927, 0.0
  %v1932 = vmax.f32 %v1928, 0.0
  %v1933 = vadd.f32 %v1929, %v1317
  %v1934 = vadd.f32 %v1930, %v1318
  %v1935 = vadd.f32 %v1931, %v1319
  %v1936 = vadd.f32 %v1932, %v1320
  %v1937 = vrot.slane %v1933, 7
  %v1938 = vrot.slane %v1934, 7
  %v1939 = vrot.slane %v1935, 7
  %v1940 = vrot.slane %v1936, 7
  %v1941 = vsel %vm100, %v1939, %v1940
  %v1942 = vsel %vm100, %v1938, %v1939
  %v1943 = vsel %vm100, %v1937, %v1938
  %v1944 = vsel %vm100, %v1940, %v1937
  %v1945 = vmul.f32 %v1944, %v76
  %v1946 = vmul.f32 %v1943, %v77
  %v1947 = vmul.f32 %v1942, %v78
  %v1948 = vmul.f32 %v1941, %v79
  %v1949 = vrot.slane %v1933, 1
  %v1950 = vrot.slane %v1934, 1
  %v1951 = vrot.slane %v1935, 1
  %v1952 = vrot.slane %v1936, 1
  %v1953 = vsel %vm113, %v1951, %v1952
  %v1954 = vsel %vm113, %v1950, %v1951
  %v1955 = vsel %vm113, %v1949, %v1950
  %v1956 = vsel %vm113, %v1952, %v1949
  %v1957 = vmul.f32 %v1955, %v88
  %v1958 = vmul.f32 %v1954, %v89
  %v1959 = vmul.f32 %v1953, %v90
  %v1960 = vmul.f32 %v1956, %v91
  %v1961 = vpack.c.bf16 %v1946, %v1945
  %v1962 = vpack.c.bf16 %v1948, %v1947
  %s1963 = scalar_lea.vmem %s1, 288
  %v1964 = vld [vmem:[%s1963] sm:$0xf]
  %v1965 = vld [vmem:[%s1963 + $0x4] sm:$0xf]
  %v1966 = vld [vmem:[%s1963 + $0x8] sm:$0xf]
  %v1967 = vld [vmem:[%s1963 + $0xc] sm:$0xf]
  %v1968 = vpack.c.bf16 %v1934, %v1933
  %v1969 = vpack.c.bf16 %v1936, %v1935
  %s1970 = scalar_lea.vmem %s1, 304
  %v1971 = vld [vmem:[%s1970] sm:$0xf]
  %v1972 = vld [vmem:[%s1970 + $0x4] sm:$0xf]
  %v1973 = vld [vmem:[%s1970 + $0x8] sm:$0xf]
  %v1974 = vld [vmem:[%s1970 + $0xc] sm:$0xf]
  %v1979 = vunpack.c.l.b16 %v1971
  %v1980 = vunpack.c.l.b16 %v1972
  %v1981 = vunpack.c.l.b16 %v1973
  %v1982 = vunpack.c.l.b16 %v1974
  %v1983 = vpack.c.b16 %v1980, %v1979
  %v1984 = vpack.c.b16 %v1982, %v1981
  %v1988 = vsel %vm147, %v1968, 0
  %v1991 = vsel %vm147, %v1969, 0
  %1993 = vmatprep.subr.bf16.mxu0 0
  %1994 = vmatpush1.bf16.msra.mxu0 %v1983
  %1995 = vmatprep.subr.bf16.mxu0 0
  %1996 = vmatpush1.bf16.msra.mxu0 %v1984
  %1997 = vmatprep.subr.bf16.mxu0 0
  %1998 = vmatpush1.bf16.msra.mxu0 0
  %1999 = vmatprep.subr.bf16.mxu0 0
  %2000 = vmatpush1.bf16.msra.mxu0 0
  %2001 = vmatprep.subr.bf16.mxu0 0
  %2002 = vmatpush1.bf16.msra.mxu0 0
  %2003 = vmatprep.subr.bf16.mxu0 0
  %2004 = vmatpush1.bf16.msra.mxu0 0
  %2005 = vmatprep.subr.bf16.mxu0 0
  %2006 = vmatpush1.bf16.msra.mxu0 0
  %2007 = vmatprep.subr.bf16.mxu0 0
  %2008 = vmatpush1.bf16.msra.mxu0 0
  %2009 = vmatprep.subr.bf16.mxu0 0
  %2010 = vmatpush1.bf16.msra.mxu0 0
  %2011 = vmatprep.subr.bf16.mxu0 0
  %2012 = vmatpush1.bf16.msra.mxu0 0
  %2013 = vmatprep.subr.bf16.mxu0 0
  %2014 = vmatpush1.bf16.msra.mxu0 0
  %2015 = vmatprep.subr.bf16.mxu0 0
  %2016 = vmatpush1.bf16.msra.mxu0 0
  %2017 = vmatprep.subr.bf16.mxu0 0
  %2018 = vmatpush1.bf16.msra.mxu0 0
  %2019 = vmatprep.subr.bf16.mxu0 0
  %2020 = vmatpush1.bf16.msra.mxu0 0
  %2021 = vmatprep.subr.bf16.mxu0 0
  %2022 = vmatpush1.bf16.msra.mxu0 0
  %2023 = vmatprep.subr.bf16.mxu0 0
  %2024 = vmatpush1.bf16.msra.mxu0 0
  %2025 = vmatprep.mubr.bf16.mxu0 0
  %2026 = vmatmul.mubr.bf16.gmra.mrb[0].mxu0 %v1988
  %v2027 = vpop.f32.mrb[0].mxu0
  %v2028 = vadd.f32 0.0, %v2027
  %v2029 = vpop.f32.mrb[0].mxu0
  %v2030 = vpop.f32.mrb[0].mxu0
  %v2031 = vadd.f32 0.0, %v2030
  %v2032 = vpop.f32.mrb[0].mxu0
  %2033 = vmatprep.mubr.bf16.mxu0 0
  %2034 = vmatmul.mubr.bf16.gmra.mrb[0].mxu0 %v1991
  %v2035 = vpop.f32.mrb[0].mxu0
  %v2036 = vadd.f32 0.0, %v2035
  %v2037 = vpop.f32.mrb[0].mxu0
  %v2038 = vpop.f32.mrb[0].mxu0
  %v2039 = vadd.f32 0.0, %v2038
  %v2040 = vpop.f32.mrb[0].mxu0
  %2041 = vdwg.mxu0
  %v2046 = vunpack.c.l.b16 %v1964
  %v2047 = vunpack.c.l.b16 %v1965
  %v2048 = vunpack.c.l.b16 %v1966
  %v2049 = vunpack.c.l.b16 %v1967
  %v2050 = vpack.c.b16 %v2047, %v2046
  %v2051 = vpack.c.b16 %v2049, %v2048
  %v2055 = vsel %vm147, %v1961, 0
  %v2058 = vsel %vm147, %v1962, 0
  %2060 = vmatprep.subr.bf16.mxu0 0
  %2061 = vmatpush1.bf16.msra.mxu0 %v2050
  %2062 = vmatprep.subr.bf16.mxu0 0
  %2063 = vmatpush1.bf16.msra.mxu0 %v2051
  %2064 = vmatprep.subr.bf16.mxu0 0
  %2065 = vmatpush1.bf16.msra.mxu0 0
  %2066 = vmatprep.subr.bf16.mxu0 0
  %2067 = vmatpush1.bf16.msra.mxu0 0
  %2068 = vmatprep.subr.bf16.mxu0 0
  %2069 = vmatpush1.bf16.msra.mxu0 0
  %2070 = vmatprep.subr.bf16.mxu0 0
  %2071 = vmatpush1.bf16.msra.mxu0 0
  %2072 = vmatprep.subr.bf16.mxu0 0
  %2073 = vmatpush1.bf16.msra.mxu0 0
  %2074 = vmatprep.subr.bf16.mxu0 0
  %2075 = vmatpush1.bf16.msra.mxu0 0
  %2076 = vmatprep.subr.bf16.mxu0 0
  %2077 = vmatpush1.bf16.msra.mxu0 0
  %2078 = vmatprep.subr.bf16.mxu0 0
  %2079 = vmatpush1.bf16.msra.mxu0 0
  %2080 = vmatprep.subr.bf16.mxu0 0
  %2081 = vmatpush1.bf16.msra.mxu0 0
  %2082 = vmatprep.subr.bf16.mxu0 0
  %2083 = vmatpush1.bf16.msra.mxu0 0
  %2084 = vmatprep.subr.bf16.mxu0 0
  %2085 = vmatpush1.bf16.msra.mxu0 0
  %2086 = vmatprep.subr.bf16.mxu0 0
  %2087 = vmatpush1.bf16.msra.mxu0 0
  %2088 = vmatprep.subr.bf16.mxu0 0
  %2089 = vmatpush1.bf16.msra.mxu0 0
  %2090 = vmatprep.subr.bf16.mxu0 0
  %2091 = vmatpush1.bf16.msra.mxu0 0
  %2092 = vmatprep.mubr.bf16.mxu0 0
  %2093 = vmatmul.mubr.bf16.gmra.mrb[0].mxu0 %v2055
  %v2094 = vpop.f32.mrb[0].mxu0
  %v2095 = vadd.f32 %v2028, %v2094
  %v2096 = vpop.f32.mrb[0].mxu0
  %v2097 = vpop.f32.mrb[0].mxu0
  %v2098 = vadd.f32 %v2031, %v2097
  %v2099 = vpop.f32.mrb[0].mxu0
  %2100 = vmatprep.mubr.bf16.mxu0 0
  %2101 = vmatmul.mubr.bf16.gmra.mrb[0].mxu0 %v2058
  %v2102 = vpop.f32.mrb[0].mxu0
  %v2103 = vadd.f32 %v2036, %v2102
  %v2104 = vpop.f32.mrb[0].mxu0
  %v2105 = vpop.f32.mrb[0].mxu0
  %v2106 = vadd.f32 %v2039, %v2105
  %v2107 = vpop.f32.mrb[0].mxu0
  %2108 = vdwg.mxu0
  %v2109 = vpack.c.bf16 %v1958, %v1957
  %v2110 = vpack.c.bf16 %v1960, %v1959
  %s2111 = scalar_lea.vmem %s1, 320
  %v2112 = vld [vmem:[%s2111] sm:$0xf]
  %v2113 = vld [vmem:[%s2111 + $0x4] sm:$0xf]
  %v2114 = vld [vmem:[%s2111 + $0x8] sm:$0xf]
  %v2115 = vld [vmem:[%s2111 + $0xc] sm:$0xf]
  %v2120 = vunpack.c.l.b16 %v2112
  %v2121 = vunpack.c.l.b16 %v2113
  %v2122 = vunpack.c.l.b16 %v2114
  %v2123 = vunpack.c.l.b16 %v2115
  %v2124 = vpack.c.b16 %v2121, %v2120
  %v2125 = vpack.c.b16 %v2123, %v2122
  %v2129 = vsel %vm147, %v2109, 0
  %v2132 = vsel %vm147, %v2110, 0
  %2134 = vmatprep.subr.bf16.mxu0 0
  %2135 = vmatpush1.bf16.msra.mxu0 %v2124
  %2136 = vmatprep.subr.bf16.mxu0 0
  %2137 = vmatpush1.bf16.msra.mxu0 %v2125
  %2138 = vmatprep.subr.bf16.mxu0 0
  %2139 = vmatpush1.bf16.msra.mxu0 0
  %2140 = vmatprep.subr.bf16.mxu0 0
  %2141 = vmatpush1.bf16.msra.mxu0 0
  %2142 = vmatprep.subr.bf16.mxu0 0
  %2143 = vmatpush1.bf16.msra.mxu0 0
  %2144 = vmatprep.subr.bf16.mxu0 0
  %2145 = vmatpush1.bf16.msra.mxu0 0
  %2146 = vmatprep.subr.bf16.mxu0 0
  %2147 = vmatpush1.bf16.msra.mxu0 0
  %2148 = vmatprep.subr.bf16.mxu0 0
  %2149 = vmatpush1.bf16.msra.mxu0 0
  %2150 = vmatprep.subr.bf16.mxu0 0
  %2151 = vmatpush1.bf16.msra.mxu0 0
  %2152 = vmatprep.subr.bf16.mxu0 0
  %2153 = vmatpush1.bf16.msra.mxu0 0
  %2154 = vmatprep.subr.bf16.mxu0 0
  %2155 = vmatpush1.bf16.msra.mxu0 0
  %2156 = vmatprep.subr.bf16.mxu0 0
  %2157 = vmatpush1.bf16.msra.mxu0 0
  %2158 = vmatprep.subr.bf16.mxu0 0
  %2159 = vmatpush1.bf16.msra.mxu0 0
  %2160 = vmatprep.subr.bf16.mxu0 0
  %2161 = vmatpush1.bf16.msra.mxu0 0
  %2162 = vmatprep.subr.bf16.mxu0 0
  %2163 = vmatpush1.bf16.msra.mxu0 0
  %2164 = vmatprep.subr.bf16.mxu0 0
  %2165 = vmatpush1.bf16.msra.mxu0 0
  %2166 = vmatprep.mubr.bf16.mxu0 0
  %2167 = vmatmul.mubr.bf16.gmra.mrb[0].mxu0 %v2129
  %v2168 = vpop.f32.mrb[0].mxu0
  %v2169 = vadd.f32 0.0, %v2168
  %v2170 = vpop.f32.mrb[0].mxu0
  %v2171 = vpop.f32.mrb[0].mxu0
  %v2172 = vadd.f32 0.0, %v2171
  %v2173 = vpop.f32.mrb[0].mxu0
  %2174 = vmatprep.mubr.bf16.mxu0 0
  %2175 = vmatmul.mubr.bf16.gmra.mrb[0].mxu0 %v2132
  %v2176 = vpop.f32.mrb[0].mxu0
  %v2177 = vadd.f32 0.0, %v2176
  %v2178 = vpop.f32.mrb[0].mxu0
  %v2179 = vpop.f32.mrb[0].mxu0
  %v2180 = vadd.f32 0.0, %v2179
  %v2181 = vpop.f32.mrb[0].mxu0
  %2182 = vdwg.mxu0
  %v2183 = vadd.f32 %v2095, %v2169
  %v2184 = vadd.f32 %v2098, %v2172
  %v2185 = vadd.f32 %v2103, %v2177
  %v2186 = vadd.f32 %v2106, %v2180
  %s2187 = scalar_lea.vmem %s2, 12
  %v2188 = vld [vmem:[%s2187] sm:$0x3]
  %v2189 = vadd.f32 %v2183, %v2184
  %v2190 = vadd.f32 %v2189, %v2185
  %v2191 = vadd.f32 %v2190, %v2186
  %v2192 = vrot.slane %v2191, 4
  %v2193 = vadd.f32 %v2191, %v2192
  %v2194 = vrot.slane %v2193, 2
  %v2195 = vadd.f32 %v2193, %v2194
  %v2196 = vrot.slane %v2195, 1
  %v2197 = vadd.f32 %v2195, %v2196
  %v2198 = vmul.f32 %v2197, 0.03125
  %v2199 = vmul.f32 %v2183, %v2183
  %v2200 = vmul.f32 %v2184, %v2184
  %v2201 = vmul.f32 %v2185, %v2185
  %v2202 = vmul.f32 %v2186, %v2186
  %v2203 = vadd.f32 %v2199, %v2200
  %v2204 = vadd.f32 %v2203, %v2201
  %v2205 = vadd.f32 %v2204, %v2202
  %v2206 = vrot.slane %v2205, 4
  %v2207 = vadd.f32 %v2205, %v2206
  %v2208 = vrot.slane %v2207, 2
  %v2209 = vadd.f32 %v2207, %v2208
  %v2210 = vrot.slane %v2209, 1
  %v2211 = vadd.f32 %v2209, %v2210
  %v2212 = vmul.f32 %v2211, 0.03125
  %v2213 = vmul.f32 %v2198, %v2198
  %v2214 = vsub.f32 %v2212, %v2213
  %v2215 = vadd.f32 %v2214, 1e-05
  %v2216 = vrsqrt.pop %v2215
  %v2217 = vmul.f32 %v2188, %v2216
  %v2218 = vmul.f32 %v2198, %v2217
  %v2220 = vrot.slane %v2218, 7
  %v2222 = vsub.f32 %v2188, %v2220
  %v2223 = vlaneseq
  %v2224 = vshrl.u32 %v2223, 7
  %v2225 = vsub.s32 0, %v2224
  %v2226 = vrot.slane %v2217, %v2225
  %v2227 = vmul.f32 %v2183, %v2226
  %v2228 = vmul.f32 %v2184, %v2226
  %v2229 = vmul.f32 %v2185, %v2226
  %v2230 = vmul.f32 %v2186, %v2226
  %v2231 = vlaneseq
  %v2232 = vshrl.u32 %v2231, 7
  %v2233 = vsub.s32 1, %v2232
  %v2234 = vrot.slane %v2222, %v2233
  %v2235 = vadd.f32 %v2227, %v2234
  %v2236 = vadd.f32 %v2228, %v2234
  %v2237 = vadd.f32 %v2229, %v2234
  %v2238 = vadd.f32 %v2230, %v2234
  %v2239 = vmax.f32 %v2235, 0.0
  %v2240 = vmax.f32 %v2236, 0.0
  %v2241 = vmax.f32 %v2237, 0.0
  %v2242 = vmax.f32 %v2238, 0.0
  %v2243 = vrot.slane %v2239, 7
  %v2244 = vrot.slane %v2240, 7
  %v2245 = vrot.slane %v2241, 7
  %v2246 = vrot.slane %v2242, 7
  %v2247 = vsel %vm100, %v2245, %v2246
  %v2248 = vsel %vm100, %v2244, %v2245
  %v2249 = vsel %vm100, %v2243, %v2244
  %v2250 = vsel %vm100, %v2246, %v2243
  %v2251 = vmul.f32 %v2250, %v76
  %v2252 = vmul.f32 %v2249, %v77
  %v2253 = vmul.f32 %v2248, %v78
  %v2254 = vmul.f32 %v2247, %v79
  %v2255 = vrot.slane %v2239, 1
  %v2256 = vrot.slane %v2240, 1
  %v2257 = vrot.slane %v2241, 1
  %v2258 = vrot.slane %v2242, 1
  %v2259 = vsel %vm113, %v2257, %v2258
  %v2260 = vsel %vm113, %v2256, %v2257
  %v2261 = vsel %vm113, %v2255, %v2256
  %v2262 = vsel %vm113, %v2258, %v2255
  %v2263 = vmul.f32 %v2261, %v88
  %v2264 = vmul.f32 %v2260, %v89
  %v2265 = vmul.f32 %v2259, %v90
  %v2266 = vmul.f32 %v2262, %v91
  %v2267 = vpack.c.bf16 %v2252, %v2251
  %v2268 = vpack.c.bf16 %v2254, %v2253
  %s2269 = scalar_lea.vmem %s1, 336
  %v2270 = vld [vmem:[%s2269] sm:$0xf]
  %v2271 = vld [vmem:[%s2269 + $0x4] sm:$0xf]
  %v2272 = vld [vmem:[%s2269 + $0x8] sm:$0xf]
  %v2273 = vld [vmem:[%s2269 + $0xc] sm:$0xf]
  %v2274 = vpack.c.bf16 %v2240, %v2239
  %v2275 = vpack.c.bf16 %v2242, %v2241
  %s2276 = scalar_lea.vmem %s1, 352
  %v2277 = vld [vmem:[%s2276] sm:$0xf]
  %v2278 = vld [vmem:[%s2276 + $0x4] sm:$0xf]
  %v2279 = vld [vmem:[%s2276 + $0x8] sm:$0xf]
  %v2280 = vld [vmem:[%s2276 + $0xc] sm:$0xf]
  %v2285 = vunpack.c.l.b16 %v2277
  %v2286 = vunpack.c.l.b16 %v2278
  %v2287 = vunpack.c.l.b16 %v2279
  %v2288 = vunpack.c.l.b16 %v2280
  %v2289 = vpack.c.b16 %v2286, %v2285
  %v2290 = vpack.c.b16 %v2288, %v2287
  %v2294 = vsel %vm147, %v2274, 0
  %v2297 = vsel %vm147, %v2275, 0
  %2299 = vmatprep.subr.bf16.mxu0 0
  %2300 = vmatpush1.bf16.msra.mxu0 %v2289
  %2301 = vmatprep.subr.bf16.mxu0 0
  %2302 = vmatpush1.bf16.msra.mxu0 %v2290
  %2303 = vmatprep.subr.bf16.mxu0 0
  %2304 = vmatpush1.bf16.msra.mxu0 0
  %2305 = vmatprep.subr.bf16.mxu0 0
  %2306 = vmatpush1.bf16.msra.mxu0 0
  %2307 = vmatprep.subr.bf16.mxu0 0
  %2308 = vmatpush1.bf16.msra.mxu0 0
  %2309 = vmatprep.subr.bf16.mxu0 0
  %2310 = vmatpush1.bf16.msra.mxu0 0
  %2311 = vmatprep.subr.bf16.mxu0 0
  %2312 = vmatpush1.bf16.msra.mxu0 0
  %2313 = vmatprep.subr.bf16.mxu0 0
  %2314 = vmatpush1.bf16.msra.mxu0 0
  %2315 = vmatprep.subr.bf16.mxu0 0
  %2316 = vmatpush1.bf16.msra.mxu0 0
  %2317 = vmatprep.subr.bf16.mxu0 0
  %2318 = vmatpush1.bf16.msra.mxu0 0
  %2319 = vmatprep.subr.bf16.mxu0 0
  %2320 = vmatpush1.bf16.msra.mxu0 0
  %2321 = vmatprep.subr.bf16.mxu0 0
  %2322 = vmatpush1.bf16.msra.mxu0 0
  %2323 = vmatprep.subr.bf16.mxu0 0
  %2324 = vmatpush1.bf16.msra.mxu0 0
  %2325 = vmatprep.subr.bf16.mxu0 0
  %2326 = vmatpush1.bf16.msra.mxu0 0
  %2327 = vmatprep.subr.bf16.mxu0 0
  %2328 = vmatpush1.bf16.msra.mxu0 0
  %2329 = vmatprep.subr.bf16.mxu0 0
  %2330 = vmatpush1.bf16.msra.mxu0 0
  %2331 = vmatprep.mubr.bf16.mxu0 0
  %2332 = vmatmul.mubr.bf16.gmra.mrb[0].mxu0 %v2294
  %v2333 = vpop.f32.mrb[0].mxu0
  %v2334 = vadd.f32 0.0, %v2333
  %v2335 = vpop.f32.mrb[0].mxu0
  %v2336 = vpop.f32.mrb[0].mxu0
  %v2337 = vadd.f32 0.0, %v2336
  %v2338 = vpop.f32.mrb[0].mxu0
  %2339 = vmatprep.mubr.bf16.mxu0 0
  %2340 = vmatmul.mubr.bf16.gmra.mrb[0].mxu0 %v2297
  %v2341 = vpop.f32.mrb[0].mxu0
  %v2342 = vadd.f32 0.0, %v2341
  %v2343 = vpop.f32.mrb[0].mxu0
  %v2344 = vpop.f32.mrb[0].mxu0
  %v2345 = vadd.f32 0.0, %v2344
  %v2346 = vpop.f32.mrb[0].mxu0
  %2347 = vdwg.mxu0
  %v2352 = vunpack.c.l.b16 %v2270
  %v2353 = vunpack.c.l.b16 %v2271
  %v2354 = vunpack.c.l.b16 %v2272
  %v2355 = vunpack.c.l.b16 %v2273
  %v2356 = vpack.c.b16 %v2353, %v2352
  %v2357 = vpack.c.b16 %v2355, %v2354
  %v2361 = vsel %vm147, %v2267, 0
  %v2364 = vsel %vm147, %v2268, 0
  %2366 = vmatprep.subr.bf16.mxu0 0
  %2367 = vmatpush1.bf16.msra.mxu0 %v2356
  %2368 = vmatprep.subr.bf16.mxu0 0
  %2369 = vmatpush1.bf16.msra.mxu0 %v2357
  %2370 = vmatprep.subr.bf16.mxu0 0
  %2371 = vmatpush1.bf16.msra.mxu0 0
  %2372 = vmatprep.subr.bf16.mxu0 0
  %2373 = vmatpush1.bf16.msra.mxu0 0
  %2374 = vmatprep.subr.bf16.mxu0 0
  %2375 = vmatpush1.bf16.msra.mxu0 0
  %2376 = vmatprep.subr.bf16.mxu0 0
  %2377 = vmatpush1.bf16.msra.mxu0 0
  %2378 = vmatprep.subr.bf16.mxu0 0
  %2379 = vmatpush1.bf16.msra.mxu0 0
  %2380 = vmatprep.subr.bf16.mxu0 0
  %2381 = vmatpush1.bf16.msra.mxu0 0
  %2382 = vmatprep.subr.bf16.mxu0 0
  %2383 = vmatpush1.bf16.msra.mxu0 0
  %2384 = vmatprep.subr.bf16.mxu0 0
  %2385 = vmatpush1.bf16.msra.mxu0 0
  %2386 = vmatprep.subr.bf16.mxu0 0
  %2387 = vmatpush1.bf16.msra.mxu0 0
  %2388 = vmatprep.subr.bf16.mxu0 0
  %2389 = vmatpush1.bf16.msra.mxu0 0
  %2390 = vmatprep.subr.bf16.mxu0 0
  %2391 = vmatpush1.bf16.msra.mxu0 0
  %2392 = vmatprep.subr.bf16.mxu0 0
  %2393 = vmatpush1.bf16.msra.mxu0 0
  %2394 = vmatprep.subr.bf16.mxu0 0
  %2395 = vmatpush1.bf16.msra.mxu0 0
  %2396 = vmatprep.subr.bf16.mxu0 0
  %2397 = vmatpush1.bf16.msra.mxu0 0
  %2398 = vmatprep.mubr.bf16.mxu0 0
  %2399 = vmatmul.mubr.bf16.gmra.mrb[0].mxu0 %v2361
  %v2400 = vpop.f32.mrb[0].mxu0
  %v2401 = vadd.f32 %v2334, %v2400
  %v2402 = vpop.f32.mrb[0].mxu0
  %v2403 = vpop.f32.mrb[0].mxu0
  %v2404 = vadd.f32 %v2337, %v2403
  %v2405 = vpop.f32.mrb[0].mxu0
  %2406 = vmatprep.mubr.bf16.mxu0 0
  %2407 = vmatmul.mubr.bf16.gmra.mrb[0].mxu0 %v2364
  %v2408 = vpop.f32.mrb[0].mxu0
  %v2409 = vadd.f32 %v2342, %v2408
  %v2410 = vpop.f32.mrb[0].mxu0
  %v2411 = vpop.f32.mrb[0].mxu0
  %v2412 = vadd.f32 %v2345, %v2411
  %v2413 = vpop.f32.mrb[0].mxu0
  %2414 = vdwg.mxu0
  %v2415 = vpack.c.bf16 %v2264, %v2263
  %v2416 = vpack.c.bf16 %v2266, %v2265
  %s2417 = scalar_lea.vmem %s1, 368
  %v2418 = vld [vmem:[%s2417] sm:$0xf]
  %v2419 = vld [vmem:[%s2417 + $0x4] sm:$0xf]
  %v2420 = vld [vmem:[%s2417 + $0x8] sm:$0xf]
  %v2421 = vld [vmem:[%s2417 + $0xc] sm:$0xf]
  %v2426 = vunpack.c.l.b16 %v2418
  %v2427 = vunpack.c.l.b16 %v2419
  %v2428 = vunpack.c.l.b16 %v2420
  %v2429 = vunpack.c.l.b16 %v2421
  %v2430 = vpack.c.b16 %v2427, %v2426
  %v2431 = vpack.c.b16 %v2429, %v2428
  %v2435 = vsel %vm147, %v2415, 0
  %v2438 = vsel %vm147, %v2416, 0
  %2440 = vmatprep.subr.bf16.mxu0 0
  %2441 = vmatpush1.bf16.msra.mxu0 %v2430
  %2442 = vmatprep.subr.bf16.mxu0 0
  %2443 = vmatpush1.bf16.msra.mxu0 %v2431
  %2444 = vmatprep.subr.bf16.mxu0 0
  %2445 = vmatpush1.bf16.msra.mxu0 0
  %2446 = vmatprep.subr.bf16.mxu0 0
  %2447 = vmatpush1.bf16.msra.mxu0 0
  %2448 = vmatprep.subr.bf16.mxu0 0
  %2449 = vmatpush1.bf16.msra.mxu0 0
  %2450 = vmatprep.subr.bf16.mxu0 0
  %2451 = vmatpush1.bf16.msra.mxu0 0
  %2452 = vmatprep.subr.bf16.mxu0 0
  %2453 = vmatpush1.bf16.msra.mxu0 0
  %2454 = vmatprep.subr.bf16.mxu0 0
  %2455 = vmatpush1.bf16.msra.mxu0 0
  %2456 = vmatprep.subr.bf16.mxu0 0
  %2457 = vmatpush1.bf16.msra.mxu0 0
  %2458 = vmatprep.subr.bf16.mxu0 0
  %2459 = vmatpush1.bf16.msra.mxu0 0
  %2460 = vmatprep.subr.bf16.mxu0 0
  %2461 = vmatpush1.bf16.msra.mxu0 0
  %2462 = vmatprep.subr.bf16.mxu0 0
  %2463 = vmatpush1.bf16.msra.mxu0 0
  %2464 = vmatprep.subr.bf16.mxu0 0
  %2465 = vmatpush1.bf16.msra.mxu0 0
  %2466 = vmatprep.subr.bf16.mxu0 0
  %2467 = vmatpush1.bf16.msra.mxu0 0
  %2468 = vmatprep.subr.bf16.mxu0 0
  %2469 = vmatpush1.bf16.msra.mxu0 0
  %2470 = vmatprep.subr.bf16.mxu0 0
  %2471 = vmatpush1.bf16.msra.mxu0 0
  %2472 = vmatprep.mubr.bf16.mxu0 0
  %2473 = vmatmul.mubr.bf16.gmra.mrb[0].mxu0 %v2435
  %v2474 = vpop.f32.mrb[0].mxu0
  %v2475 = vadd.f32 0.0, %v2474
  %v2476 = vpop.f32.mrb[0].mxu0
  %v2477 = vpop.f32.mrb[0].mxu0
  %v2478 = vadd.f32 0.0, %v2477
  %v2479 = vpop.f32.mrb[0].mxu0
  %2480 = vmatprep.mubr.bf16.mxu0 0
  %2481 = vmatmul.mubr.bf16.gmra.mrb[0].mxu0 %v2438
  %v2482 = vpop.f32.mrb[0].mxu0
  %v2483 = vadd.f32 0.0, %v2482
  %v2484 = vpop.f32.mrb[0].mxu0
  %v2485 = vpop.f32.mrb[0].mxu0
  %v2486 = vadd.f32 0.0, %v2485
  %v2487 = vpop.f32.mrb[0].mxu0
  %2488 = vdwg.mxu0
  %v2489 = vadd.f32 %v2401, %v2475
  %v2490 = vadd.f32 %v2404, %v2478
  %v2491 = vadd.f32 %v2409, %v2483
  %v2492 = vadd.f32 %v2412, %v2486
  %s2493 = scalar_lea.vmem %s2, 14
  %v2494 = vld [vmem:[%s2493] sm:$0x3]
  %v2495 = vadd.f32 %v2489, %v2490
  %v2496 = vadd.f32 %v2495, %v2491
  %v2497 = vadd.f32 %v2496, %v2492
  %v2498 = vrot.slane %v2497, 4
  %v2499 = vadd.f32 %v2497, %v2498
  %v2500 = vrot.slane %v2499, 2
  %v2501 = vadd.f32 %v2499, %v2500
  %v2502 = vrot.slane %v2501, 1
  %v2503 = vadd.f32 %v2501, %v2502
  %v2504 = vmul.f32 %v2503, 0.03125
  %v2505 = vmul.f32 %v2489, %v2489
  %v2506 = vmul.f32 %v2490, %v2490
  %v2507 = vmul.f32 %v2491, %v2491
  %v2508 = vmul.f32 %v2492, %v2492
  %v2509 = vadd.f32 %v2505, %v2506
  %v2510 = vadd.f32 %v2509, %v2507
  %v2511 = vadd.f32 %v2510, %v2508
  %v2512 = vrot.slane %v2511, 4
  %v2513 = vadd.f32 %v2511, %v2512
  %v2514 = vrot.slane %v2513, 2
  %v2515 = vadd.f32 %v2513, %v2514
  %v2516 = vrot.slane %v2515, 1
  %v2517 = vadd.f32 %v2515, %v2516
  %v2518 = vmul.f32 %v2517, 0.03125
  %v2519 = vmul.f32 %v2504, %v2504
  %v2520 = vsub.f32 %v2518, %v2519
  %v2521 = vadd.f32 %v2520, 1e-05
  %v2522 = vrsqrt.pop %v2521
  %v2523 = vmul.f32 %v2494, %v2522
  %v2524 = vmul.f32 %v2504, %v2523
  %v2526 = vrot.slane %v2524, 7
  %v2528 = vsub.f32 %v2494, %v2526
  %v2529 = vlaneseq
  %v2530 = vshrl.u32 %v2529, 7
  %v2531 = vsub.s32 0, %v2530
  %v2532 = vrot.slane %v2523, %v2531
  %v2533 = vmul.f32 %v2489, %v2532
  %v2534 = vmul.f32 %v2490, %v2532
  %v2535 = vmul.f32 %v2491, %v2532
  %v2536 = vmul.f32 %v2492, %v2532
  %v2537 = vlaneseq
  %v2538 = vshrl.u32 %v2537, 7
  %v2539 = vsub.s32 1, %v2538
  %v2540 = vrot.slane %v2528, %v2539
  %v2541 = vadd.f32 %v2533, %v2540
  %v2542 = vadd.f32 %v2534, %v2540
  %v2543 = vadd.f32 %v2535, %v2540
  %v2544 = vadd.f32 %v2536, %v2540
  %v2545 = vmax.f32 %v2541, 0.0
  %v2546 = vmax.f32 %v2542, 0.0
  %v2547 = vmax.f32 %v2543, 0.0
  %v2548 = vmax.f32 %v2544, 0.0
  %v2549 = vadd.f32 %v2545, %v705
  %v2550 = vadd.f32 %v2546, %v706
  %v2551 = vadd.f32 %v2547, %v707
  %v2552 = vadd.f32 %v2548, %v708
  %v2553 = vrot.slane %v2549, 7
  %v2554 = vrot.slane %v2550, 7
  %v2555 = vrot.slane %v2551, 7
  %v2556 = vrot.slane %v2552, 7
  %v2557 = vsel %vm100, %v2555, %v2556
  %v2558 = vsel %vm100, %v2554, %v2555
  %v2559 = vsel %vm100, %v2553, %v2554
  %v2560 = vsel %vm100, %v2556, %v2553
  %v2561 = vmul.f32 %v2560, %v76
  %v2562 = vmul.f32 %v2559, %v77
  %v2563 = vmul.f32 %v2558, %v78
  %v2564 = vmul.f32 %v2557, %v79
  %v2565 = vrot.slane %v2549, 1
  %v2566 = vrot.slane %v2550, 1
  %v2567 = vrot.slane %v2551, 1
  %v2568 = vrot.slane %v2552, 1
  %v2569 = vsel %vm113, %v2567, %v2568
  %v2570 = vsel %vm113, %v2566, %v2567
  %v2571 = vsel %vm113, %v2565, %v2566
  %v2572 = vsel %vm113, %v2568, %v2565
  %v2573 = vmul.f32 %v2571, %v88
  %v2574 = vmul.f32 %v2570, %v89
  %v2575 = vmul.f32 %v2569, %v90
  %v2576 = vmul.f32 %v2572, %v91
  %v2577 = vpack.c.bf16 %v2562, %v2561
  %v2578 = vpack.c.bf16 %v2564, %v2563
  %s2579 = scalar_lea.vmem %s1, 384
  %v2580 = vld [vmem:[%s2579] sm:$0xf]
  %v2581 = vld [vmem:[%s2579 + $0x4] sm:$0xf]
  %v2582 = vld [vmem:[%s2579 + $0x8] sm:$0xf]
  %v2583 = vld [vmem:[%s2579 + $0xc] sm:$0xf]
  %v2584 = vpack.c.bf16 %v2550, %v2549
  %v2585 = vpack.c.bf16 %v2552, %v2551
  %s2586 = scalar_lea.vmem %s1, 400
  %v2587 = vld [vmem:[%s2586] sm:$0xf]
  %v2588 = vld [vmem:[%s2586 + $0x4] sm:$0xf]
  %v2589 = vld [vmem:[%s2586 + $0x8] sm:$0xf]
  %v2590 = vld [vmem:[%s2586 + $0xc] sm:$0xf]
  %v2595 = vunpack.c.l.b16 %v2587
  %v2596 = vunpack.c.l.b16 %v2588
  %v2597 = vunpack.c.l.b16 %v2589
  %v2598 = vunpack.c.l.b16 %v2590
  %v2599 = vpack.c.b16 %v2596, %v2595
  %v2600 = vpack.c.b16 %v2598, %v2597
  %v2604 = vsel %vm147, %v2584, 0
  %v2607 = vsel %vm147, %v2585, 0
  %2609 = vmatprep.subr.bf16.mxu0 0
  %2610 = vmatpush1.bf16.msra.mxu0 %v2599
  %2611 = vmatprep.subr.bf16.mxu0 0
  %2612 = vmatpush1.bf16.msra.mxu0 %v2600
  %2613 = vmatprep.subr.bf16.mxu0 0
  %2614 = vmatpush1.bf16.msra.mxu0 0
  %2615 = vmatprep.subr.bf16.mxu0 0
  %2616 = vmatpush1.bf16.msra.mxu0 0
  %2617 = vmatprep.subr.bf16.mxu0 0
  %2618 = vmatpush1.bf16.msra.mxu0 0
  %2619 = vmatprep.subr.bf16.mxu0 0
  %2620 = vmatpush1.bf16.msra.mxu0 0
  %2621 = vmatprep.subr.bf16.mxu0 0
  %2622 = vmatpush1.bf16.msra.mxu0 0
  %2623 = vmatprep.subr.bf16.mxu0 0
  %2624 = vmatpush1.bf16.msra.mxu0 0
  %2625 = vmatprep.subr.bf16.mxu0 0
  %2626 = vmatpush1.bf16.msra.mxu0 0
  %2627 = vmatprep.subr.bf16.mxu0 0
  %2628 = vmatpush1.bf16.msra.mxu0 0
  %2629 = vmatprep.subr.bf16.mxu0 0
  %2630 = vmatpush1.bf16.msra.mxu0 0
  %2631 = vmatprep.subr.bf16.mxu0 0
  %2632 = vmatpush1.bf16.msra.mxu0 0
  %2633 = vmatprep.subr.bf16.mxu0 0
  %2634 = vmatpush1.bf16.msra.mxu0 0
  %2635 = vmatprep.subr.bf16.mxu0 0
  %2636 = vmatpush1.bf16.msra.mxu0 0
  %2637 = vmatprep.subr.bf16.mxu0 0
  %2638 = vmatpush1.bf16.msra.mxu0 0
  %2639 = vmatprep.subr.bf16.mxu0 0
  %2640 = vmatpush1.bf16.msra.mxu0 0
  %2641 = vmatprep.mubr.bf16.mxu0 0
  %2642 = vmatmul.mubr.bf16.gmra.mrb[0].mxu0 %v2604
  %v2643 = vpop.f32.mrb[0].mxu0
  %v2644 = vadd.f32 0.0, %v2643
  %v2645 = vpop.f32.mrb[0].mxu0
  %v2646 = vpop.f32.mrb[0].mxu0
  %v2647 = vadd.f32 0.0, %v2646
  %v2648 = vpop.f32.mrb[0].mxu0
  %2649 = vmatprep.mubr.bf16.mxu0 0
  %2650 = vmatmul.mubr.bf16.gmra.mrb[0].mxu0 %v2607
  %v2651 = vpop.f32.mrb[0].mxu0
  %v2652 = vadd.f32 0.0, %v2651
  %v2653 = vpop.f32.mrb[0].mxu0
  %v2654 = vpop.f32.mrb[0].mxu0
  %v2655 = vadd.f32 0.0, %v2654
  %v2656 = vpop.f32.mrb[0].mxu0
  %2657 = vdwg.mxu0
  %v2662 = vunpack.c.l.b16 %v2580
  %v2663 = vunpack.c.l.b16 %v2581
  %v2664 = vunpack.c.l.b16 %v2582
  %v2665 = vunpack.c.l.b16 %v2583
  %v2666 = vpack.c.b16 %v2663, %v2662
  %v2667 = vpack.c.b16 %v2665, %v2664
  %v2671 = vsel %vm147, %v2577, 0
  %v2674 = vsel %vm147, %v2578, 0
  %2676 = vmatprep.subr.bf16.mxu0 0
  %2677 = vmatpush1.bf16.msra.mxu0 %v2666
  %2678 = vmatprep.subr.bf16.mxu0 0
  %2679 = vmatpush1.bf16.msra.mxu0 %v2667
  %2680 = vmatprep.subr.bf16.mxu0 0
  %2681 = vmatpush1.bf16.msra.mxu0 0
  %2682 = vmatprep.subr.bf16.mxu0 0
  %2683 = vmatpush1.bf16.msra.mxu0 0
  %2684 = vmatprep.subr.bf16.mxu0 0
  %2685 = vmatpush1.bf16.msra.mxu0 0
  %2686 = vmatprep.subr.bf16.mxu0 0
  %2687 = vmatpush1.bf16.msra.mxu0 0
  %2688 = vmatprep.subr.bf16.mxu0 0
  %2689 = vmatpush1.bf16.msra.mxu0 0
  %2690 = vmatprep.subr.bf16.mxu0 0
  %2691 = vmatpush1.bf16.msra.mxu0 0
  %2692 = vmatprep.subr.bf16.mxu0 0
  %2693 = vmatpush1.bf16.msra.mxu0 0
  %2694 = vmatprep.subr.bf16.mxu0 0
  %2695 = vmatpush1.bf16.msra.mxu0 0
  %2696 = vmatprep.subr.bf16.mxu0 0
  %2697 = vmatpush1.bf16.msra.mxu0 0
  %2698 = vmatprep.subr.bf16.mxu0 0
  %2699 = vmatpush1.bf16.msra.mxu0 0
  %2700 = vmatprep.subr.bf16.mxu0 0
  %2701 = vmatpush1.bf16.msra.mxu0 0
  %2702 = vmatprep.subr.bf16.mxu0 0
  %2703 = vmatpush1.bf16.msra.mxu0 0
  %2704 = vmatprep.subr.bf16.mxu0 0
  %2705 = vmatpush1.bf16.msra.mxu0 0
  %2706 = vmatprep.subr.bf16.mxu0 0
  %2707 = vmatpush1.bf16.msra.mxu0 0
  %2708 = vmatprep.mubr.bf16.mxu0 0
  %2709 = vmatmul.mubr.bf16.gmra.mrb[0].mxu0 %v2671
  %v2710 = vpop.f32.mrb[0].mxu0
  %v2711 = vadd.f32 %v2644, %v2710
  %v2712 = vpop.f32.mrb[0].mxu0
  %v2713 = vpop.f32.mrb[0].mxu0
  %v2714 = vadd.f32 %v2647, %v2713
  %v2715 = vpop.f32.mrb[0].mxu0
  %2716 = vmatprep.mubr.bf16.mxu0 0
  %2717 = vmatmul.mubr.bf16.gmra.mrb[0].mxu0 %v2674
  %v2718 = vpop.f32.mrb[0].mxu0
  %v2719 = vadd.f32 %v2652, %v2718
  %v2720 = vpop.f32.mrb[0].mxu0
  %v2721 = vpop.f32.mrb[0].mxu0
  %v2722 = vadd.f32 %v2655, %v2721
  %v2723 = vpop.f32.mrb[0].mxu0
  %2724 = vdwg.mxu0
  %v2725 = vpack.c.bf16 %v2574, %v2573
  %v2726 = vpack.c.bf16 %v2576, %v2575
  %s2727 = scalar_lea.vmem %s1, 416
  %v2728 = vld [vmem:[%s2727] sm:$0xf]
  %v2729 = vld [vmem:[%s2727 + $0x4] sm:$0xf]
  %v2730 = vld [vmem:[%s2727 + $0x8] sm:$0xf]
  %v2731 = vld [vmem:[%s2727 + $0xc] sm:$0xf]
  %v2736 = vunpack.c.l.b16 %v2728
  %v2737 = vunpack.c.l.b16 %v2729
  %v2738 = vunpack.c.l.b16 %v2730
  %v2739 = vunpack.c.l.b16 %v2731
  %v2740 = vpack.c.b16 %v2737, %v2736
  %v2741 = vpack.c.b16 %v2739, %v2738
  %v2745 = vsel %vm147, %v2725, 0
  %v2748 = vsel %vm147, %v2726, 0
  %2750 = vmatprep.subr.bf16.mxu0 0
  %2751 = vmatpush1.bf16.msra.mxu0 %v2740
  %2752 = vmatprep.subr.bf16.mxu0 0
  %2753 = vmatpush1.bf16.msra.mxu0 %v2741
  %2754 = vmatprep.subr.bf16.mxu0 0
  %2755 = vmatpush1.bf16.msra.mxu0 0
  %2756 = vmatprep.subr.bf16.mxu0 0
  %2757 = vmatpush1.bf16.msra.mxu0 0
  %2758 = vmatprep.subr.bf16.mxu0 0
  %2759 = vmatpush1.bf16.msra.mxu0 0
  %2760 = vmatprep.subr.bf16.mxu0 0
  %2761 = vmatpush1.bf16.msra.mxu0 0
  %2762 = vmatprep.subr.bf16.mxu0 0
  %2763 = vmatpush1.bf16.msra.mxu0 0
  %2764 = vmatprep.subr.bf16.mxu0 0
  %2765 = vmatpush1.bf16.msra.mxu0 0
  %2766 = vmatprep.subr.bf16.mxu0 0
  %2767 = vmatpush1.bf16.msra.mxu0 0
  %2768 = vmatprep.subr.bf16.mxu0 0
  %2769 = vmatpush1.bf16.msra.mxu0 0
  %2770 = vmatprep.subr.bf16.mxu0 0
  %2771 = vmatpush1.bf16.msra.mxu0 0
  %2772 = vmatprep.subr.bf16.mxu0 0
  %2773 = vmatpush1.bf16.msra.mxu0 0
  %2774 = vmatprep.subr.bf16.mxu0 0
  %2775 = vmatpush1.bf16.msra.mxu0 0
  %2776 = vmatprep.subr.bf16.mxu0 0
  %2777 = vmatpush1.bf16.msra.mxu0 0
  %2778 = vmatprep.subr.bf16.mxu0 0
  %2779 = vmatpush1.bf16.msra.mxu0 0
  %2780 = vmatprep.subr.bf16.mxu0 0
  %2781 = vmatpush1.bf16.msra.mxu0 0
  %2782 = vmatprep.mubr.bf16.mxu0 0
  %2783 = vmatmul.mubr.bf16.gmra.mrb[0].mxu0 %v2745
  %v2784 = vpop.f32.mrb[0].mxu0
  %v2785 = vadd.f32 0.0, %v2784
  %v2786 = vpop.f32.mrb[0].mxu0
  %v2787 = vpop.f32.mrb[0].mxu0
  %v2788 = vadd.f32 0.0, %v2787
  %v2789 = vpop.f32.mrb[0].mxu0
  %2790 = vmatprep.mubr.bf16.mxu0 0
  %2791 = vmatmul.mubr.bf16.gmra.mrb[0].mxu0 %v2748
  %v2792 = vpop.f32.mrb[0].mxu0
  %v2793 = vadd.f32 0.0, %v2792
  %v2794 = vpop.f32.mrb[0].mxu0
  %v2795 = vpop.f32.mrb[0].mxu0
  %v2796 = vadd.f32 0.0, %v2795
  %v2797 = vpop.f32.mrb[0].mxu0
  %2798 = vdwg.mxu0
  %v2799 = vadd.f32 %v2711, %v2785
  %v2800 = vadd.f32 %v2714, %v2788
  %v2801 = vadd.f32 %v2719, %v2793
  %v2802 = vadd.f32 %v2722, %v2796
  %s2803 = scalar_lea.vmem %s2, 16
  %v2804 = vld [vmem:[%s2803] sm:$0x3]
  %v2805 = vadd.f32 %v2799, %v2800
  %v2806 = vadd.f32 %v2805, %v2801
  %v2807 = vadd.f32 %v2806, %v2802
  %v2808 = vrot.slane %v2807, 4
  %v2809 = vadd.f32 %v2807, %v2808
  %v2810 = vrot.slane %v2809, 2
  %v2811 = vadd.f32 %v2809, %v2810
  %v2812 = vrot.slane %v2811, 1
  %v2813 = vadd.f32 %v2811, %v2812
  %v2814 = vmul.f32 %v2813, 0.03125
  %v2815 = vmul.f32 %v2799, %v2799
  %v2816 = vmul.f32 %v2800, %v2800
  %v2817 = vmul.f32 %v2801, %v2801
  %v2818 = vmul.f32 %v2802, %v2802
  %v2819 = vadd.f32 %v2815, %v2816
  %v2820 = vadd.f32 %v2819, %v2817
  %v2821 = vadd.f32 %v2820, %v2818
  %v2822 = vrot.slane %v2821, 4
  %v2823 = vadd.f32 %v2821, %v2822
  %v2824 = vrot.slane %v2823, 2
  %v2825 = vadd.f32 %v2823, %v2824
  %v2826 = vrot.slane %v2825, 1
  %v2827 = vadd.f32 %v2825, %v2826
  %v2828 = vmul.f32 %v2827, 0.03125
  %v2829 = vmul.f32 %v2814, %v2814
  %v2830 = vsub.f32 %v2828, %v2829
  %v2831 = vadd.f32 %v2830, 1e-05
  %v2832 = vrsqrt.pop %v2831
  %v2833 = vmul.f32 %v2804, %v2832
  %v2834 = vmul.f32 %v2814, %v2833
  %v2836 = vrot.slane %v2834, 7
  %v2838 = vsub.f32 %v2804, %v2836
  %v2839 = vlaneseq
  %v2840 = vshrl.u32 %v2839, 7
  %v2841 = vsub.s32 0, %v2840
  %v2842 = vrot.slane %v2833, %v2841
  %v2843 = vmul.f32 %v2799, %v2842
  %v2844 = vmul.f32 %v2800, %v2842
  %v2845 = vmul.f32 %v2801, %v2842
  %v2846 = vmul.f32 %v2802, %v2842
  %v2847 = vlaneseq
  %v2848 = vshrl.u32 %v2847, 7
  %v2849 = vsub.s32 1, %v2848
  %v2850 = vrot.slane %v2838, %v2849
  %v2851 = vadd.f32 %v2843, %v2850
  %v2852 = vadd.f32 %v2844, %v2850
  %v2853 = vadd.f32 %v2845, %v2850
  %v2854 = vadd.f32 %v2846, %v2850
  %v2855 = vmax.f32 %v2851, 0.0
  %v2856 = vmax.f32 %v2852, 0.0
  %v2857 = vmax.f32 %v2853, 0.0
  %v2858 = vmax.f32 %v2854, 0.0
  %v2859 = vrot.slane %v2855, 7
  %v2860 = vrot.slane %v2856, 7
  %v2861 = vrot.slane %v2857, 7
  %v2862 = vrot.slane %v2858, 7
  %v2863 = vsel %vm100, %v2861, %v2862
  %v2864 = vsel %vm100, %v2860, %v2861
  %v2865 = vsel %vm100, %v2859, %v2860
  %v2866 = vsel %vm100, %v2862, %v2859
  %v2867 = vmul.f32 %v2866, %v76
  %v2868 = vmul.f32 %v2865, %v77
  %v2869 = vmul.f32 %v2864, %v78
  %v2870 = vmul.f32 %v2863, %v79
  %v2871 = vrot.slane %v2855, 1
  %v2872 = vrot.slane %v2856, 1
  %v2873 = vrot.slane %v2857, 1
  %v2874 = vrot.slane %v2858, 1
  %v2875 = vsel %vm113, %v2873, %v2874
  %v2876 = vsel %vm113, %v2872, %v2873
  %v2877 = vsel %vm113, %v2871, %v2872
  %v2878 = vsel %vm113, %v2874, %v2871
  %v2879 = vmul.f32 %v2877, %v88
  %v2880 = vmul.f32 %v2876, %v89
  %v2881 = vmul.f32 %v2875, %v90
  %v2882 = vmul.f32 %v2878, %v91
  %v2883 = vpack.c.bf16 %v2868, %v2867
  %v2884 = vpack.c.bf16 %v2870, %v2869
  %s2885 = scalar_lea.vmem %s1, 432
  %v2886 = vld [vmem:[%s2885] sm:$0xf]
  %v2887 = vld [vmem:[%s2885 + $0x4] sm:$0xf]
  %v2888 = vld [vmem:[%s2885 + $0x8] sm:$0xf]
  %v2889 = vld [vmem:[%s2885 + $0xc] sm:$0xf]
  %v2890 = vpack.c.bf16 %v2856, %v2855
  %v2891 = vpack.c.bf16 %v2858, %v2857
  %s2892 = scalar_lea.vmem %s1, 448
  %v2893 = vld [vmem:[%s2892] sm:$0xf]
  %v2894 = vld [vmem:[%s2892 + $0x4] sm:$0xf]
  %v2895 = vld [vmem:[%s2892 + $0x8] sm:$0xf]
  %v2896 = vld [vmem:[%s2892 + $0xc] sm:$0xf]
  %v2901 = vunpack.c.l.b16 %v2893
  %v2902 = vunpack.c.l.b16 %v2894
  %v2903 = vunpack.c.l.b16 %v2895
  %v2904 = vunpack.c.l.b16 %v2896
  %v2905 = vpack.c.b16 %v2902, %v2901
  %v2906 = vpack.c.b16 %v2904, %v2903
  %v2910 = vsel %vm147, %v2890, 0
  %v2913 = vsel %vm147, %v2891, 0
  %2915 = vmatprep.subr.bf16.mxu0 0
  %2916 = vmatpush1.bf16.msra.mxu0 %v2905
  %2917 = vmatprep.subr.bf16.mxu0 0
  %2918 = vmatpush1.bf16.msra.mxu0 %v2906
  %2919 = vmatprep.subr.bf16.mxu0 0
  %2920 = vmatpush1.bf16.msra.mxu0 0
  %2921 = vmatprep.subr.bf16.mxu0 0
  %2922 = vmatpush1.bf16.msra.mxu0 0
  %2923 = vmatprep.subr.bf16.mxu0 0
  %2924 = vmatpush1.bf16.msra.mxu0 0
  %2925 = vmatprep.subr.bf16.mxu0 0
  %2926 = vmatpush1.bf16.msra.mxu0 0
  %2927 = vmatprep.subr.bf16.mxu0 0
  %2928 = vmatpush1.bf16.msra.mxu0 0
  %2929 = vmatprep.subr.bf16.mxu0 0
  %2930 = vmatpush1.bf16.msra.mxu0 0
  %2931 = vmatprep.subr.bf16.mxu0 0
  %2932 = vmatpush1.bf16.msra.mxu0 0
  %2933 = vmatprep.subr.bf16.mxu0 0
  %2934 = vmatpush1.bf16.msra.mxu0 0
  %2935 = vmatprep.subr.bf16.mxu0 0
  %2936 = vmatpush1.bf16.msra.mxu0 0
  %2937 = vmatprep.subr.bf16.mxu0 0
  %2938 = vmatpush1.bf16.msra.mxu0 0
  %2939 = vmatprep.subr.bf16.mxu0 0
  %2940 = vmatpush1.bf16.msra.mxu0 0
  %2941 = vmatprep.subr.bf16.mxu0 0
  %2942 = vmatpush1.bf16.msra.mxu0 0
  %2943 = vmatprep.subr.bf16.mxu0 0
  %2944 = vmatpush1.bf16.msra.mxu0 0
  %2945 = vmatprep.subr.bf16.mxu0 0
  %2946 = vmatpush1.bf16.msra.mxu0 0
  %2947 = vmatprep.mubr.bf16.mxu0 0
  %2948 = vmatmul.mubr.bf16.gmra.mrb[0].mxu0 %v2910
  %v2949 = vpop.f32.mrb[0].mxu0
  %v2950 = vadd.f32 0.0, %v2949
  %v2951 = vpop.f32.mrb[0].mxu0
  %v2952 = vpop.f32.mrb[0].mxu0
  %v2953 = vadd.f32 0.0, %v2952
  %v2954 = vpop.f32.mrb[0].mxu0
  %2955 = vmatprep.mubr.bf16.mxu0 0
  %2956 = vmatmul.mubr.bf16.gmra.mrb[0].mxu0 %v2913
  %v2957 = vpop.f32.mrb[0].mxu0
  %v2958 = vadd.f32 0.0, %v2957
  %v2959 = vpop.f32.mrb[0].mxu0
  %v2960 = vpop.f32.mrb[0].mxu0
  %v2961 = vadd.f32 0.0, %v2960
  %v2962 = vpop.f32.mrb[0].mxu0
  %2963 = vdwg.mxu0
  %v2968 = vunpack.c.l.b16 %v2886
  %v2969 = vunpack.c.l.b16 %v2887
  %v2970 = vunpack.c.l.b16 %v2888
  %v2971 = vunpack.c.l.b16 %v2889
  %v2972 = vpack.c.b16 %v2969, %v2968
  %v2973 = vpack.c.b16 %v2971, %v2970
  %v2977 = vsel %vm147, %v2883, 0
  %v2980 = vsel %vm147, %v2884, 0
  %2982 = vmatprep.subr.bf16.mxu0 0
  %2983 = vmatpush1.bf16.msra.mxu0 %v2972
  %2984 = vmatprep.subr.bf16.mxu0 0
  %2985 = vmatpush1.bf16.msra.mxu0 %v2973
  %2986 = vmatprep.subr.bf16.mxu0 0
  %2987 = vmatpush1.bf16.msra.mxu0 0
  %2988 = vmatprep.subr.bf16.mxu0 0
  %2989 = vmatpush1.bf16.msra.mxu0 0
  %2990 = vmatprep.subr.bf16.mxu0 0
  %2991 = vmatpush1.bf16.msra.mxu0 0
  %2992 = vmatprep.subr.bf16.mxu0 0
  %2993 = vmatpush1.bf16.msra.mxu0 0
  %2994 = vmatprep.subr.bf16.mxu0 0
  %2995 = vmatpush1.bf16.msra.mxu0 0
  %2996 = vmatprep.subr.bf16.mxu0 0
  %2997 = vmatpush1.bf16.msra.mxu0 0
  %2998 = vmatprep.subr.bf16.mxu0 0
  %2999 = vmatpush1.bf16.msra.mxu0 0
  %3000 = vmatprep.subr.bf16.mxu0 0
  %3001 = vmatpush1.bf16.msra.mxu0 0
  %3002 = vmatprep.subr.bf16.mxu0 0
  %3003 = vmatpush1.bf16.msra.mxu0 0
  %3004 = vmatprep.subr.bf16.mxu0 0
  %3005 = vmatpush1.bf16.msra.mxu0 0
  %3006 = vmatprep.subr.bf16.mxu0 0
  %3007 = vmatpush1.bf16.msra.mxu0 0
  %3008 = vmatprep.subr.bf16.mxu0 0
  %3009 = vmatpush1.bf16.msra.mxu0 0
  %3010 = vmatprep.subr.bf16.mxu0 0
  %3011 = vmatpush1.bf16.msra.mxu0 0
  %3012 = vmatprep.subr.bf16.mxu0 0
  %3013 = vmatpush1.bf16.msra.mxu0 0
  %3014 = vmatprep.mubr.bf16.mxu0 0
  %3015 = vmatmul.mubr.bf16.gmra.mrb[0].mxu0 %v2977
  %v3016 = vpop.f32.mrb[0].mxu0
  %v3017 = vadd.f32 %v2950, %v3016
  %v3018 = vpop.f32.mrb[0].mxu0
  %v3019 = vpop.f32.mrb[0].mxu0
  %v3020 = vadd.f32 %v2953, %v3019
  %v3021 = vpop.f32.mrb[0].mxu0
  %3022 = vmatprep.mubr.bf16.mxu0 0
  %3023 = vmatmul.mubr.bf16.gmra.mrb[0].mxu0 %v2980
  %v3024 = vpop.f32.mrb[0].mxu0
  %v3025 = vadd.f32 %v2958, %v3024
  %v3026 = vpop.f32.mrb[0].mxu0
  %v3027 = vpop.f32.mrb[0].mxu0
  %v3028 = vadd.f32 %v2961, %v3027
  %v3029 = vpop.f32.mrb[0].mxu0
  %3030 = vdwg.mxu0
  %v3031 = vpack.c.bf16 %v2880, %v2879
  %v3032 = vpack.c.bf16 %v2882, %v2881
  %s3033 = scalar_lea.vmem %s1, 464
  %v3034 = vld [vmem:[%s3033] sm:$0xf]
  %v3035 = vld [vmem:[%s3033 + $0x4] sm:$0xf]
  %v3036 = vld [vmem:[%s3033 + $0x8] sm:$0xf]
  %v3037 = vld [vmem:[%s3033 + $0xc] sm:$0xf]
  %v3042 = vunpack.c.l.b16 %v3034
  %v3043 = vunpack.c.l.b16 %v3035
  %v3044 = vunpack.c.l.b16 %v3036
  %v3045 = vunpack.c.l.b16 %v3037
  %v3046 = vpack.c.b16 %v3043, %v3042
  %v3047 = vpack.c.b16 %v3045, %v3044
  %v3051 = vsel %vm147, %v3031, 0
  %v3054 = vsel %vm147, %v3032, 0
  %3056 = vmatprep.subr.bf16.mxu0 0
  %3057 = vmatpush1.bf16.msra.mxu0 %v3046
  %3058 = vmatprep.subr.bf16.mxu0 0
  %3059 = vmatpush1.bf16.msra.mxu0 %v3047
  %3060 = vmatprep.subr.bf16.mxu0 0
  %3061 = vmatpush1.bf16.msra.mxu0 0
  %3062 = vmatprep.subr.bf16.mxu0 0
  %3063 = vmatpush1.bf16.msra.mxu0 0
  %3064 = vmatprep.subr.bf16.mxu0 0
  %3065 = vmatpush1.bf16.msra.mxu0 0
  %3066 = vmatprep.subr.bf16.mxu0 0
  %3067 = vmatpush1.bf16.msra.mxu0 0
  %3068 = vmatprep.subr.bf16.mxu0 0
  %3069 = vmatpush1.bf16.msra.mxu0 0
  %3070 = vmatprep.subr.bf16.mxu0 0
  %3071 = vmatpush1.bf16.msra.mxu0 0
  %3072 = vmatprep.subr.bf16.mxu0 0
  %3073 = vmatpush1.bf16.msra.mxu0 0
  %3074 = vmatprep.subr.bf16.mxu0 0
  %3075 = vmatpush1.bf16.msra.mxu0 0
  %3076 = vmatprep.subr.bf16.mxu0 0
  %3077 = vmatpush1.bf16.msra.mxu0 0
  %3078 = vmatprep.subr.bf16.mxu0 0
  %3079 = vmatpush1.bf16.msra.mxu0 0
  %3080 = vmatprep.subr.bf16.mxu0 0
  %3081 = vmatpush1.bf16.msra.mxu0 0
  %3082 = vmatprep.subr.bf16.mxu0 0
  %3083 = vmatpush1.bf16.msra.mxu0 0
  %3084 = vmatprep.subr.bf16.mxu0 0
  %3085 = vmatpush1.bf16.msra.mxu0 0
  %3086 = vmatprep.subr.bf16.mxu0 0
  %3087 = vmatpush1.bf16.msra.mxu0 0
  %3088 = vmatprep.mubr.bf16.mxu0 0
  %3089 = vmatmul.mubr.bf16.gmra.mrb[0].mxu0 %v3051
  %v3090 = vpop.f32.mrb[0].mxu0
  %v3091 = vadd.f32 0.0, %v3090
  %v3092 = vpop.f32.mrb[0].mxu0
  %v3093 = vpop.f32.mrb[0].mxu0
  %v3094 = vadd.f32 0.0, %v3093
  %v3095 = vpop.f32.mrb[0].mxu0
  %3096 = vmatprep.mubr.bf16.mxu0 0
  %3097 = vmatmul.mubr.bf16.gmra.mrb[0].mxu0 %v3054
  %v3098 = vpop.f32.mrb[0].mxu0
  %v3099 = vadd.f32 0.0, %v3098
  %v3100 = vpop.f32.mrb[0].mxu0
  %v3101 = vpop.f32.mrb[0].mxu0
  %v3102 = vadd.f32 0.0, %v3101
  %v3103 = vpop.f32.mrb[0].mxu0
  %3104 = vdwg.mxu0
  %v3105 = vadd.f32 %v3017, %v3091
  %v3106 = vadd.f32 %v3020, %v3094
  %v3107 = vadd.f32 %v3025, %v3099
  %v3108 = vadd.f32 %v3028, %v3102
  %s3109 = scalar_lea.vmem %s2, 18
  %v3110 = vld [vmem:[%s3109] sm:$0x3]
  %v3111 = vadd.f32 %v3105, %v3106
  %v3112 = vadd.f32 %v3111, %v3107
  %v3113 = vadd.f32 %v3112, %v3108
  %v3114 = vrot.slane %v3113, 4
  %v3115 = vadd.f32 %v3113, %v3114
  %v3116 = vrot.slane %v3115, 2
  %v3117 = vadd.f32 %v3115, %v3116
  %v3118 = vrot.slane %v3117, 1
  %v3119 = vadd.f32 %v3117, %v3118
  %v3120 = vmul.f32 %v3119, 0.03125
  %v3121 = vmul.f32 %v3105, %v3105
  %v3122 = vmul.f32 %v3106, %v3106
  %v3123 = vmul.f32 %v3107, %v3107
  %v3124 = vmul.f32 %v3108, %v3108
  %v3125 = vadd.f32 %v3121, %v3122
  %v3126 = vadd.f32 %v3125, %v3123
  %v3127 = vadd.f32 %v3126, %v3124
  %v3128 = vrot.slane %v3127, 4
  %v3129 = vadd.f32 %v3127, %v3128
  %v3130 = vrot.slane %v3129, 2
  %v3131 = vadd.f32 %v3129, %v3130
  %v3132 = vrot.slane %v3131, 1
  %v3133 = vadd.f32 %v3131, %v3132
  %v3134 = vmul.f32 %v3133, 0.03125
  %v3135 = vmul.f32 %v3120, %v3120
  %v3136 = vsub.f32 %v3134, %v3135
  %v3137 = vadd.f32 %v3136, 1e-05
  %v3138 = vrsqrt.pop %v3137
  %v3139 = vmul.f32 %v3110, %v3138
  %v3140 = vmul.f32 %v3120, %v3139
  %v3142 = vrot.slane %v3140, 7
  %v3144 = vsub.f32 %v3110, %v3142
  %v3145 = vlaneseq
  %v3146 = vshrl.u32 %v3145, 7
  %v3147 = vsub.s32 0, %v3146
  %v3148 = vrot.slane %v3139, %v3147
  %v3149 = vmul.f32 %v3105, %v3148
  %v3150 = vmul.f32 %v3106, %v3148
  %v3151 = vmul.f32 %v3107, %v3148
  %v3152 = vmul.f32 %v3108, %v3148
  %v3153 = vlaneseq
  %v3154 = vshrl.u32 %v3153, 7
  %v3155 = vsub.s32 1, %v3154
  %v3156 = vrot.slane %v3144, %v3155
  %v3157 = vadd.f32 %v3149, %v3156
  %v3158 = vadd.f32 %v3150, %v3156
  %v3159 = vadd.f32 %v3151, %v3156
  %v3160 = vadd.f32 %v3152, %v3156
  %v3161 = vmax.f32 %v3157, 0.0
  %v3162 = vmax.f32 %v3158, 0.0
  %v3163 = vmax.f32 %v3159, 0.0
  %v3164 = vmax.f32 %v3160, 0.0
  %3165 = vst [vmem:[%s3] sm:$0xff] %v3161
  %3166 = vst [vmem:[%s3 + $0x8] sm:$0xff] %v3162
  %3167 = vst [vmem:[%s3 + $0x10] sm:$0xff] %v3163
  %3168 = vst [vmem:[%s3 + $0x18] sm:$0xff] %v3164
  // Predicated region
  $region14: #{unet_pallas.1} parent=0 // pred_check
    _
  $region15: #{unet_pallas.1} parent=0 // pred_check_branch
    %3170 = sbr.rel (0) target = $region17
  $region16: #{unet_pallas.1} parent=0 // pred_region
    _
  $region17: #{unet_pallas.1} parent=0 // pred_fallthru
    _
  // Predicated region
  $region18: #{unet_pallas.1} parent=0 // pred_check
    _
  $region19: #{unet_pallas.1} parent=0 // pred_check_branch
    %3172 = sbr.rel (0) target = $region21
  $region20: #{unet_pallas.1} parent=0 // pred_region
    _
  $region21: #{unet_pallas.1} parent=0 // pred_fallthru
    _

</llo_original>
